<compile_context>
chip_gen: v5e
topology: v5e:2x2
jax: 0.10.0
libtpu: 0.0.40
codegen_flags: <defaults>
</compile_context>

<pallas_src>
import functools
import math

import jax
import jax.numpy as jnp
from jax import lax
from jax.experimental import pallas as pl
from jax.experimental.pallas import tpu as pltpu


def _bounds(vmin, vmax, thr, axis):
    """Reference bound formulas from per-row / per-col min & max.

    For table = (x >= thr):
        all_j table[i, j]  <=>  min_j x[i, j] >= thr
        any_j table[i, j]  <=>  max_j x[i, j] >= thr
    so the reference masked full-plane reductions
        lo = min_{i,j} ((i == 0) * 100000 + table * i)
        hi = max_{i,j} ((i == 0) * -100000 + table * i)
    (quirks included: index 0 masked, inactive pixels contribute 0) collapse to
    reductions over per-axis vectors.

    vmin, vmax: (CB, H, 1) or (CB, 1, W) float32.  thr: (CB, 1, 1).
    Returns lo, hi of shape (CB, 1, 1), float32.
    """
    idx_shape = [1, 1, 1]
    idx_shape[axis] = vmin.shape[axis]
    idx = lax.broadcasted_iota(jnp.int32, tuple(idx_shape), axis)
    idx_f = idx.astype(jnp.float32)
    lo_vals = jnp.where(idx == 0, 100000.0, jnp.where(vmin >= thr, idx_f, 0.0))
    hi_vals = jnp.where(idx == 0, -100000.0, jnp.where(vmax >= thr, idx_f, 0.0))
    lo = jnp.min(lo_vals, axis=axis, keepdims=True)
    hi = jnp.max(hi_vals, axis=axis, keepdims=True)
    return lo, hi


def _aa_weights(out_idx, in_idx, lo, hi, scale, inv_fs, norm_axis):
    """Antialiased bilinear resize weights (PyTorch antialias=True,
    align_corners=False -> PIL triangle filter) for the dynamic crop [lo, hi].

    out_idx / in_idx: (1, a, b) f32 iota grids shared across channels.
    lo, hi, scale, inv_fs: (CB, 1, 1) per-channel scalars -> weights broadcast
    to (CB, a, b) in one vectorized pass for the whole channel batch.
    norm_axis: axis of the weight tensor that runs over input pixels.
    """
    center = (out_idx + 0.5) * scale                        # crop coordinates
    dist = jnp.abs((in_idx - lo) + 0.5 - center)            # in_idx - lo = crop-local
    w = jnp.maximum(0.0, 1.0 - dist * inv_fs)               # triangle filter
    w = jnp.where((in_idx >= lo) & (in_idx <= hi), w, 0.0)  # only in-crop taps
    s = jnp.sum(w, axis=norm_axis, keepdims=True)
    # PIL/PyTorch renormalization; exact reciprocal (tiny tensor, no approx-EUP
    # drift); eps guards pathological empty crops.
    return w * (1.0 / jnp.maximum(s, 1e-12))


def _smartpool_kernel(x_ref, o_ref, *, ratio, cb, h_out, w_out, mm_dtype):
    f32 = jnp.float32
    x = x_ref[...]                                           # (CB, H, W) native dtype
    _, H, W = x.shape

    # ---- thresholds + crop bounds (reductions on the native dtype) ----
    row_max = jnp.max(x, axis=2, keepdims=True).astype(f32)  # (CB, H, 1)
    row_min = jnp.min(x, axis=2, keepdims=True).astype(f32)  # (CB, H, 1)
    col_max = jnp.max(x, axis=1, keepdims=True).astype(f32)  # (CB, 1, W)
    col_min = jnp.min(x, axis=1, keepdims=True).astype(f32)  # (CB, 1, W)
    thr = ratio * jnp.max(row_max, axis=1, keepdims=True)    # (CB, 1, 1)

    x_lo, x_hi = _bounds(row_min, row_max, thr, axis=1)      # rows    (CB, 1, 1)
    y_lo, y_hi = _bounds(col_min, col_max, thr, axis=2)      # columns (CB, 1, 1)

    # ---- resize scales; exact reciprocals on (CB, 1, 1) tensors ----
    scale_h = (x_hi - x_lo + 1.0) / float(h_out)             # crop px per out px
    scale_w = (y_hi - y_lo + 1.0) / float(w_out)
    inv_fs_h = 1.0 / jnp.maximum(scale_h, 1.0)
    inv_fs_w = 1.0 / jnp.maximum(scale_w, 1.0)

    # ---- batched weight tensors: one vectorized build per channel block ----
    # Row weights (CB, h_out, H); column weights pre-transposed (CB, W, w_out)
    # so the second matmul is a plain NN dot (no RHS relayout).
    oi_h = lax.broadcasted_iota(jnp.int32, (1, h_out, H), 1).astype(f32)
    ii_h = lax.broadcasted_iota(jnp.int32, (1, h_out, H), 2).astype(f32)
    ii_w = lax.broadcasted_iota(jnp.int32, (1, W, w_out), 1).astype(f32)
    oi_w = lax.broadcasted_iota(jnp.int32, (1, W, w_out), 2).astype(f32)

    wr = _aa_weights(oi_h, ii_h, x_lo, x_hi, scale_h, inv_fs_h, norm_axis=2)
    wc_t = _aa_weights(oi_w, ii_w, y_lo, y_hi, scale_w, inv_fs_w, norm_axis=1)

    # ---- crop + resize as two batched matmuls (channel = batch dim) ----
    xm = x.astype(mm_dtype)
    rows = jnp.einsum('coi,ciw->cow', wr.astype(mm_dtype), xm,
                      preferred_element_type=f32)            # (CB, h_out, W)
    outp = jnp.einsum('cow,cwp->cop', rows.astype(mm_dtype),
                      wc_t.astype(mm_dtype),
                      preferred_element_type=f32)            # (CB, h_out, w_out)
    outp = outp.astype(o_ref.dtype)

    # Pack channels along the lane axis of the lane-dense output tile.  The
    # lane-offset stores below are vreg->VMEM only (and unmasked whenever
    # w_out is a multiple of 128); the HBM writeback of o_ref is a single
    # dense (h_out, CB * w_out) DMA.  A single fused packed store would need a
    # (CB, h_out, w_out) -> (h_out, CB*w_out) relayout whose reshape path is
    # not reliably supported by Mosaic, so we keep the known-good stores.
    for c in range(cb):
        o_ref[:, c * w_out:(c + 1) * w_out] = outp[c]


def _chip_budget():
    """Generation-aware (max_block_bytes, vmem_limit_bytes).

    v5e / v6e have 128 MiB VMEM -> big tiles; v7x has 64 MiB per TensorCore ->
    smaller tiles and a tighter scoped limit."""
    vmem_bytes = None
    try:
        info = pltpu.get_tpu_info()
        for name in ("vmem_capacity_bytes", "vmem_bytes", "vmem_size_bytes"):
            v = getattr(info, name, None)
            if v:
                vmem_bytes = int(v)
                break
    except Exception:
        pass
    if vmem_bytes is None:
        vmem_bytes = 64 << 20                  # conservative: assume v7x
    if vmem_bytes >= (96 << 20):               # v5e / v6e
        return 8 << 20, 64 << 20
    return 4 << 20, 32 << 20                   # v7x


def _pick_channel_batch(C, w_out, plane_bytes, max_block_bytes, max_cb=64):
    """Channels per grid step.

    Prefer CB such that CB * w_out is a multiple of 128 (lane-dense output
    tile / unmasked HBM writeback), stay within the per-block byte budget and
    keep wrapper-side channel padding small (tie-break toward bigger blocks
    for DMA amortization)."""
    lane_step = max(1, 128 // math.gcd(128, w_out))
    budget_cb = max(1, max_block_bytes // max(plane_bytes, 1))
    cap = min(max_cb, budget_cb)
    if lane_step > cap:
        # Can't reach a 128-lane multiple within budget: largest pow2 that fits.
        cb = 1
        while cb * 2 <= cap:
            cb *= 2
        return cb
    best = lane_step
    best_pad = ((C + best - 1) // best) * best
    m = 2 * lane_step
    while m <= cap:
        padded = ((C + m - 1) // m) * m
        if padded < best_pad or (padded == best_pad and m > best):
            best, best_pad = m, padded
        m += lane_step
    return best


def smart_pool2d(x, *, scale=2, mode="avgpool", ratio=0.1):
    # TODO(synk): mode='maxpool' branch (antialiased upsample to (H, W) +
    # max_pool2d) is not implemented; only the module default 'avgpool' is.
    if mode != "avgpool":
        raise NotImplementedError("only mode='avgpool' is implemented")
    N, C, H, W = x.shape
    h_out, w_out = H // scale, W // scale

    max_block_bytes, vmem_limit = _chip_budget()
    cb = _pick_channel_batch(C, w_out, H * W * x.dtype.itemsize, max_block_bytes)

    # Pad channels so cb divides evenly (keeps every output tile lane-dense);
    # padded channels compute on zeros and are sliced off below.
    Cp = ((C + cb - 1) // cb) * cb
    if Cp != C:
        x = jnp.pad(x, ((0, 0), (0, Cp - C), (0, 0), (0, 0)))
    g = Cp // cb

    # bf16 MXU operands once the contractions are big enough (v5e/v6e/v7x MXUs
    # are natively bf16); never upcast a bf16 input; f32 accumulate always.
    if x.dtype == jnp.bfloat16:
        mm_dtype = jnp.bfloat16
    else:
        mm_dtype = jnp.bfloat16 if min(H, W) >= 128 else jnp.float32

    kernel = functools.partial(
        _smartpool_kernel, ratio=float(ratio), cb=cb,
        h_out=h_out, w_out=w_out, mm_dtype=mm_dtype)

    packed = pl.pallas_call(
        kernel,
        out_shape=jax.ShapeDtypeStruct((N, g, h_out, cb * w_out), x.dtype),
        grid=(N, g),
        in_specs=[pl.BlockSpec((None, cb, H, W), lambda n, j: (n, j, 0, 0))],
        out_specs=pl.BlockSpec((None, None, h_out, cb * w_out),
                               lambda n, j: (n, j, 0, 0)),
        compiler_params=pltpu.CompilerParams(
            dimension_semantics=("parallel", "parallel"),
            vmem_limit_bytes=vmem_limit),
    )(x)

    # Undo the lane-dense channel packing (cheap XLA reshape/transpose) and
    # drop any padded channels.
    out = packed.reshape(N, g, h_out, cb, w_out)
    out = jnp.transpose(out, (0, 1, 3, 2, 4)).reshape(N, Cp, h_out, w_out)
    return out[:, :C]


if __name__ == "__main__":
    key = jax.random.PRNGKey(0)
    # SmartPool2d has no learnable parameters: (scale, mode, ratio) only.
    N, C, H, W = 2, 4, 16, 16
    scale, ratio = 2, 0.1
    x = jax.random.normal(key, (N, C, H, W), dtype=jnp.float32)

    out = smart_pool2d(x, scale=scale, mode="avgpool", ratio=ratio)
    out = jax.block_until_ready(out)
    assert out.shape == (N, C, H // scale, W // scale), out.shape
    assert out.dtype == jnp.float32
    assert bool(jnp.isfinite(out).all())
    print("KERNEL_OK")
</pallas_src>

<mosaic_0001>
module attributes {stable_mosaic.version = 11 : i64} {
  func.func @_smartpool_kernel(%arg0: i32, %arg1: i32, %arg2: memref<1x16x16x16xf32, #tpu.memory_space<vmem>>, %arg3: memref<1x1x8x128xf32, #tpu.memory_space<vmem>>) attributes {dimension_semantics = [#tpu.dimension_semantics<parallel>, #tpu.dimension_semantics<parallel>], iteration_bounds = array<i64: 2, 1>, scalar_prefetch = 0 : i64, scratch_operands = 0 : i64, tpu.core_type = #tpu.core_type<tc>, window_params = [{transform_indices = @transform_0, window_bounds = array<i64: 1, 16, 16, 16>}, {transform_indices = @transform_1, window_bounds = array<i64: 1, 1, 8, 128>}]} {
    %c0 = arith.constant 0 : index
    %c0_0 = arith.constant 0 : index
    %c0_1 = arith.constant 0 : index
    %c0_2 = arith.constant 0 : index
    %0 = vector.load %arg2[%c0, %c0_0, %c0_1, %c0_2] : memref<1x16x16x16xf32, #tpu.memory_space<vmem>>, vector<1x16x16x16xf32>
    %1 = vector.shape_cast %0 : vector<1x16x16x16xf32> to vector<16x16x16xf32>
    %cst = arith.constant dense<0xFF800000> : vector<16x16xf32>
    %2 = vector.multi_reduction <maximumf>, %1, %cst [2] : vector<16x16x16xf32> to vector<16x16xf32>
    %3 = vector.shape_cast %2 : vector<16x16xf32> to vector<16x16x1xf32>
    %cst_3 = arith.constant dense<0x7F800000> : vector<16x16xf32>
    %4 = vector.multi_reduction <minimumf>, %1, %cst_3 [2] : vector<16x16x16xf32> to vector<16x16xf32>
    %5 = vector.shape_cast %4 : vector<16x16xf32> to vector<16x16x1xf32>
    %cst_4 = arith.constant dense<0xFF800000> : vector<16x16xf32>
    %6 = vector.multi_reduction <maximumf>, %1, %cst_4 [1] : vector<16x16x16xf32> to vector<16x16xf32>
    %7 = vector.shape_cast %6 : vector<16x16xf32> to vector<16x1x16xf32>
    %cst_5 = arith.constant dense<0x7F800000> : vector<16x16xf32>
    %8 = vector.multi_reduction <minimumf>, %1, %cst_5 [1] : vector<16x16x16xf32> to vector<16x16xf32>
    %9 = vector.shape_cast %8 : vector<16x16xf32> to vector<16x1x16xf32>
    %cst_6 = arith.constant dense<0xFF800000> : vector<16x1xf32>
    %10 = vector.multi_reduction <maximumf>, %3, %cst_6 [1] : vector<16x16x1xf32> to vector<16x1xf32>
    %11 = vector.shape_cast %10 : vector<16x1xf32> to vector<16x1x1xf32>
    %cst_7 = arith.constant 1.000000e-01 : f32
    %12 = vector.broadcast %cst_7 : f32 to vector<16x1x1xf32>
    %13 = arith.mulf %12, %11 : vector<16x1x1xf32>
    %14 = tpu.iota {dimensions = array<i32: 1>} : vector<1x16x1xi32>
    %15 = arith.sitofp %14 : vector<1x16x1xi32> to vector<1x16x1xf32>
    %c0_i32 = arith.constant 0 : i32
    %16 = vector.broadcast %c0_i32 : i32 to vector<1x16x1xi32>
    %17 = arith.cmpi eq, %14, %16 : vector<1x16x1xi32>
    %18 = vector.broadcast %13 : vector<16x1x1xf32> to vector<16x16x1xf32>
    %19 = arith.cmpf oge, %5, %18 : vector<16x16x1xf32>
    %cst_8 = arith.constant 0.000000e+00 : f32
    %20 = vector.shape_cast %15 : vector<1x16x1xf32> to vector<1x16x1xf32>
    %21 = vector.broadcast %20 : vector<1x16x1xf32> to vector<16x16x1xf32>
    %22 = vector.broadcast %cst_8 : f32 to vector<16x16x1xf32>
    %23 = arith.select %19, %21, %22 : vector<16x16x1xi1>, vector<16x16x1xf32>
    %cst_9 = arith.constant 1.000000e+05 : f32
    %24 = vector.shape_cast %17 : vector<1x16x1xi1> to vector<1x16x1xi1>
    %25 = vector.broadcast %24 : vector<1x16x1xi1> to vector<16x16x1xi1>
    %26 = vector.broadcast %cst_9 : f32 to vector<16x16x1xf32>
    %27 = arith.select %25, %26, %23 : vector<16x16x1xi1>, vector<16x16x1xf32>
    %c0_i32_10 = arith.constant 0 : i32
    %28 = vector.broadcast %c0_i32_10 : i32 to vector<1x16x1xi32>
    %29 = arith.cmpi eq, %14, %28 : vector<1x16x1xi32>
    %30 = vector.broadcast %13 : vector<16x1x1xf32> to vector<16x16x1xf32>
    %31 = arith.cmpf oge, %3, %30 : vector<16x16x1xf32>
    %cst_11 = arith.constant 0.000000e+00 : f32
    %32 = vector.shape_cast %15 : vector<1x16x1xf32> to vector<1x16x1xf32>
    %33 = vector.broadcast %32 : vector<1x16x1xf32> to vector<16x16x1xf32>
    %34 = vector.broadcast %cst_11 : f32 to vector<16x16x1xf32>
    %35 = arith.select %31, %33, %34 : vector<16x16x1xi1>, vector<16x16x1xf32>
    %cst_12 = arith.constant -1.000000e+05 : f32
    %36 = vector.shape_cast %29 : vector<1x16x1xi1> to vector<1x16x1xi1>
    %37 = vector.broadcast %36 : vector<1x16x1xi1> to vector<16x16x1xi1>
    %38 = vector.broadcast %cst_12 : f32 to vector<16x16x1xf32>
    %39 = arith.select %37, %38, %35 : vector<16x16x1xi1>, vector<16x16x1xf32>
    %cst_13 = arith.constant dense<0x7F800000> : vector<16x1xf32>
    %40 = vector.multi_reduction <minimumf>, %27, %cst_13 [1] : vector<16x16x1xf32> to vector<16x1xf32>
    %41 = vector.shape_cast %40 : vector<16x1xf32> to vector<16x1x1xf32>
    %cst_14 = arith.constant dense<0xFF800000> : vector<16x1xf32>
    %42 = vector.multi_reduction <maximumf>, %39, %cst_14 [1] : vector<16x16x1xf32> to vector<16x1xf32>
    %43 = vector.shape_cast %42 : vector<16x1xf32> to vector<16x1x1xf32>
    %44 = tpu.iota {dimensions = array<i32: 2>} : vector<1x1x16xi32>
    %45 = arith.sitofp %44 : vector<1x1x16xi32> to vector<1x1x16xf32>
    %c0_i32_15 = arith.constant 0 : i32
    %46 = vector.broadcast %c0_i32_15 : i32 to vector<1x1x16xi32>
    %47 = arith.cmpi eq, %44, %46 : vector<1x1x16xi32>
    %48 = vector.broadcast %13 : vector<16x1x1xf32> to vector<16x1x16xf32>
    %49 = arith.cmpf oge, %9, %48 : vector<16x1x16xf32>
    %cst_16 = arith.constant 0.000000e+00 : f32
    %50 = vector.shape_cast %45 : vector<1x1x16xf32> to vector<1x1x16xf32>
    %51 = vector.broadcast %50 : vector<1x1x16xf32> to vector<16x1x16xf32>
    %52 = vector.broadcast %cst_16 : f32 to vector<16x1x16xf32>
    %53 = arith.select %49, %51, %52 : vector<16x1x16xi1>, vector<16x1x16xf32>
    %cst_17 = arith.constant 1.000000e+05 : f32
    %54 = vector.shape_cast %47 : vector<1x1x16xi1> to vector<1x1x16xi1>
    %55 = vector.broadcast %54 : vector<1x1x16xi1> to vector<16x1x16xi1>
    %56 = vector.broadcast %cst_17 : f32 to vector<16x1x16xf32>
    %57 = arith.select %55, %56, %53 : vector<16x1x16xi1>, vector<16x1x16xf32>
    %c0_i32_18 = arith.constant 0 : i32
    %58 = vector.broadcast %c0_i32_18 : i32 to vector<1x1x16xi32>
    %59 = arith.cmpi eq, %44, %58 : vector<1x1x16xi32>
    %60 = vector.broadcast %13 : vector<16x1x1xf32> to vector<16x1x16xf32>
    %61 = arith.cmpf oge, %7, %60 : vector<16x1x16xf32>
    %cst_19 = arith.constant 0.000000e+00 : f32
    %62 = vector.shape_cast %45 : vector<1x1x16xf32> to vector<1x1x16xf32>
    %63 = vector.broadcast %62 : vector<1x1x16xf32> to vector<16x1x16xf32>
    %64 = vector.broadcast %cst_19 : f32 to vector<16x1x16xf32>
    %65 = arith.select %61, %63, %64 : vector<16x1x16xi1>, vector<16x1x16xf32>
    %cst_20 = arith.constant -1.000000e+05 : f32
    %66 = vector.shape_cast %59 : vector<1x1x16xi1> to vector<1x1x16xi1>
    %67 = vector.broadcast %66 : vector<1x1x16xi1> to vector<16x1x16xi1>
    %68 = vector.broadcast %cst_20 : f32 to vector<16x1x16xf32>
    %69 = arith.select %67, %68, %65 : vector<16x1x16xi1>, vector<16x1x16xf32>
    %cst_21 = arith.constant dense<0x7F800000> : vector<16x1xf32>
    %70 = vector.multi_reduction <minimumf>, %57, %cst_21 [2] : vector<16x1x16xf32> to vector<16x1xf32>
    %71 = vector.shape_cast %70 : vector<16x1xf32> to vector<16x1x1xf32>
    %cst_22 = arith.constant dense<0xFF800000> : vector<16x1xf32>
    %72 = vector.multi_reduction <maximumf>, %69, %cst_22 [2] : vector<16x1x16xf32> to vector<16x1xf32>
    %73 = vector.shape_cast %72 : vector<16x1xf32> to vector<16x1x1xf32>
    %74 = arith.subf %43, %41 : vector<16x1x1xf32>
    %cst_23 = arith.constant 1.000000e+00 : f32
    %75 = vector.broadcast %cst_23 : f32 to vector<16x1x1xf32>
    %76 = arith.addf %74, %75 : vector<16x1x1xf32>
    %cst_24 = arith.constant 8.000000e+00 : f32
    %77 = vector.broadcast %cst_24 : f32 to vector<16x1x1xf32>
    %78 = arith.divf %76, %77 : vector<16x1x1xf32>
    %79 = arith.subf %73, %71 : vector<16x1x1xf32>
    %cst_25 = arith.constant 1.000000e+00 : f32
    %80 = vector.broadcast %cst_25 : f32 to vector<16x1x1xf32>
    %81 = arith.addf %79, %80 : vector<16x1x1xf32>
    %cst_26 = arith.constant 8.000000e+00 : f32
    %82 = vector.broadcast %cst_26 : f32 to vector<16x1x1xf32>
    %83 = arith.divf %81, %82 : vector<16x1x1xf32>
    %cst_27 = arith.constant 1.000000e+00 : f32
    %84 = vector.broadcast %cst_27 : f32 to vector<16x1x1xf32>
    %85 = arith.maximumf %78, %84 : vector<16x1x1xf32>
    %cst_28 = arith.constant 1.000000e+00 : f32
    %86 = vector.broadcast %cst_28 : f32 to vector<16x1x1xf32>
    %87 = arith.divf %86, %85 : vector<16x1x1xf32>
    %cst_29 = arith.constant 1.000000e+00 : f32
    %88 = vector.broadcast %cst_29 : f32 to vector<16x1x1xf32>
    %89 = arith.maximumf %83, %88 : vector<16x1x1xf32>
    %cst_30 = arith.constant 1.000000e+00 : f32
    %90 = vector.broadcast %cst_30 : f32 to vector<16x1x1xf32>
    %91 = arith.divf %90, %89 : vector<16x1x1xf32>
    %92 = tpu.iota {dimensions = array<i32: 1>} : vector<1x8x16xi32>
    %93 = arith.sitofp %92 : vector<1x8x16xi32> to vector<1x8x16xf32>
    %94 = tpu.iota {dimensions = array<i32: 2>} : vector<1x8x16xi32>
    %95 = arith.sitofp %94 : vector<1x8x16xi32> to vector<1x8x16xf32>
    %96 = tpu.iota {dimensions = array<i32: 1>} : vector<1x16x8xi32>
    %97 = arith.sitofp %96 : vector<1x16x8xi32> to vector<1x16x8xf32>
    %98 = tpu.iota {dimensions = array<i32: 2>} : vector<1x16x8xi32>
    %99 = arith.sitofp %98 : vector<1x16x8xi32> to vector<1x16x8xf32>
    %cst_31 = arith.constant 5.000000e-01 : f32
    %100 = vector.broadcast %cst_31 : f32 to vector<1x8x16xf32>
    %101 = arith.addf %93, %100 : vector<1x8x16xf32>
    %102 = vector.broadcast %101 : vector<1x8x16xf32> to vector<16x8x16xf32>
    %103 = vector.broadcast %78 : vector<16x1x1xf32> to vector<16x8x16xf32>
    %104 = arith.mulf %102, %103 : vector<16x8x16xf32>
    %105 = vector.broadcast %95 : vector<1x8x16xf32> to vector<16x8x16xf32>
    %106 = vector.broadcast %41 : vector<16x1x1xf32> to vector<16x8x16xf32>
    %107 = arith.subf %105, %106 : vector<16x8x16xf32>
    %cst_32 = arith.constant 5.000000e-01 : f32
    %108 = vector.broadcast %cst_32 : f32 to vector<16x8x16xf32>
    %109 = arith.addf %107, %108 : vector<16x8x16xf32>
    %110 = arith.subf %109, %104 : vector<16x8x16xf32>
    %111 = math.absf %110 : vector<16x8x16xf32>
    %112 = vector.broadcast %87 : vector<16x1x1xf32> to vector<16x8x16xf32>
    %113 = arith.mulf %111, %112 : vector<16x8x16xf32>
    %cst_33 = arith.constant 1.000000e+00 : f32
    %114 = vector.broadcast %cst_33 : f32 to vector<16x8x16xf32>
    %115 = arith.subf %114, %113 : vector<16x8x16xf32>
    %cst_34 = arith.constant 0.000000e+00 : f32
    %116 = vector.broadcast %cst_34 : f32 to vector<16x8x16xf32>
    %117 = arith.maximumf %116, %115 : vector<16x8x16xf32>
    %118 = vector.broadcast %95 : vector<1x8x16xf32> to vector<16x8x16xf32>
    %119 = vector.broadcast %41 : vector<16x1x1xf32> to vector<16x8x16xf32>
    %120 = arith.cmpf oge, %118, %119 : vector<16x8x16xf32>
    %121 = vector.broadcast %95 : vector<1x8x16xf32> to vector<16x8x16xf32>
    %122 = vector.broadcast %43 : vector<16x1x1xf32> to vector<16x8x16xf32>
    %123 = arith.cmpf ole, %121, %122 : vector<16x8x16xf32>
    %124 = arith.andi %120, %123 : vector<16x8x16xi1>
    %cst_35 = arith.constant 0.000000e+00 : f32
    %125 = vector.broadcast %cst_35 : f32 to vector<16x8x16xf32>
    %126 = arith.select %124, %117, %125 : vector<16x8x16xi1>, vector<16x8x16xf32>
    %cst_36 = arith.constant dense<0.000000e+00> : vector<16x8xf32>
    %127 = vector.multi_reduction <add>, %126, %cst_36 [2] : vector<16x8x16xf32> to vector<16x8xf32>
    %128 = vector.shape_cast %127 : vector<16x8xf32> to vector<16x8x1xf32>
    %cst_37 = arith.constant 9.99999996E-13 : f32
    %129 = vector.broadcast %cst_37 : f32 to vector<16x8x1xf32>
    %130 = arith.maximumf %128, %129 : vector<16x8x1xf32>
    %cst_38 = arith.constant 1.000000e+00 : f32
    %131 = vector.broadcast %cst_38 : f32 to vector<16x8x1xf32>
    %132 = arith.divf %131, %130 : vector<16x8x1xf32>
    %133 = vector.broadcast %132 : vector<16x8x1xf32> to vector<16x8x16xf32>
    %134 = arith.mulf %126, %133 : vector<16x8x16xf32>
    %cst_39 = arith.constant 5.000000e-01 : f32
    %135 = vector.broadcast %cst_39 : f32 to vector<1x16x8xf32>
    %136 = arith.addf %99, %135 : vector<1x16x8xf32>
    %137 = vector.broadcast %136 : vector<1x16x8xf32> to vector<16x16x8xf32>
    %138 = vector.broadcast %83 : vector<16x1x1xf32> to vector<16x16x8xf32>
    %139 = arith.mulf %137, %138 : vector<16x16x8xf32>
    %140 = vector.broadcast %97 : vector<1x16x8xf32> to vector<16x16x8xf32>
    %141 = vector.broadcast %71 : vector<16x1x1xf32> to vector<16x16x8xf32>
    %142 = arith.subf %140, %141 : vector<16x16x8xf32>
    %cst_40 = arith.constant 5.000000e-01 : f32
    %143 = vector.broadcast %cst_40 : f32 to vector<16x16x8xf32>
    %144 = arith.addf %142, %143 : vector<16x16x8xf32>
    %145 = arith.subf %144, %139 : vector<16x16x8xf32>
    %146 = math.absf %145 : vector<16x16x8xf32>
    %147 = vector.broadcast %91 : vector<16x1x1xf32> to vector<16x16x8xf32>
    %148 = arith.mulf %146, %147 : vector<16x16x8xf32>
    %cst_41 = arith.constant 1.000000e+00 : f32
    %149 = vector.broadcast %cst_41 : f32 to vector<16x16x8xf32>
    %150 = arith.subf %149, %148 : vector<16x16x8xf32>
    %cst_42 = arith.constant 0.000000e+00 : f32
    %151 = vector.broadcast %cst_42 : f32 to vector<16x16x8xf32>
    %152 = arith.maximumf %151, %150 : vector<16x16x8xf32>
    %153 = vector.broadcast %97 : vector<1x16x8xf32> to vector<16x16x8xf32>
    %154 = vector.broadcast %71 : vector<16x1x1xf32> to vector<16x16x8xf32>
    %155 = arith.cmpf oge, %153, %154 : vector<16x16x8xf32>
    %156 = vector.broadcast %97 : vector<1x16x8xf32> to vector<16x16x8xf32>
    %157 = vector.broadcast %73 : vector<16x1x1xf32> to vector<16x16x8xf32>
    %158 = arith.cmpf ole, %156, %157 : vector<16x16x8xf32>
    %159 = arith.andi %155, %158 : vector<16x16x8xi1>
    %cst_43 = arith.constant 0.000000e+00 : f32
    %160 = vector.broadcast %cst_43 : f32 to vector<16x16x8xf32>
    %161 = arith.select %159, %152, %160 : vector<16x16x8xi1>, vector<16x16x8xf32>
    %cst_44 = arith.constant dense<0.000000e+00> : vector<16x8xf32>
    %162 = vector.multi_reduction <add>, %161, %cst_44 [1] : vector<16x16x8xf32> to vector<16x8xf32>
    %163 = vector.shape_cast %162 : vector<16x8xf32> to vector<16x1x8xf32>
    %cst_45 = arith.constant 9.99999996E-13 : f32
    %164 = vector.broadcast %cst_45 : f32 to vector<16x1x8xf32>
    %165 = arith.maximumf %163, %164 : vector<16x1x8xf32>
    %cst_46 = arith.constant 1.000000e+00 : f32
    %166 = vector.broadcast %cst_46 : f32 to vector<16x1x8xf32>
    %167 = arith.divf %166, %165 : vector<16x1x8xf32>
    %168 = vector.broadcast %167 : vector<16x1x8xf32> to vector<16x16x8xf32>
    %169 = arith.mulf %161, %168 : vector<16x16x8xf32>
    "tpu.trace_start"() <{level = 10 : i32, message = "coi,ciw->cow"}> : () -> ()
    %cst_47 = arith.constant dense<0.000000e+00> : vector<16x8x16xf32>
    %170 = tpu.matmul %134, %1, %cst_47 {dimension_numbers = #tpu.dot_dimension_numbers<[2], [1], [1], [2], [0, 0, 0, 1, 1, 2], [0], [0]>} : vector<16x8x16xf32>, vector<16x16x16xf32>, vector<16x8x16xf32> -> vector<16x8x16xf32>
    "tpu.trace_stop"() : () -> ()
    "tpu.trace_start"() <{level = 10 : i32, message = "cow,cwp->cop"}> : () -> ()
    %cst_48 = arith.constant dense<0.000000e+00> : vector<16x8x8xf32>
    %171 = tpu.matmul %170, %169, %cst_48 {dimension_numbers = #tpu.dot_dimension_numbers<[2], [1], [1], [2], [0, 0, 0, 1, 1, 2], [0], [0]>} : vector<16x8x16xf32>, vector<16x16x8xf32>, vector<16x8x8xf32> -> vector<16x8x8xf32>
    "tpu.trace_stop"() : () -> ()
    %172 = vector.extract_strided_slice %171 {offsets = [0, 0, 0], sizes = [1, 8, 8], strides = [1, 1, 1]} : vector<16x8x8xf32> to vector<1x8x8xf32>
    %173 = vector.shape_cast %172 : vector<1x8x8xf32> to vector<8x8xf32>
    %c0_49 = arith.constant 0 : index
    %c0_50 = arith.constant 0 : index
    %c0_51 = arith.constant 0 : index
    %c0_52 = arith.constant 0 : index
    %174 = vector.load %arg3[%c0_49, %c0_50, %c0_51, %c0_52] : memref<1x1x8x128xf32, #tpu.memory_space<vmem>>, vector<1x1x8x8xf32>
    %175 = vector.shape_cast %174 : vector<1x1x8x8xf32> to vector<8x8xf32>
    %176 = vector.shape_cast %173 : vector<8x8xf32> to vector<1x1x8x8xf32>
    tpu.vector_store %arg3[%c0_49, %c0_50, %c0_51, %c0_52], %176 {strides = array<i32>} : memref<1x1x8x128xf32, #tpu.memory_space<vmem>>, vector<1x1x8x8xf32>,
    %177 = vector.extract_strided_slice %171 {offsets = [1, 0, 0], sizes = [1, 8, 8], strides = [1, 1, 1]} : vector<16x8x8xf32> to vector<1x8x8xf32>
    %178 = vector.shape_cast %177 : vector<1x8x8xf32> to vector<8x8xf32>
    %c0_53 = arith.constant 0 : index
    %c0_54 = arith.constant 0 : index
    %c0_55 = arith.constant 0 : index
    %c8 = arith.constant 8 : index
    %179 = vector.load %arg3[%c0_53, %c0_54, %c0_55, %c8] : memref<1x1x8x128xf32, #tpu.memory_space<vmem>>, vector<1x1x8x8xf32>
    %180 = vector.shape_cast %179 : vector<1x1x8x8xf32> to vector<8x8xf32>
    %181 = vector.shape_cast %178 : vector<8x8xf32> to vector<1x1x8x8xf32>
    tpu.vector_store %arg3[%c0_53, %c0_54, %c0_55, %c8], %181 {strides = array<i32>} : memref<1x1x8x128xf32, #tpu.memory_space<vmem>>, vector<1x1x8x8xf32>,
    %182 = vector.extract_strided_slice %171 {offsets = [2, 0, 0], sizes = [1, 8, 8], strides = [1, 1, 1]} : vector<16x8x8xf32> to vector<1x8x8xf32>
    %183 = vector.shape_cast %182 : vector<1x8x8xf32> to vector<8x8xf32>
    %c0_56 = arith.constant 0 : index
    %c0_57 = arith.constant 0 : index
    %c0_58 = arith.constant 0 : index
    %c16 = arith.constant 16 : index
    %184 = vector.load %arg3[%c0_56, %c0_57, %c0_58, %c16] : memref<1x1x8x128xf32, #tpu.memory_space<vmem>>, vector<1x1x8x8xf32>
    %185 = vector.shape_cast %184 : vector<1x1x8x8xf32> to vector<8x8xf32>
    %186 = vector.shape_cast %183 : vector<8x8xf32> to vector<1x1x8x8xf32>
    tpu.vector_store %arg3[%c0_56, %c0_57, %c0_58, %c16], %186 {strides = array<i32>} : memref<1x1x8x128xf32, #tpu.memory_space<vmem>>, vector<1x1x8x8xf32>,
    %187 = vector.extract_strided_slice %171 {offsets = [3, 0, 0], sizes = [1, 8, 8], strides = [1, 1, 1]} : vector<16x8x8xf32> to vector<1x8x8xf32>
    %188 = vector.shape_cast %187 : vector<1x8x8xf32> to vector<8x8xf32>
    %c0_59 = arith.constant 0 : index
    %c0_60 = arith.constant 0 : index
    %c0_61 = arith.constant 0 : index
    %c24 = arith.constant 24 : index
    %189 = vector.load %arg3[%c0_59, %c0_60, %c0_61, %c24] : memref<1x1x8x128xf32, #tpu.memory_space<vmem>>, vector<1x1x8x8xf32>
    %190 = vector.shape_cast %189 : vector<1x1x8x8xf32> to vector<8x8xf32>
    %191 = vector.shape_cast %188 : vector<8x8xf32> to vector<1x1x8x8xf32>
    tpu.vector_store %arg3[%c0_59, %c0_60, %c0_61, %c24], %191 {strides = array<i32>} : memref<1x1x8x128xf32, #tpu.memory_space<vmem>>, vector<1x1x8x8xf32>,
    %192 = vector.extract_strided_slice %171 {offsets = [4, 0, 0], sizes = [1, 8, 8], strides = [1, 1, 1]} : vector<16x8x8xf32> to vector<1x8x8xf32>
    %193 = vector.shape_cast %192 : vector<1x8x8xf32> to vector<8x8xf32>
    %c0_62 = arith.constant 0 : index
    %c0_63 = arith.constant 0 : index
    %c0_64 = arith.constant 0 : index
    %c32 = arith.constant 32 : index
    %194 = vector.load %arg3[%c0_62, %c0_63, %c0_64, %c32] : memref<1x1x8x128xf32, #tpu.memory_space<vmem>>, vector<1x1x8x8xf32>
    %195 = vector.shape_cast %194 : vector<1x1x8x8xf32> to vector<8x8xf32>
    %196 = vector.shape_cast %193 : vector<8x8xf32> to vector<1x1x8x8xf32>
    tpu.vector_store %arg3[%c0_62, %c0_63, %c0_64, %c32], %196 {strides = array<i32>} : memref<1x1x8x128xf32, #tpu.memory_space<vmem>>, vector<1x1x8x8xf32>,
    %197 = vector.extract_strided_slice %171 {offsets = [5, 0, 0], sizes = [1, 8, 8], strides = [1, 1, 1]} : vector<16x8x8xf32> to vector<1x8x8xf32>
    %198 = vector.shape_cast %197 : vector<1x8x8xf32> to vector<8x8xf32>
    %c0_65 = arith.constant 0 : index
    %c0_66 = arith.constant 0 : index
    %c0_67 = arith.constant 0 : index
    %c40 = arith.constant 40 : index
    %199 = vector.load %arg3[%c0_65, %c0_66, %c0_67, %c40] : memref<1x1x8x128xf32, #tpu.memory_space<vmem>>, vector<1x1x8x8xf32>
    %200 = vector.shape_cast %199 : vector<1x1x8x8xf32> to vector<8x8xf32>
    %201 = vector.shape_cast %198 : vector<8x8xf32> to vector<1x1x8x8xf32>
    tpu.vector_store %arg3[%c0_65, %c0_66, %c0_67, %c40], %201 {strides = array<i32>} : memref<1x1x8x128xf32, #tpu.memory_space<vmem>>, vector<1x1x8x8xf32>,
    %202 = vector.extract_strided_slice %171 {offsets = [6, 0, 0], sizes = [1, 8, 8], strides = [1, 1, 1]} : vector<16x8x8xf32> to vector<1x8x8xf32>
    %203 = vector.shape_cast %202 : vector<1x8x8xf32> to vector<8x8xf32>
    %c0_68 = arith.constant 0 : index
    %c0_69 = arith.constant 0 : index
    %c0_70 = arith.constant 0 : index
    %c48 = arith.constant 48 : index
    %204 = vector.load %arg3[%c0_68, %c0_69, %c0_70, %c48] : memref<1x1x8x128xf32, #tpu.memory_space<vmem>>, vector<1x1x8x8xf32>
    %205 = vector.shape_cast %204 : vector<1x1x8x8xf32> to vector<8x8xf32>
    %206 = vector.shape_cast %203 : vector<8x8xf32> to vector<1x1x8x8xf32>
    tpu.vector_store %arg3[%c0_68, %c0_69, %c0_70, %c48], %206 {strides = array<i32>} : memref<1x1x8x128xf32, #tpu.memory_space<vmem>>, vector<1x1x8x8xf32>,
    %207 = vector.extract_strided_slice %171 {offsets = [7, 0, 0], sizes = [1, 8, 8], strides = [1, 1, 1]} : vector<16x8x8xf32> to vector<1x8x8xf32>
    %208 = vector.shape_cast %207 : vector<1x8x8xf32> to vector<8x8xf32>
    %c0_71 = arith.constant 0 : index
    %c0_72 = arith.constant 0 : index
    %c0_73 = arith.constant 0 : index
    %c56 = arith.constant 56 : index
    %209 = vector.load %arg3[%c0_71, %c0_72, %c0_73, %c56] : memref<1x1x8x128xf32, #tpu.memory_space<vmem>>, vector<1x1x8x8xf32>
    %210 = vector.shape_cast %209 : vector<1x1x8x8xf32> to vector<8x8xf32>
    %211 = vector.shape_cast %208 : vector<8x8xf32> to vector<1x1x8x8xf32>
    tpu.vector_store %arg3[%c0_71, %c0_72, %c0_73, %c56], %211 {strides = array<i32>} : memref<1x1x8x128xf32, #tpu.memory_space<vmem>>, vector<1x1x8x8xf32>,
    %212 = vector.extract_strided_slice %171 {offsets = [8, 0, 0], sizes = [1, 8, 8], strides = [1, 1, 1]} : vector<16x8x8xf32> to vector<1x8x8xf32>
    %213 = vector.shape_cast %212 : vector<1x8x8xf32> to vector<8x8xf32>
    %c0_74 = arith.constant 0 : index
    %c0_75 = arith.constant 0 : index
    %c0_76 = arith.constant 0 : index
    %c64 = arith.constant 64 : index
    %214 = vector.load %arg3[%c0_74, %c0_75, %c0_76, %c64] : memref<1x1x8x128xf32, #tpu.memory_space<vmem>>, vector<1x1x8x8xf32>
    %215 = vector.shape_cast %214 : vector<1x1x8x8xf32> to vector<8x8xf32>
    %216 = vector.shape_cast %213 : vector<8x8xf32> to vector<1x1x8x8xf32>
    tpu.vector_store %arg3[%c0_74, %c0_75, %c0_76, %c64], %216 {strides = array<i32>} : memref<1x1x8x128xf32, #tpu.memory_space<vmem>>, vector<1x1x8x8xf32>,
    %217 = vector.extract_strided_slice %171 {offsets = [9, 0, 0], sizes = [1, 8, 8], strides = [1, 1, 1]} : vector<16x8x8xf32> to vector<1x8x8xf32>
    %218 = vector.shape_cast %217 : vector<1x8x8xf32> to vector<8x8xf32>
    %c0_77 = arith.constant 0 : index
    %c0_78 = arith.constant 0 : index
    %c0_79 = arith.constant 0 : index
    %c72 = arith.constant 72 : index
    %219 = vector.load %arg3[%c0_77, %c0_78, %c0_79, %c72] : memref<1x1x8x128xf32, #tpu.memory_space<vmem>>, vector<1x1x8x8xf32>
    %220 = vector.shape_cast %219 : vector<1x1x8x8xf32> to vector<8x8xf32>
    %221 = vector.shape_cast %218 : vector<8x8xf32> to vector<1x1x8x8xf32>
    tpu.vector_store %arg3[%c0_77, %c0_78, %c0_79, %c72], %221 {strides = array<i32>} : memref<1x1x8x128xf32, #tpu.memory_space<vmem>>, vector<1x1x8x8xf32>,
    %222 = vector.extract_strided_slice %171 {offsets = [10, 0, 0], sizes = [1, 8, 8], strides = [1, 1, 1]} : vector<16x8x8xf32> to vector<1x8x8xf32>
    %223 = vector.shape_cast %222 : vector<1x8x8xf32> to vector<8x8xf32>
    %c0_80 = arith.constant 0 : index
    %c0_81 = arith.constant 0 : index
    %c0_82 = arith.constant 0 : index
    %c80 = arith.constant 80 : index
    %224 = vector.load %arg3[%c0_80, %c0_81, %c0_82, %c80] : memref<1x1x8x128xf32, #tpu.memory_space<vmem>>, vector<1x1x8x8xf32>
    %225 = vector.shape_cast %224 : vector<1x1x8x8xf32> to vector<8x8xf32>
    %226 = vector.shape_cast %223 : vector<8x8xf32> to vector<1x1x8x8xf32>
    tpu.vector_store %arg3[%c0_80, %c0_81, %c0_82, %c80], %226 {strides = array<i32>} : memref<1x1x8x128xf32, #tpu.memory_space<vmem>>, vector<1x1x8x8xf32>,
    %227 = vector.extract_strided_slice %171 {offsets = [11, 0, 0], sizes = [1, 8, 8], strides = [1, 1, 1]} : vector<16x8x8xf32> to vector<1x8x8xf32>
    %228 = vector.shape_cast %227 : vector<1x8x8xf32> to vector<8x8xf32>
    %c0_83 = arith.constant 0 : index
    %c0_84 = arith.constant 0 : index
    %c0_85 = arith.constant 0 : index
    %c88 = arith.constant 88 : index
    %229 = vector.load %arg3[%c0_83, %c0_84, %c0_85, %c88] : memref<1x1x8x128xf32, #tpu.memory_space<vmem>>, vector<1x1x8x8xf32>
    %230 = vector.shape_cast %229 : vector<1x1x8x8xf32> to vector<8x8xf32>
    %231 = vector.shape_cast %228 : vector<8x8xf32> to vector<1x1x8x8xf32>
    tpu.vector_store %arg3[%c0_83, %c0_84, %c0_85, %c88], %231 {strides = array<i32>} : memref<1x1x8x128xf32, #tpu.memory_space<vmem>>, vector<1x1x8x8xf32>,
    %232 = vector.extract_strided_slice %171 {offsets = [12, 0, 0], sizes = [1, 8, 8], strides = [1, 1, 1]} : vector<16x8x8xf32> to vector<1x8x8xf32>
    %233 = vector.shape_cast %232 : vector<1x8x8xf32> to vector<8x8xf32>
    %c0_86 = arith.constant 0 : index
    %c0_87 = arith.constant 0 : index
    %c0_88 = arith.constant 0 : index
    %c96 = arith.constant 96 : index
    %234 = vector.load %arg3[%c0_86, %c0_87, %c0_88, %c96] : memref<1x1x8x128xf32, #tpu.memory_space<vmem>>, vector<1x1x8x8xf32>
    %235 = vector.shape_cast %234 : vector<1x1x8x8xf32> to vector<8x8xf32>
    %236 = vector.shape_cast %233 : vector<8x8xf32> to vector<1x1x8x8xf32>
    tpu.vector_store %arg3[%c0_86, %c0_87, %c0_88, %c96], %236 {strides = array<i32>} : memref<1x1x8x128xf32, #tpu.memory_space<vmem>>, vector<1x1x8x8xf32>,
    %237 = vector.extract_strided_slice %171 {offsets = [13, 0, 0], sizes = [1, 8, 8], strides = [1, 1, 1]} : vector<16x8x8xf32> to vector<1x8x8xf32>
    %238 = vector.shape_cast %237 : vector<1x8x8xf32> to vector<8x8xf32>
    %c0_89 = arith.constant 0 : index
    %c0_90 = arith.constant 0 : index
    %c0_91 = arith.constant 0 : index
    %c104 = arith.constant 104 : index
    %239 = vector.load %arg3[%c0_89, %c0_90, %c0_91, %c104] : memref<1x1x8x128xf32, #tpu.memory_space<vmem>>, vector<1x1x8x8xf32>
    %240 = vector.shape_cast %239 : vector<1x1x8x8xf32> to vector<8x8xf32>
    %241 = vector.shape_cast %238 : vector<8x8xf32> to vector<1x1x8x8xf32>
    tpu.vector_store %arg3[%c0_89, %c0_90, %c0_91, %c104], %241 {strides = array<i32>} : memref<1x1x8x128xf32, #tpu.memory_space<vmem>>, vector<1x1x8x8xf32>,
    %242 = vector.extract_strided_slice %171 {offsets = [14, 0, 0], sizes = [1, 8, 8], strides = [1, 1, 1]} : vector<16x8x8xf32> to vector<1x8x8xf32>
    %243 = vector.shape_cast %242 : vector<1x8x8xf32> to vector<8x8xf32>
    %c0_92 = arith.constant 0 : index
    %c0_93 = arith.constant 0 : index
    %c0_94 = arith.constant 0 : index
    %c112 = arith.constant 112 : index
    %244 = vector.load %arg3[%c0_92, %c0_93, %c0_94, %c112] : memref<1x1x8x128xf32, #tpu.memory_space<vmem>>, vector<1x1x8x8xf32>
    %245 = vector.shape_cast %244 : vector<1x1x8x8xf32> to vector<8x8xf32>
    %246 = vector.shape_cast %243 : vector<8x8xf32> to vector<1x1x8x8xf32>
    tpu.vector_store %arg3[%c0_92, %c0_93, %c0_94, %c112], %246 {strides = array<i32>} : memref<1x1x8x128xf32, #tpu.memory_space<vmem>>, vector<1x1x8x8xf32>,
    %247 = vector.extract_strided_slice %171 {offsets = [15, 0, 0], sizes = [1, 8, 8], strides = [1, 1, 1]} : vector<16x8x8xf32> to vector<1x8x8xf32>
    %248 = vector.shape_cast %247 : vector<1x8x8xf32> to vector<8x8xf32>
    %c0_95 = arith.constant 0 : index
    %c0_96 = arith.constant 0 : index
    %c0_97 = arith.constant 0 : index
    %c120 = arith.constant 120 : index
    %249 = vector.load %arg3[%c0_95, %c0_96, %c0_97, %c120] : memref<1x1x8x128xf32, #tpu.memory_space<vmem>>, vector<1x1x8x8xf32>
    %250 = vector.shape_cast %249 : vector<1x1x8x8xf32> to vector<8x8xf32>
    %251 = vector.shape_cast %248 : vector<8x8xf32> to vector<1x1x8x8xf32>
    tpu.vector_store %arg3[%c0_95, %c0_96, %c0_97, %c120], %251 {strides = array<i32>} : memref<1x1x8x128xf32, #tpu.memory_space<vmem>>, vector<1x1x8x8xf32>,
    return
  }
  func.func @transform_0(%arg0: i32, %arg1: i32) -> (i32, i32, i32, i32) {
    %c0_i32 = arith.constant 0 : i32
    %c0_i32_0 = arith.constant 0 : i32
    %c0_i32_1 = arith.constant 0 : i32
    return %arg0, %arg1, %c0_i32, %c0_i32_0 : i32, i32, i32, i32
  }
  func.func @transform_1(%arg0: i32, %arg1: i32) -> (i32, i32, i32, i32) {
    %c0_i32 = arith.constant 0 : i32
    %c0_i32_0 = arith.constant 0 : i32
    %c0_i32_1 = arith.constant 0 : i32
    return %arg0, %arg1, %c0_i32, %c0_i32_0 : i32, i32, i32, i32
  }
}

</mosaic_0001>

<llo_original>
// kernel: tpu_custom_call.1
$region0: #{tpu_custom_call.1}
  #allocation0 [shape = 'u32[]', space=smem, size = 0x4, offset = 0x4, fixed_abs, tag = 'smem constant byte address 0x4 - core index']
  #allocation1 [shape = 'u32[72,128]{1,0:T(1,128)}', space=vmem, size = 0x9000, scoped, tag = 'internal scratch']
  %s0 = inlined_call_operand.hbm [shape: f32[2,16,16,16], index: 0, kind: input, shape index: {}]
  %s1 = inlined_call_operand.hbm [shape: f32[2,1,8,128], index: 1, kind: output, shape index: {}]
  %s2 = sld [smem:[#allocation0]]
  $region41: #{tpu_custom_call.1} parent=0
    _
  %s4 = ssub.s32 1, %s2
  %s5 = scalar_select 0, %s4, %s2
  $region1: #{tpu_custom_call.1} parent=0
    #allocation2 [shape = 'u8[262144]{0}', space=vmem, size = 0x40000, scoped, tag = 'input window, operand 0']
    #allocation3 [shape = 's32[2]{0}', space=sflag, size = 0x8, scoped, tag = 'scoped memory for tpu_custom_call.1']
    #allocation4 [shape = 's32[2]{0}', space=sflag, size = 0x8, scoped, tag = 'scoped memory for tpu_custom_call.1']
    #allocation5 [shape = 'u8[8192]{0}', space=vmem, size = 0x2000, scoped, tag = 'output window, operand 0']
    %6 = vsyncpa [#allocation3], 0
    %s7 = scalar_lea.sflag [#allocation3], 1
    %8 = vsyncpa %s7, 0
    %9 = vsyncpa [#allocation4], 0
    %s10 = scalar_lea.sflag [#allocation4], 1
    %11 = vsyncpa %s10, 0
    loop: start=0, step=1, limit=4
    $region2: #{tpu_custom_call.1} parent=1 // loop_pre_header
      _
    $region3: #{tpu_custom_call.1} parent=1 // loop_header
      %s13 = sphi 0, %s17
      %p14 = scmp.ge.s32.totalorder %s13, 4
      %s20 = sphi 0, %s32
      %s21 = sphi 0, %s28
      %s22 = sphi 0, %s20
      %s23 = sphi 0, %s21
      %s24 = sphi 0, %s22
      %s25 = sphi 0, %s23
      %s37 = sphi 0, %s39
      %s40 = sphi 0, %s37
      %s41 = sphi 0, %s40
      %s57 = sphi 0, %s41
      %s65 = sphi 0, %s67
      %s68 = sphi 0, %s65
      %s69 = sphi 0, %s68
      %s85 = sphi 0, %s69
    $region4: #{tpu_custom_call.1} parent=1 // loop_header_branch
      %16 = sbr.rel (%p14) target = $region8
    $region5: #{tpu_custom_call.1} parent=1 // loop_body
      %s18 = ssub.s32 %s13, 1
      %s19 = ssub.s32 %s13, 2
      %s26 = sadd.s32 1, %s21
      %p27 = scmp.ge.s32.totalorder %s26, 1
      %s28 = scalar_select %p27, 0, %s26
      %s29 = sadd.s32 1, %s20
      %s30 = scalar_select %p27, %s29, %s20
      %p31 = scmp.ge.s32.totalorder %s30, 2
      %s32 = scalar_select %p31, 0, %s30
      %s33 = ssub.s32 %s20, %s32
      %s34 = ssub.s32 %s21, %s28
      %s35 = sor.u32 %s33, %s34
      %p36 = scmp.eq.s32.totalorder %s35, 0
      %s38 = sadd.s32 %s37, 1
      %s39 = scalar_select %p36, %s37, %s38
      %p42 = pneg %p36
      %p43 = scmp.eq.s32.totalorder %s13, 1
      %p44 = por %p42, %p43
      %p45 = scmp.ne.s32.totalorder %s37, %s40
      %p46 = scmp.eq.s32.totalorder %s13, 0
      %p47 = por %p45, %p46
      %p48 = scmp.ne.s32.totalorder %s37, %s40
      %p49 = scmp.eq.s32.totalorder %s18, 1
      %p50 = por %p48, %p49
      %p51 = scmp.ne.s32.totalorder %s40, %s41
      %p52 = scmp.eq.s32.totalorder %s18, 0
      %p53 = por %p51, %p52
      %p54 = scmp.ne.s32.totalorder %s40, %s41
      %p55 = scmp.eq.s32.totalorder %s19, 1
      %p56 = por %p54, %p55
      %p58 = scmp.ne.s32.totalorder %s41, %s57
      %p59 = scmp.eq.s32.totalorder %s19, 0
      %p60 = por %p58, %p59
      %s61 = ssub.s32 %s20, %s32
      %s62 = ssub.s32 %s21, %s28
      %s63 = sor.u32 %s61, %s62
      %p64 = scmp.eq.s32.totalorder %s63, 0
      %s66 = sadd.s32 %s65, 1
      %s67 = scalar_select %p64, %s65, %s66
      %p70 = pneg %p64
      %p71 = scmp.eq.s32.totalorder %s13, 1
      %p72 = por %p70, %p71
      %p73 = scmp.ne.s32.totalorder %s65, %s68
      %p74 = scmp.eq.s32.totalorder %s13, 0
      %p75 = por %p73, %p74
      %p76 = scmp.ne.s32.totalorder %s65, %s68
      %p77 = scmp.eq.s32.totalorder %s18, 1
      %p78 = por %p76, %p77
      %p79 = scmp.ne.s32.totalorder %s68, %s69
      %p80 = scmp.eq.s32.totalorder %s18, 0
      %p81 = por %p79, %p80
      %p82 = scmp.ne.s32.totalorder %s68, %s69
      %p83 = scmp.eq.s32.totalorder %s19, 1
      %p84 = por %p82, %p83
      %p86 = scmp.ne.s32.totalorder %s69, %s85
      %p87 = scmp.eq.s32.totalorder %s19, 0
      %p88 = por %p86, %p87
      %p89 = scmp.le.s32.totalorder 1, %s13
      %p90 = scmp.lt.s32.totalorder %s13, 3
      %p91 = pnand %p89, %p90
      %p92 = pneg %p91
      // Predicated region
      $region9: #{tpu_custom_call.1} parent=5 // pred_check
        _
      $region10: #{tpu_custom_call.1} parent=5 // pred_check_branch
        %94 = sbr.rel (%p91) target = $region12
      $region11: #{tpu_custom_call.1} parent=5 // pred_region
        %s95 = ssub.s32 %s13, 1
      $region12: #{tpu_custom_call.1} parent=5 // pred_fallthru
        _
      %p96 = scmp.lt.s32.totalorder %s13, 2
      // Predicated region
      $region13: #{tpu_custom_call.1} parent=5 // pred_check
        %p97 = pneg %p96
      $region14: #{tpu_custom_call.1} parent=5 // pred_check_branch
        %99 = sbr.rel (%p97) target = $region16
      $region15: #{tpu_custom_call.1} parent=5 // pred_region
        // Predicated region
        $region17: #{tpu_custom_call.1} parent=15 // pred_check
          %p100 = pneg %p47
        $region18: #{tpu_custom_call.1} parent=15 // pred_check_branch
          %102 = sbr.rel (%p100) target = $region20
        $region19: #{tpu_custom_call.1} parent=15 // pred_region
          %s103 = sand.u32 %s37, 1
          %s104 = scalar_lea.sflag [#allocation3], %s103
          %s105 = sand.u32 %s37, 1
          %s106 = smul.addr %s105, 256
          %s107 = scalar_lea.vmem [#allocation2], %s106
          %s108 = smul.u32 16, %s21
          %110 = vsyncadd %s104, 0
          %s111 = smul.addr %s108, 2
          %s112 = smul.addr %s20, 32
          %s113 = sadd.s32 %s111, %s112
          %s114 = smul.addr %s113, 8
          %s115 = scalar_lea.hbm %s0, %s114
          %s116 = sshll.u32 %s115, 4
          %s117 = int_to_ptr.hbm [resolvable:$true] %s116
          %s118 = sshll.u32 %s107, 4
          %s119 = int_to_ptr.vmem [resolvable:$true] %s118
          %124 = dma.hbm_to_vmem [thread:$0]  %s117, 4096, %s119, %s104, 128, 128, 8
        $region20: #{tpu_custom_call.1} parent=15 // pred_fallthru
          _
      $region16: #{tpu_custom_call.1} parent=5 // pred_fallthru
        _
      %p125 = scmp.le.s32.totalorder 1, %s13
      %p126 = scmp.lt.s32.totalorder %s13, 3
      %p127 = pnand %p125, %p126
      %p128 = pneg %p127
      // Predicated region
      $region21: #{tpu_custom_call.1} parent=5 // pred_check
        _
      $region22: #{tpu_custom_call.1} parent=5 // pred_check_branch
        %130 = sbr.rel (%p127) target = $region24
      $region23: #{tpu_custom_call.1} parent=5 // pred_region
        %s131 = ssub.s32 %s13, 1
        %s132 = sand.u32 %s40, 1
        %s133 = scalar_lea.sflag [#allocation3], %s132
        %s134 = sand.u32 %s40, 1
        %s135 = smul.addr %s134, 256
        %s136 = scalar_lea.vmem [#allocation2], %s135
        // Predicated region
        $region25: #{tpu_custom_call.1} parent=23 // pred_check
          %p137 = pneg %p53
        $region26: #{tpu_custom_call.1} parent=23 // pred_check_branch
          %139 = sbr.rel (%p137) target = $region28
        $region27: #{tpu_custom_call.1} parent=23 // pred_region
          %141 = dma.done %s133, 4096
        $region28: #{tpu_custom_call.1} parent=23 // pred_fallthru
          _
        %s142 = sand.u32 %s40, 1
        %s143 = scalar_lea.sflag [#allocation3], %s142
        %s144 = sand.u32 %s40, 1
        %s145 = smul.addr %s144, 256
        %s146 = scalar_lea.vmem [#allocation2], %s145
        %p147 = pneg %p53
        %p148 = pneg %p50
        %p149 = pneg %p81
        %p150 = pneg %p78
        %s151 = sand.u32 %s68, 1
        %s152 = scalar_lea.sflag [#allocation4], %s151
        %s153 = sand.u32 %s68, 1
        %s154 = smul.addr %s153, 8
        %s155 = scalar_lea.vmem [#allocation5], %s154
        %s156 = smul.u32 16, %s23
        %v157 = vld [vmem:[%s136] sm:$0xff]
        %v158 = vld [vmem:[%s136 + $0x8] sm:$0xff]
        %v159 = vld [vmem:[%s136 + $0x10] sm:$0xff]
        %v160 = vld [vmem:[%s136 + $0x18] sm:$0xff]
        %v161 = vld [vmem:[%s136 + $0x20] sm:$0xff]
        %v162 = vld [vmem:[%s136 + $0x28] sm:$0xff]
        %v163 = vld [vmem:[%s136 + $0x30] sm:$0xff]
        %v164 = vld [vmem:[%s136 + $0x38] sm:$0xff]
        %v165 = vld [vmem:[%s136 + $0x40] sm:$0xff]
        %v166 = vld [vmem:[%s136 + $0x48] sm:$0xff]
        %v167 = vld [vmem:[%s136 + $0x50] sm:$0xff]
        %v168 = vld [vmem:[%s136 + $0x58] sm:$0xff]
        %v169 = vld [vmem:[%s136 + $0x60] sm:$0xff]
        %v170 = vld [vmem:[%s136 + $0x68] sm:$0xff]
        %v171 = vld [vmem:[%s136 + $0x70] sm:$0xff]
        %v172 = vld [vmem:[%s136 + $0x78] sm:$0xff]
        %v173 = vld [vmem:[%s136 + $0x80] sm:$0xff]
        %v174 = vld [vmem:[%s136 + $0x88] sm:$0xff]
        %v175 = vld [vmem:[%s136 + $0x90] sm:$0xff]
        %v176 = vld [vmem:[%s136 + $0x98] sm:$0xff]
        %v177 = vld [vmem:[%s136 + $0xa0] sm:$0xff]
        %v178 = vld [vmem:[%s136 + $0xa8] sm:$0xff]
        %v179 = vld [vmem:[%s136 + $0xb0] sm:$0xff]
        %v180 = vld [vmem:[%s136 + $0xb8] sm:$0xff]
        %v181 = vld [vmem:[%s136 + $0xc0] sm:$0xff]
        %v182 = vld [vmem:[%s136 + $0xc8] sm:$0xff]
        %v183 = vld [vmem:[%s136 + $0xd0] sm:$0xff]
        %v184 = vld [vmem:[%s136 + $0xd8] sm:$0xff]
        %v185 = vld [vmem:[%s136 + $0xe0] sm:$0xff]
        %v186 = vld [vmem:[%s136 + $0xe8] sm:$0xff]
        %v187 = vld [vmem:[%s136 + $0xf0] sm:$0xff]
        %v188 = vld [vmem:[%s136 + $0xf8] sm:$0xff]
        %vm189 = vcmask 130048
        %v190 = vsel %vm189, %v157, -inf
        %191 = vmax.xlane.f32.xlu0 %v190
        %v192 = vpop.xlane.xlu0 %191
        %v193 = vsel %vm189, %v158, -inf
        %194 = vmax.xlane.f32.xlu0 %v193
        %v195 = vpop.xlane.xlu0 %194
        %v196 = vsel %vm189, %v159, -inf
        %197 = vmax.xlane.f32.xlu0 %v196
        %v198 = vpop.xlane.xlu0 %197
        %v199 = vsel %vm189, %v160, -inf
        %200 = vmax.xlane.f32.xlu0 %v199
        %v201 = vpop.xlane.xlu0 %200
        %v202 = vsel %vm189, %v161, -inf
        %203 = vmax.xlane.f32.xlu0 %v202
        %v204 = vpop.xlane.xlu0 %203
        %v205 = vsel %vm189, %v162, -inf
        %206 = vmax.xlane.f32.xlu0 %v205
        %v207 = vpop.xlane.xlu0 %206
        %v208 = vsel %vm189, %v163, -inf
        %209 = vmax.xlane.f32.xlu0 %v208
        %v210 = vpop.xlane.xlu0 %209
        %v211 = vsel %vm189, %v164, -inf
        %212 = vmax.xlane.f32.xlu0 %v211
        %v213 = vpop.xlane.xlu0 %212
        %v214 = vsel %vm189, %v165, -inf
        %215 = vmax.xlane.f32.xlu0 %v214
        %v216 = vpop.xlane.xlu0 %215
        %v217 = vsel %vm189, %v166, -inf
        %218 = vmax.xlane.f32.xlu0 %v217
        %v219 = vpop.xlane.xlu0 %218
        %v220 = vsel %vm189, %v167, -inf
        %221 = vmax.xlane.f32.xlu0 %v220
        %v222 = vpop.xlane.xlu0 %221
        %v223 = vsel %vm189, %v168, -inf
        %224 = vmax.xlane.f32.xlu0 %v223
        %v225 = vpop.xlane.xlu0 %224
        %v226 = vsel %vm189, %v169, -inf
        %227 = vmax.xlane.f32.xlu0 %v226
        %v228 = vpop.xlane.xlu0 %227
        %v229 = vsel %vm189, %v170, -inf
        %230 = vmax.xlane.f32.xlu0 %v229
        %v231 = vpop.xlane.xlu0 %230
        %v232 = vsel %vm189, %v171, -inf
        %233 = vmax.xlane.f32.xlu0 %v232
        %v234 = vpop.xlane.xlu0 %233
        %v235 = vsel %vm189, %v172, -inf
        %236 = vmax.xlane.f32.xlu0 %v235
        %v237 = vpop.xlane.xlu0 %236
        %v238 = vsel %vm189, %v173, -inf
        %239 = vmax.xlane.f32.xlu0 %v238
        %v240 = vpop.xlane.xlu0 %239
        %v241 = vsel %vm189, %v174, -inf
        %242 = vmax.xlane.f32.xlu0 %v241
        %v243 = vpop.xlane.xlu0 %242
        %v244 = vsel %vm189, %v175, -inf
        %245 = vmax.xlane.f32.xlu0 %v244
        %v246 = vpop.xlane.xlu0 %245
        %v247 = vsel %vm189, %v176, -inf
        %248 = vmax.xlane.f32.xlu0 %v247
        %v249 = vpop.xlane.xlu0 %248
        %v250 = vsel %vm189, %v177, -inf
        %251 = vmax.xlane.f32.xlu0 %v250
        %v252 = vpop.xlane.xlu0 %251
        %v253 = vsel %vm189, %v178, -inf
        %254 = vmax.xlane.f32.xlu0 %v253
        %v255 = vpop.xlane.xlu0 %254
        %v256 = vsel %vm189, %v179, -inf
        %257 = vmax.xlane.f32.xlu0 %v256
        %v258 = vpop.xlane.xlu0 %257
        %v259 = vsel %vm189, %v180, -inf
        %260 = vmax.xlane.f32.xlu0 %v259
        %v261 = vpop.xlane.xlu0 %260
        %v262 = vsel %vm189, %v181, -inf
        %263 = vmax.xlane.f32.xlu0 %v262
        %v264 = vpop.xlane.xlu0 %263
        %v265 = vsel %vm189, %v182, -inf
        %266 = vmax.xlane.f32.xlu0 %v265
        %v267 = vpop.xlane.xlu0 %266
        %v268 = vsel %vm189, %v183, -inf
        %269 = vmax.xlane.f32.xlu0 %v268
        %v270 = vpop.xlane.xlu0 %269
        %v271 = vsel %vm189, %v184, -inf
        %272 = vmax.xlane.f32.xlu0 %v271
        %v273 = vpop.xlane.xlu0 %272
        %v274 = vsel %vm189, %v185, -inf
        %275 = vmax.xlane.f32.xlu0 %v274
        %v276 = vpop.xlane.xlu0 %275
        %v277 = vsel %vm189, %v186, -inf
        %278 = vmax.xlane.f32.xlu0 %v277
        %v279 = vpop.xlane.xlu0 %278
        %v280 = vsel %vm189, %v187, -inf
        %281 = vmax.xlane.f32.xlu0 %v280
        %v282 = vpop.xlane.xlu0 %281
        %v283 = vsel %vm189, %v188, -inf
        %284 = vmax.xlane.f32.xlu0 %v283
        %v285 = vpop.xlane.xlu0 %284
        %v286 = vsel %vm189, %v157, inf
        %287 = vmin.xlane.f32.xlu0 %v286
        %v288 = vpop.xlane.xlu0 %287
        %v289 = vsel %vm189, %v158, inf
        %290 = vmin.xlane.f32.xlu0 %v289
        %v291 = vpop.xlane.xlu0 %290
        %v292 = vsel %vm189, %v159, inf
        %293 = vmin.xlane.f32.xlu0 %v292
        %v294 = vpop.xlane.xlu0 %293
        %v295 = vsel %vm189, %v160, inf
        %296 = vmin.xlane.f32.xlu0 %v295
        %v297 = vpop.xlane.xlu0 %296
        %v298 = vsel %vm189, %v161, inf
        %299 = vmin.xlane.f32.xlu0 %v298
        %v300 = vpop.xlane.xlu0 %299
        %v301 = vsel %vm189, %v162, inf
        %302 = vmin.xlane.f32.xlu0 %v301
        %v303 = vpop.xlane.xlu0 %302
        %v304 = vsel %vm189, %v163, inf
        %305 = vmin.xlane.f32.xlu0 %v304
        %v306 = vpop.xlane.xlu0 %305
        %v307 = vsel %vm189, %v164, inf
        %308 = vmin.xlane.f32.xlu0 %v307
        %v309 = vpop.xlane.xlu0 %308
        %v310 = vsel %vm189, %v165, inf
        %311 = vmin.xlane.f32.xlu0 %v310
        %v312 = vpop.xlane.xlu0 %311
        %v313 = vsel %vm189, %v166, inf
        %314 = vmin.xlane.f32.xlu0 %v313
        %v315 = vpop.xlane.xlu0 %314
        %v316 = vsel %vm189, %v167, inf
        %317 = vmin.xlane.f32.xlu0 %v316
        %v318 = vpop.xlane.xlu0 %317
        %v319 = vsel %vm189, %v168, inf
        %320 = vmin.xlane.f32.xlu0 %v319
        %v321 = vpop.xlane.xlu0 %320
        %v322 = vsel %vm189, %v169, inf
        %323 = vmin.xlane.f32.xlu0 %v322
        %v324 = vpop.xlane.xlu0 %323
        %v325 = vsel %vm189, %v170, inf
        %326 = vmin.xlane.f32.xlu0 %v325
        %v327 = vpop.xlane.xlu0 %326
        %v328 = vsel %vm189, %v171, inf
        %329 = vmin.xlane.f32.xlu0 %v328
        %v330 = vpop.xlane.xlu0 %329
        %v331 = vsel %vm189, %v172, inf
        %332 = vmin.xlane.f32.xlu0 %v331
        %v333 = vpop.xlane.xlu0 %332
        %v334 = vsel %vm189, %v173, inf
        %335 = vmin.xlane.f32.xlu0 %v334
        %v336 = vpop.xlane.xlu0 %335
        %v337 = vsel %vm189, %v174, inf
        %338 = vmin.xlane.f32.xlu0 %v337
        %v339 = vpop.xlane.xlu0 %338
        %v340 = vsel %vm189, %v175, inf
        %341 = vmin.xlane.f32.xlu0 %v340
        %v342 = vpop.xlane.xlu0 %341
        %v343 = vsel %vm189, %v176, inf
        %344 = vmin.xlane.f32.xlu0 %v343
        %v345 = vpop.xlane.xlu0 %344
        %v346 = vsel %vm189, %v177, inf
        %347 = vmin.xlane.f32.xlu0 %v346
        %v348 = vpop.xlane.xlu0 %347
        %v349 = vsel %vm189, %v178, inf
        %350 = vmin.xlane.f32.xlu0 %v349
        %v351 = vpop.xlane.xlu0 %350
        %v352 = vsel %vm189, %v179, inf
        %353 = vmin.xlane.f32.xlu0 %v352
        %v354 = vpop.xlane.xlu0 %353
        %v355 = vsel %vm189, %v180, inf
        %356 = vmin.xlane.f32.xlu0 %v355
        %v357 = vpop.xlane.xlu0 %356
        %v358 = vsel %vm189, %v181, inf
        %359 = vmin.xlane.f32.xlu0 %v358
        %v360 = vpop.xlane.xlu0 %359
        %v361 = vsel %vm189, %v182, inf
        %362 = vmin.xlane.f32.xlu0 %v361
        %v363 = vpop.xlane.xlu0 %362
        %v364 = vsel %vm189, %v183, inf
        %365 = vmin.xlane.f32.xlu0 %v364
        %v366 = vpop.xlane.xlu0 %365
        %v367 = vsel %vm189, %v184, inf
        %368 = vmin.xlane.f32.xlu0 %v367
        %v369 = vpop.xlane.xlu0 %368
        %v370 = vsel %vm189, %v185, inf
        %371 = vmin.xlane.f32.xlu0 %v370
        %v372 = vpop.xlane.xlu0 %371
        %v373 = vsel %vm189, %v186, inf
        %374 = vmin.xlane.f32.xlu0 %v373
        %v375 = vpop.xlane.xlu0 %374
        %v376 = vsel %vm189, %v187, inf
        %377 = vmin.xlane.f32.xlu0 %v376
        %v378 = vpop.xlane.xlu0 %377
        %v379 = vsel %vm189, %v188, inf
        %380 = vmin.xlane.f32.xlu0 %v379
        %v381 = vpop.xlane.xlu0 %380
        %v382 = vmax.f32 %v190, %v193
        %v383 = vrot.slane %v382, 4
        %v384 = vmax.f32 %v382, %v383
        %v385 = vrot.slane %v384, 2
        %v386 = vmax.f32 %v384, %v385
        %v387 = vrot.slane %v386, 1
        %v388 = vmax.f32 %v386, %v387
        %v389 = vmax.f32 %v196, %v199
        %v390 = vrot.slane %v389, 4
        %v391 = vmax.f32 %v389, %v390
        %v392 = vrot.slane %v391, 2
        %v393 = vmax.f32 %v391, %v392
        %v394 = vrot.slane %v393, 1
        %v395 = vmax.f32 %v393, %v394
        %v396 = vmax.f32 %v202, %v205
        %v397 = vrot.slane %v396, 4
        %v398 = vmax.f32 %v396, %v397
        %v399 = vrot.slane %v398, 2
        %v400 = vmax.f32 %v398, %v399
        %v401 = vrot.slane %v400, 1
        %v402 = vmax.f32 %v400, %v401
        %v403 = vmax.f32 %v208, %v211
        %v404 = vrot.slane %v403, 4
        %v405 = vmax.f32 %v403, %v404
        %v406 = vrot.slane %v405, 2
        %v407 = vmax.f32 %v405, %v406
        %v408 = vrot.slane %v407, 1
        %v409 = vmax.f32 %v407, %v408
        %v410 = vmax.f32 %v214, %v217
        %v411 = vrot.slane %v410, 4
        %v412 = vmax.f32 %v410, %v411
        %v413 = vrot.slane %v412, 2
        %v414 = vmax.f32 %v412, %v413
        %v415 = vrot.slane %v414, 1
        %v416 = vmax.f32 %v414, %v415
        %v417 = vmax.f32 %v220, %v223
        %v418 = vrot.slane %v417, 4
        %v419 = vmax.f32 %v417, %v418
        %v420 = vrot.slane %v419, 2
        %v421 = vmax.f32 %v419, %v420
        %v422 = vrot.slane %v421, 1
        %v423 = vmax.f32 %v421, %v422
        %v424 = vmax.f32 %v226, %v229
        %v425 = vrot.slane %v424, 4
        %v426 = vmax.f32 %v424, %v425
        %v427 = vrot.slane %v426, 2
        %v428 = vmax.f32 %v426, %v427
        %v429 = vrot.slane %v428, 1
        %v430 = vmax.f32 %v428, %v429
        %v431 = vmax.f32 %v232, %v235
        %v432 = vrot.slane %v431, 4
        %v433 = vmax.f32 %v431, %v432
        %v434 = vrot.slane %v433, 2
        %v435 = vmax.f32 %v433, %v434
        %v436 = vrot.slane %v435, 1
        %v437 = vmax.f32 %v435, %v436
        %v438 = vmax.f32 %v238, %v241
        %v439 = vrot.slane %v438, 4
        %v440 = vmax.f32 %v438, %v439
        %v441 = vrot.slane %v440, 2
        %v442 = vmax.f32 %v440, %v441
        %v443 = vrot.slane %v442, 1
        %v444 = vmax.f32 %v442, %v443
        %v445 = vmax.f32 %v244, %v247
        %v446 = vrot.slane %v445, 4
        %v447 = vmax.f32 %v445, %v446
        %v448 = vrot.slane %v447, 2
        %v449 = vmax.f32 %v447, %v448
        %v450 = vrot.slane %v449, 1
        %v451 = vmax.f32 %v449, %v450
        %v452 = vmax.f32 %v250, %v253
        %v453 = vrot.slane %v452, 4
        %v454 = vmax.f32 %v452, %v453
        %v455 = vrot.slane %v454, 2
        %v456 = vmax.f32 %v454, %v455
        %v457 = vrot.slane %v456, 1
        %v458 = vmax.f32 %v456, %v457
        %v459 = vmax.f32 %v256, %v259
        %v460 = vrot.slane %v459, 4
        %v461 = vmax.f32 %v459, %v460
        %v462 = vrot.slane %v461, 2
        %v463 = vmax.f32 %v461, %v462
        %v464 = vrot.slane %v463, 1
        %v465 = vmax.f32 %v463, %v464
        %v466 = vmax.f32 %v262, %v265
        %v467 = vrot.slane %v466, 4
        %v468 = vmax.f32 %v466, %v467
        %v469 = vrot.slane %v468, 2
        %v470 = vmax.f32 %v468, %v469
        %v471 = vrot.slane %v470, 1
        %v472 = vmax.f32 %v470, %v471
        %v473 = vmax.f32 %v268, %v271
        %v474 = vrot.slane %v473, 4
        %v475 = vmax.f32 %v473, %v474
        %v476 = vrot.slane %v475, 2
        %v477 = vmax.f32 %v475, %v476
        %v478 = vrot.slane %v477, 1
        %v479 = vmax.f32 %v477, %v478
        %v480 = vmax.f32 %v274, %v277
        %v481 = vrot.slane %v480, 4
        %v482 = vmax.f32 %v480, %v481
        %v483 = vrot.slane %v482, 2
        %v484 = vmax.f32 %v482, %v483
        %v485 = vrot.slane %v484, 1
        %v486 = vmax.f32 %v484, %v485
        %v487 = vmax.f32 %v280, %v283
        %v488 = vrot.slane %v487, 4
        %v489 = vmax.f32 %v487, %v488
        %v490 = vrot.slane %v489, 2
        %v491 = vmax.f32 %v489, %v490
        %v492 = vrot.slane %v491, 1
        %v493 = vmax.f32 %v491, %v492
        %v494 = vmin.f32 %v286, %v289
        %v495 = vrot.slane %v494, 4
        %v496 = vmin.f32 %v494, %v495
        %v497 = vrot.slane %v496, 2
        %v498 = vmin.f32 %v496, %v497
        %v499 = vrot.slane %v498, 1
        %v500 = vmin.f32 %v498, %v499
        %v501 = vmin.f32 %v292, %v295
        %v502 = vrot.slane %v501, 4
        %v503 = vmin.f32 %v501, %v502
        %v504 = vrot.slane %v503, 2
        %v505 = vmin.f32 %v503, %v504
        %v506 = vrot.slane %v505, 1
        %v507 = vmin.f32 %v505, %v506
        %v508 = vmin.f32 %v298, %v301
        %v509 = vrot.slane %v508, 4
        %v510 = vmin.f32 %v508, %v509
        %v511 = vrot.slane %v510, 2
        %v512 = vmin.f32 %v510, %v511
        %v513 = vrot.slane %v512, 1
        %v514 = vmin.f32 %v512, %v513
        %v515 = vmin.f32 %v304, %v307
        %v516 = vrot.slane %v515, 4
        %v517 = vmin.f32 %v515, %v516
        %v518 = vrot.slane %v517, 2
        %v519 = vmin.f32 %v517, %v518
        %v520 = vrot.slane %v519, 1
        %v521 = vmin.f32 %v519, %v520
        %v522 = vmin.f32 %v310, %v313
        %v523 = vrot.slane %v522, 4
        %v524 = vmin.f32 %v522, %v523
        %v525 = vrot.slane %v524, 2
        %v526 = vmin.f32 %v524, %v525
        %v527 = vrot.slane %v526, 1
        %v528 = vmin.f32 %v526, %v527
        %v529 = vmin.f32 %v316, %v319
        %v530 = vrot.slane %v529, 4
        %v531 = vmin.f32 %v529, %v530
        %v532 = vrot.slane %v531, 2
        %v533 = vmin.f32 %v531, %v532
        %v534 = vrot.slane %v533, 1
        %v535 = vmin.f32 %v533, %v534
        %v536 = vmin.f32 %v322, %v325
        %v537 = vrot.slane %v536, 4
        %v538 = vmin.f32 %v536, %v537
        %v539 = vrot.slane %v538, 2
        %v540 = vmin.f32 %v538, %v539
        %v541 = vrot.slane %v540, 1
        %v542 = vmin.f32 %v540, %v541
        %v543 = vmin.f32 %v328, %v331
        %v544 = vrot.slane %v543, 4
        %v545 = vmin.f32 %v543, %v544
        %v546 = vrot.slane %v545, 2
        %v547 = vmin.f32 %v545, %v546
        %v548 = vrot.slane %v547, 1
        %v549 = vmin.f32 %v547, %v548
        %v550 = vmin.f32 %v334, %v337
        %v551 = vrot.slane %v550, 4
        %v552 = vmin.f32 %v550, %v551
        %v553 = vrot.slane %v552, 2
        %v554 = vmin.f32 %v552, %v553
        %v555 = vrot.slane %v554, 1
        %v556 = vmin.f32 %v554, %v555
        %v557 = vmin.f32 %v340, %v343
        %v558 = vrot.slane %v557, 4
        %v559 = vmin.f32 %v557, %v558
        %v560 = vrot.slane %v559, 2
        %v561 = vmin.f32 %v559, %v560
        %v562 = vrot.slane %v561, 1
        %v563 = vmin.f32 %v561, %v562
        %v564 = vmin.f32 %v346, %v349
        %v565 = vrot.slane %v564, 4
        %v566 = vmin.f32 %v564, %v565
        %v567 = vrot.slane %v566, 2
        %v568 = vmin.f32 %v566, %v567
        %v569 = vrot.slane %v568, 1
        %v570 = vmin.f32 %v568, %v569
        %v571 = vmin.f32 %v352, %v355
        %v572 = vrot.slane %v571, 4
        %v573 = vmin.f32 %v571, %v572
        %v574 = vrot.slane %v573, 2
        %v575 = vmin.f32 %v573, %v574
        %v576 = vrot.slane %v575, 1
        %v577 = vmin.f32 %v575, %v576
        %v578 = vmin.f32 %v358, %v361
        %v579 = vrot.slane %v578, 4
        %v580 = vmin.f32 %v578, %v579
        %v581 = vrot.slane %v580, 2
        %v582 = vmin.f32 %v580, %v581
        %v583 = vrot.slane %v582, 1
        %v584 = vmin.f32 %v582, %v583
        %v585 = vmin.f32 %v364, %v367
        %v586 = vrot.slane %v585, 4
        %v587 = vmin.f32 %v585, %v586
        %v588 = vrot.slane %v587, 2
        %v589 = vmin.f32 %v587, %v588
        %v590 = vrot.slane %v589, 1
        %v591 = vmin.f32 %v589, %v590
        %v592 = vmin.f32 %v370, %v373
        %v593 = vrot.slane %v592, 4
        %v594 = vmin.f32 %v592, %v593
        %v595 = vrot.slane %v594, 2
        %v596 = vmin.f32 %v594, %v595
        %v597 = vrot.slane %v596, 1
        %v598 = vmin.f32 %v596, %v597
        %v599 = vmin.f32 %v376, %v379
        %v600 = vrot.slane %v599, 4
        %v601 = vmin.f32 %v599, %v600
        %v602 = vrot.slane %v601, 2
        %v603 = vmin.f32 %v601, %v602
        %v604 = vrot.slane %v603, 1
        %v605 = vmin.f32 %v603, %v604
        %v606 = vmax.f32 %v192, %v195
        %v607 = vrot.slane %v606, 4
        %v608 = vmax.f32 %v606, %v607
        %v609 = vrot.slane %v608, 2
        %v610 = vmax.f32 %v608, %v609
        %v611 = vrot.slane %v610, 1
        %v612 = vmax.f32 %v610, %v611
        %v613 = vmax.f32 %v198, %v201
        %v614 = vrot.slane %v613, 4
        %v615 = vmax.f32 %v613, %v614
        %v616 = vrot.slane %v615, 2
        %v617 = vmax.f32 %v615, %v616
        %v618 = vrot.slane %v617, 1
        %v619 = vmax.f32 %v617, %v618
        %v620 = vmax.f32 %v204, %v207
        %v621 = vrot.slane %v620, 4
        %v622 = vmax.f32 %v620, %v621
        %v623 = vrot.slane %v622, 2
        %v624 = vmax.f32 %v622, %v623
        %v625 = vrot.slane %v624, 1
        %v626 = vmax.f32 %v624, %v625
        %v627 = vmax.f32 %v210, %v213
        %v628 = vrot.slane %v627, 4
        %v629 = vmax.f32 %v627, %v628
        %v630 = vrot.slane %v629, 2
        %v631 = vmax.f32 %v629, %v630
        %v632 = vrot.slane %v631, 1
        %v633 = vmax.f32 %v631, %v632
        %v634 = vmax.f32 %v216, %v219
        %v635 = vrot.slane %v634, 4
        %v636 = vmax.f32 %v634, %v635
        %v637 = vrot.slane %v636, 2
        %v638 = vmax.f32 %v636, %v637
        %v639 = vrot.slane %v638, 1
        %v640 = vmax.f32 %v638, %v639
        %v641 = vmax.f32 %v222, %v225
        %v642 = vrot.slane %v641, 4
        %v643 = vmax.f32 %v641, %v642
        %v644 = vrot.slane %v643, 2
        %v645 = vmax.f32 %v643, %v644
        %v646 = vrot.slane %v645, 1
        %v647 = vmax.f32 %v645, %v646
        %v648 = vmax.f32 %v228, %v231
        %v649 = vrot.slane %v648, 4
        %v650 = vmax.f32 %v648, %v649
        %v651 = vrot.slane %v650, 2
        %v652 = vmax.f32 %v650, %v651
        %v653 = vrot.slane %v652, 1
        %v654 = vmax.f32 %v652, %v653
        %v655 = vmax.f32 %v234, %v237
        %v656 = vrot.slane %v655, 4
        %v657 = vmax.f32 %v655, %v656
        %v658 = vrot.slane %v657, 2
        %v659 = vmax.f32 %v657, %v658
        %v660 = vrot.slane %v659, 1
        %v661 = vmax.f32 %v659, %v660
        %v662 = vmax.f32 %v240, %v243
        %v663 = vrot.slane %v662, 4
        %v664 = vmax.f32 %v662, %v663
        %v665 = vrot.slane %v664, 2
        %v666 = vmax.f32 %v664, %v665
        %v667 = vrot.slane %v666, 1
        %v668 = vmax.f32 %v666, %v667
        %v669 = vmax.f32 %v246, %v249
        %v670 = vrot.slane %v669, 4
        %v671 = vmax.f32 %v669, %v670
        %v672 = vrot.slane %v671, 2
        %v673 = vmax.f32 %v671, %v672
        %v674 = vrot.slane %v673, 1
        %v675 = vmax.f32 %v673, %v674
        %v676 = vmax.f32 %v252, %v255
        %v677 = vrot.slane %v676, 4
        %v678 = vmax.f32 %v676, %v677
        %v679 = vrot.slane %v678, 2
        %v680 = vmax.f32 %v678, %v679
        %v681 = vrot.slane %v680, 1
        %v682 = vmax.f32 %v680, %v681
        %v683 = vmax.f32 %v258, %v261
        %v684 = vrot.slane %v683, 4
        %v685 = vmax.f32 %v683, %v684
        %v686 = vrot.slane %v685, 2
        %v687 = vmax.f32 %v685, %v686
        %v688 = vrot.slane %v687, 1
        %v689 = vmax.f32 %v687, %v688
        %v690 = vmax.f32 %v264, %v267
        %v691 = vrot.slane %v690, 4
        %v692 = vmax.f32 %v690, %v691
        %v693 = vrot.slane %v692, 2
        %v694 = vmax.f32 %v692, %v693
        %v695 = vrot.slane %v694, 1
        %v696 = vmax.f32 %v694, %v695
        %v697 = vmax.f32 %v270, %v273
        %v698 = vrot.slane %v697, 4
        %v699 = vmax.f32 %v697, %v698
        %v700 = vrot.slane %v699, 2
        %v701 = vmax.f32 %v699, %v700
        %v702 = vrot.slane %v701, 1
        %v703 = vmax.f32 %v701, %v702
        %v704 = vmax.f32 %v276, %v279
        %v705 = vrot.slane %v704, 4
        %v706 = vmax.f32 %v704, %v705
        %v707 = vrot.slane %v706, 2
        %v708 = vmax.f32 %v706, %v707
        %v709 = vrot.slane %v708, 1
        %v710 = vmax.f32 %v708, %v709
        %v711 = vmax.f32 %v282, %v285
        %v712 = vrot.slane %v711, 4
        %v713 = vmax.f32 %v711, %v712
        %v714 = vrot.slane %v713, 2
        %v715 = vmax.f32 %v713, %v714
        %v716 = vrot.slane %v715, 1
        %v717 = vmax.f32 %v715, %v716
        %v718 = vmul.f32 %v612, 0.1
        %v719 = vmul.f32 %v619, 0.1
        %v720 = vmul.f32 %v626, 0.1
        %v721 = vmul.f32 %v633, 0.1
        %v722 = vmul.f32 %v640, 0.1
        %v723 = vmul.f32 %v647, 0.1
        %v724 = vmul.f32 %v654, 0.1
        %v725 = vmul.f32 %v661, 0.1
        %v726 = vmul.f32 %v668, 0.1
        %v727 = vmul.f32 %v675, 0.1
        %v728 = vmul.f32 %v682, 0.1
        %v729 = vmul.f32 %v689, 0.1
        %v730 = vmul.f32 %v696, 0.1
        %v731 = vmul.f32 %v703, 0.1
        %v732 = vmul.f32 %v710, 0.1
        %v733 = vmul.f32 %v717, 0.1
        %v734 = vlaneseq
        %v735 = vshrl.u32 %v734, 7
        %v736 = vadd.s32 %v735, 8
        %v737 = vcvt.s32.f32 %v735
        %v738 = vcvt.s32.f32 %v736
        %vm739 = vcmp.eq.s32.totalorder %v735, 0
        %vm740 = vcmp.eq.s32.totalorder %v736, 0
        %vm741 = vcmp.ge.f32.partialorder %v288, %v718
        %vm742 = vcmp.ge.f32.partialorder %v291, %v718
        %vm743 = vcmp.ge.f32.partialorder %v294, %v719
        %vm744 = vcmp.ge.f32.partialorder %v297, %v719
        %vm745 = vcmp.ge.f32.partialorder %v300, %v720
        %vm746 = vcmp.ge.f32.partialorder %v303, %v720
        %vm747 = vcmp.ge.f32.partialorder %v306, %v721
        %vm748 = vcmp.ge.f32.partialorder %v309, %v721
        %vm749 = vcmp.ge.f32.partialorder %v312, %v722
        %vm750 = vcmp.ge.f32.partialorder %v315, %v722
        %vm751 = vcmp.ge.f32.partialorder %v318, %v723
        %vm752 = vcmp.ge.f32.partialorder %v321, %v723
        %vm753 = vcmp.ge.f32.partialorder %v324, %v724
        %vm754 = vcmp.ge.f32.partialorder %v327, %v724
        %vm755 = vcmp.ge.f32.partialorder %v330, %v725
        %vm756 = vcmp.ge.f32.partialorder %v333, %v725
        %vm757 = vcmp.ge.f32.partialorder %v336, %v726
        %vm758 = vcmp.ge.f32.partialorder %v339, %v726
        %vm759 = vcmp.ge.f32.partialorder %v342, %v727
        %vm760 = vcmp.ge.f32.partialorder %v345, %v727
        %vm761 = vcmp.ge.f32.partialorder %v348, %v728
        %vm762 = vcmp.ge.f32.partialorder %v351, %v728
        %vm763 = vcmp.ge.f32.partialorder %v354, %v729
        %vm764 = vcmp.ge.f32.partialorder %v357, %v729
        %vm765 = vcmp.ge.f32.partialorder %v360, %v730
        %vm766 = vcmp.ge.f32.partialorder %v363, %v730
        %vm767 = vcmp.ge.f32.partialorder %v366, %v731
        %vm768 = vcmp.ge.f32.partialorder %v369, %v731
        %vm769 = vcmp.ge.f32.partialorder %v372, %v732
        %vm770 = vcmp.ge.f32.partialorder %v375, %v732
        %vm771 = vcmp.ge.f32.partialorder %v378, %v733
        %vm772 = vcmp.ge.f32.partialorder %v381, %v733
        %v773 = vsel %vm741, %v737, 0.0
        %v774 = vsel %vm742, %v738, 0.0
        %v775 = vsel %vm743, %v737, 0.0
        %v776 = vsel %vm744, %v738, 0.0
        %v777 = vsel %vm745, %v737, 0.0
        %v778 = vsel %vm746, %v738, 0.0
        %v779 = vsel %vm747, %v737, 0.0
        %v780 = vsel %vm748, %v738, 0.0
        %v781 = vsel %vm749, %v737, 0.0
        %v782 = vsel %vm750, %v738, 0.0
        %v783 = vsel %vm751, %v737, 0.0
        %v784 = vsel %vm752, %v738, 0.0
        %v785 = vsel %vm753, %v737, 0.0
        %v786 = vsel %vm754, %v738, 0.0
        %v787 = vsel %vm755, %v737, 0.0
        %v788 = vsel %vm756, %v738, 0.0
        %v789 = vsel %vm757, %v737, 0.0
        %v790 = vsel %vm758, %v738, 0.0
        %v791 = vsel %vm759, %v737, 0.0
        %v792 = vsel %vm760, %v738, 0.0
        %v793 = vsel %vm761, %v737, 0.0
        %v794 = vsel %vm762, %v738, 0.0
        %v795 = vsel %vm763, %v737, 0.0
        %v796 = vsel %vm764, %v738, 0.0
        %v797 = vsel %vm765, %v737, 0.0
        %v798 = vsel %vm766, %v738, 0.0
        %v799 = vsel %vm767, %v737, 0.0
        %v800 = vsel %vm768, %v738, 0.0
        %v801 = vsel %vm769, %v737, 0.0
        %v802 = vsel %vm770, %v738, 0.0
        %v803 = vsel %vm771, %v737, 0.0
        %v804 = vsel %vm772, %v738, 0.0
        %v805 = vsel %vm739, 1, 0
        %v806 = vsel %vm740, 1, 0
        %vm807 = vcmp.eq.s32.totalorder %v805, 1
        %vm808 = vcmp.eq.s32.totalorder %v806, 1
        %v809 = vsel %vm807, 100000.0, %v773
        %v810 = vsel %vm808, 100000.0, %v774
        %v811 = vsel %vm807, 100000.0, %v775
        %v812 = vsel %vm808, 100000.0, %v776
        %v813 = vsel %vm807, 100000.0, %v777
        %v814 = vsel %vm808, 100000.0, %v778
        %v815 = vsel %vm807, 100000.0, %v779
        %v816 = vsel %vm808, 100000.0, %v780
        %v817 = vsel %vm807, 100000.0, %v781
        %v818 = vsel %vm808, 100000.0, %v782
        %v819 = vsel %vm807, 100000.0, %v783
        %v820 = vsel %vm808, 100000.0, %v784
        %v821 = vsel %vm807, 100000.0, %v785
        %v822 = vsel %vm808, 100000.0, %v786
        %v823 = vsel %vm807, 100000.0, %v787
        %v824 = vsel %vm808, 100000.0, %v788
        %v825 = vsel %vm807, 100000.0, %v789
        %v826 = vsel %vm808, 100000.0, %v790
        %v827 = vsel %vm807, 100000.0, %v791
        %v828 = vsel %vm808, 100000.0, %v792
        %v829 = vsel %vm807, 100000.0, %v793
        %v830 = vsel %vm808, 100000.0, %v794
        %v831 = vsel %vm807, 100000.0, %v795
        %v832 = vsel %vm808, 100000.0, %v796
        %v833 = vsel %vm807, 100000.0, %v797
        %v834 = vsel %vm808, 100000.0, %v798
        %v835 = vsel %vm807, 100000.0, %v799
        %v836 = vsel %vm808, 100000.0, %v800
        %v837 = vsel %vm807, 100000.0, %v801
        %v838 = vsel %vm808, 100000.0, %v802
        %v839 = vsel %vm807, 100000.0, %v803
        %v840 = vsel %vm808, 100000.0, %v804
        %vm841 = vcmp.ge.f32.partialorder %v192, %v718
        %vm842 = vcmp.ge.f32.partialorder %v195, %v718
        %vm843 = vcmp.ge.f32.partialorder %v198, %v719
        %vm844 = vcmp.ge.f32.partialorder %v201, %v719
        %vm845 = vcmp.ge.f32.partialorder %v204, %v720
        %vm846 = vcmp.ge.f32.partialorder %v207, %v720
        %vm847 = vcmp.ge.f32.partialorder %v210, %v721
        %vm848 = vcmp.ge.f32.partialorder %v213, %v721
        %vm849 = vcmp.ge.f32.partialorder %v216, %v722
        %vm850 = vcmp.ge.f32.partialorder %v219, %v722
        %vm851 = vcmp.ge.f32.partialorder %v222, %v723
        %vm852 = vcmp.ge.f32.partialorder %v225, %v723
        %vm853 = vcmp.ge.f32.partialorder %v228, %v724
        %vm854 = vcmp.ge.f32.partialorder %v231, %v724
        %vm855 = vcmp.ge.f32.partialorder %v234, %v725
        %vm856 = vcmp.ge.f32.partialorder %v237, %v725
        %vm857 = vcmp.ge.f32.partialorder %v240, %v726
        %vm858 = vcmp.ge.f32.partialorder %v243, %v726
        %vm859 = vcmp.ge.f32.partialorder %v246, %v727
        %vm860 = vcmp.ge.f32.partialorder %v249, %v727
        %vm861 = vcmp.ge.f32.partialorder %v252, %v728
        %vm862 = vcmp.ge.f32.partialorder %v255, %v728
        %vm863 = vcmp.ge.f32.partialorder %v258, %v729
        %vm864 = vcmp.ge.f32.partialorder %v261, %v729
        %vm865 = vcmp.ge.f32.partialorder %v264, %v730
        %vm866 = vcmp.ge.f32.partialorder %v267, %v730
        %vm867 = vcmp.ge.f32.partialorder %v270, %v731
        %vm868 = vcmp.ge.f32.partialorder %v273, %v731
        %vm869 = vcmp.ge.f32.partialorder %v276, %v732
        %vm870 = vcmp.ge.f32.partialorder %v279, %v732
        %vm871 = vcmp.ge.f32.partialorder %v282, %v733
        %vm872 = vcmp.ge.f32.partialorder %v285, %v733
        %v873 = vsel %vm841, %v737, 0.0
        %v874 = vsel %vm842, %v738, 0.0
        %v875 = vsel %vm843, %v737, 0.0
        %v876 = vsel %vm844, %v738, 0.0
        %v877 = vsel %vm845, %v737, 0.0
        %v878 = vsel %vm846, %v738, 0.0
        %v879 = vsel %vm847, %v737, 0.0
        %v880 = vsel %vm848, %v738, 0.0
        %v881 = vsel %vm849, %v737, 0.0
        %v882 = vsel %vm850, %v738, 0.0
        %v883 = vsel %vm851, %v737, 0.0
        %v884 = vsel %vm852, %v738, 0.0
        %v885 = vsel %vm853, %v737, 0.0
        %v886 = vsel %vm854, %v738, 0.0
        %v887 = vsel %vm855, %v737, 0.0
        %v888 = vsel %vm856, %v738, 0.0
        %v889 = vsel %vm857, %v737, 0.0
        %v890 = vsel %vm858, %v738, 0.0
        %v891 = vsel %vm859, %v737, 0.0
        %v892 = vsel %vm860, %v738, 0.0
        %v893 = vsel %vm861, %v737, 0.0
        %v894 = vsel %vm862, %v738, 0.0
        %v895 = vsel %vm863, %v737, 0.0
        %v896 = vsel %vm864, %v738, 0.0
        %v897 = vsel %vm865, %v737, 0.0
        %v898 = vsel %vm866, %v738, 0.0
        %v899 = vsel %vm867, %v737, 0.0
        %v900 = vsel %vm868, %v738, 0.0
        %v901 = vsel %vm869, %v737, 0.0
        %v902 = vsel %vm870, %v738, 0.0
        %v903 = vsel %vm871, %v737, 0.0
        %v904 = vsel %vm872, %v738, 0.0
        %v905 = vsel %vm807, -100000.0, %v873
        %v906 = vsel %vm808, -100000.0, %v874
        %v907 = vsel %vm807, -100000.0, %v875
        %v908 = vsel %vm808, -100000.0, %v876
        %v909 = vsel %vm807, -100000.0, %v877
        %v910 = vsel %vm808, -100000.0, %v878
        %v911 = vsel %vm807, -100000.0, %v879
        %v912 = vsel %vm808, -100000.0, %v880
        %v913 = vsel %vm807, -100000.0, %v881
        %v914 = vsel %vm808, -100000.0, %v882
        %v915 = vsel %vm807, -100000.0, %v883
        %v916 = vsel %vm808, -100000.0, %v884
        %v917 = vsel %vm807, -100000.0, %v885
        %v918 = vsel %vm808, -100000.0, %v886
        %v919 = vsel %vm807, -100000.0, %v887
        %v920 = vsel %vm808, -100000.0, %v888
        %v921 = vsel %vm807, -100000.0, %v889
        %v922 = vsel %vm808, -100000.0, %v890
        %v923 = vsel %vm807, -100000.0, %v891
        %v924 = vsel %vm808, -100000.0, %v892
        %v925 = vsel %vm807, -100000.0, %v893
        %v926 = vsel %vm808, -100000.0, %v894
        %v927 = vsel %vm807, -100000.0, %v895
        %v928 = vsel %vm808, -100000.0, %v896
        %v929 = vsel %vm807, -100000.0, %v897
        %v930 = vsel %vm808, -100000.0, %v898
        %v931 = vsel %vm807, -100000.0, %v899
        %v932 = vsel %vm808, -100000.0, %v900
        %v933 = vsel %vm807, -100000.0, %v901
        %v934 = vsel %vm808, -100000.0, %v902
        %v935 = vsel %vm807, -100000.0, %v903
        %v936 = vsel %vm808, -100000.0, %v904
        %v937 = vmin.f32 %v809, %v810
        %v938 = vrot.slane %v937, 4
        %v939 = vmin.f32 %v937, %v938
        %v940 = vrot.slane %v939, 2
        %v941 = vmin.f32 %v939, %v940
        %v942 = vrot.slane %v941, 1
        %v943 = vmin.f32 %v941, %v942
        %v944 = vmin.f32 %v811, %v812
        %v945 = vrot.slane %v944, 4
        %v946 = vmin.f32 %v944, %v945
        %v947 = vrot.slane %v946, 2
        %v948 = vmin.f32 %v946, %v947
        %v949 = vrot.slane %v948, 1
        %v950 = vmin.f32 %v948, %v949
        %v951 = vmin.f32 %v813, %v814
        %v952 = vrot.slane %v951, 4
        %v953 = vmin.f32 %v951, %v952
        %v954 = vrot.slane %v953, 2
        %v955 = vmin.f32 %v953, %v954
        %v956 = vrot.slane %v955, 1
        %v957 = vmin.f32 %v955, %v956
        %v958 = vmin.f32 %v815, %v816
        %v959 = vrot.slane %v958, 4
        %v960 = vmin.f32 %v958, %v959
        %v961 = vrot.slane %v960, 2
        %v962 = vmin.f32 %v960, %v961
        %v963 = vrot.slane %v962, 1
        %v964 = vmin.f32 %v962, %v963
        %v965 = vmin.f32 %v817, %v818
        %v966 = vrot.slane %v965, 4
        %v967 = vmin.f32 %v965, %v966
        %v968 = vrot.slane %v967, 2
        %v969 = vmin.f32 %v967, %v968
        %v970 = vrot.slane %v969, 1
        %v971 = vmin.f32 %v969, %v970
        %v972 = vmin.f32 %v819, %v820
        %v973 = vrot.slane %v972, 4
        %v974 = vmin.f32 %v972, %v973
        %v975 = vrot.slane %v974, 2
        %v976 = vmin.f32 %v974, %v975
        %v977 = vrot.slane %v976, 1
        %v978 = vmin.f32 %v976, %v977
        %v979 = vmin.f32 %v821, %v822
        %v980 = vrot.slane %v979, 4
        %v981 = vmin.f32 %v979, %v980
        %v982 = vrot.slane %v981, 2
        %v983 = vmin.f32 %v981, %v982
        %v984 = vrot.slane %v983, 1
        %v985 = vmin.f32 %v983, %v984
        %v986 = vmin.f32 %v823, %v824
        %v987 = vrot.slane %v986, 4
        %v988 = vmin.f32 %v986, %v987
        %v989 = vrot.slane %v988, 2
        %v990 = vmin.f32 %v988, %v989
        %v991 = vrot.slane %v990, 1
        %v992 = vmin.f32 %v990, %v991
        %v993 = vmin.f32 %v825, %v826
        %v994 = vrot.slane %v993, 4
        %v995 = vmin.f32 %v993, %v994
        %v996 = vrot.slane %v995, 2
        %v997 = vmin.f32 %v995, %v996
        %v998 = vrot.slane %v997, 1
        %v999 = vmin.f32 %v997, %v998
        %v1000 = vmin.f32 %v827, %v828
        %v1001 = vrot.slane %v1000, 4
        %v1002 = vmin.f32 %v1000, %v1001
        %v1003 = vrot.slane %v1002, 2
        %v1004 = vmin.f32 %v1002, %v1003
        %v1005 = vrot.slane %v1004, 1
        %v1006 = vmin.f32 %v1004, %v1005
        %v1007 = vmin.f32 %v829, %v830
        %v1008 = vrot.slane %v1007, 4
        %v1009 = vmin.f32 %v1007, %v1008
        %v1010 = vrot.slane %v1009, 2
        %v1011 = vmin.f32 %v1009, %v1010
        %v1012 = vrot.slane %v1011, 1
        %v1013 = vmin.f32 %v1011, %v1012
        %v1014 = vmin.f32 %v831, %v832
        %v1015 = vrot.slane %v1014, 4
        %v1016 = vmin.f32 %v1014, %v1015
        %v1017 = vrot.slane %v1016, 2
        %v1018 = vmin.f32 %v1016, %v1017
        %v1019 = vrot.slane %v1018, 1
        %v1020 = vmin.f32 %v1018, %v1019
        %v1021 = vmin.f32 %v833, %v834
        %v1022 = vrot.slane %v1021, 4
        %v1023 = vmin.f32 %v1021, %v1022
        %v1024 = vrot.slane %v1023, 2
        %v1025 = vmin.f32 %v1023, %v1024
        %v1026 = vrot.slane %v1025, 1
        %v1027 = vmin.f32 %v1025, %v1026
        %v1028 = vmin.f32 %v835, %v836
        %v1029 = vrot.slane %v1028, 4
        %v1030 = vmin.f32 %v1028, %v1029
        %v1031 = vrot.slane %v1030, 2
        %v1032 = vmin.f32 %v1030, %v1031
        %v1033 = vrot.slane %v1032, 1
        %v1034 = vmin.f32 %v1032, %v1033
        %v1035 = vmin.f32 %v837, %v838
        %v1036 = vrot.slane %v1035, 4
        %v1037 = vmin.f32 %v1035, %v1036
        %v1038 = vrot.slane %v1037, 2
        %v1039 = vmin.f32 %v1037, %v1038
        %v1040 = vrot.slane %v1039, 1
        %v1041 = vmin.f32 %v1039, %v1040
        %v1042 = vmin.f32 %v839, %v840
        %v1043 = vrot.slane %v1042, 4
        %v1044 = vmin.f32 %v1042, %v1043
        %v1045 = vrot.slane %v1044, 2
        %v1046 = vmin.f32 %v1044, %v1045
        %v1047 = vrot.slane %v1046, 1
        %v1048 = vmin.f32 %v1046, %v1047
        %v1049 = vmax.f32 %v905, %v906
        %v1050 = vrot.slane %v1049, 4
        %v1051 = vmax.f32 %v1049, %v1050
        %v1052 = vrot.slane %v1051, 2
        %v1053 = vmax.f32 %v1051, %v1052
        %v1054 = vrot.slane %v1053, 1
        %v1055 = vmax.f32 %v1053, %v1054
        %v1056 = vmax.f32 %v907, %v908
        %v1057 = vrot.slane %v1056, 4
        %v1058 = vmax.f32 %v1056, %v1057
        %v1059 = vrot.slane %v1058, 2
        %v1060 = vmax.f32 %v1058, %v1059
        %v1061 = vrot.slane %v1060, 1
        %v1062 = vmax.f32 %v1060, %v1061
        %v1063 = vmax.f32 %v909, %v910
        %v1064 = vrot.slane %v1063, 4
        %v1065 = vmax.f32 %v1063, %v1064
        %v1066 = vrot.slane %v1065, 2
        %v1067 = vmax.f32 %v1065, %v1066
        %v1068 = vrot.slane %v1067, 1
        %v1069 = vmax.f32 %v1067, %v1068
        %v1070 = vmax.f32 %v911, %v912
        %v1071 = vrot.slane %v1070, 4
        %v1072 = vmax.f32 %v1070, %v1071
        %v1073 = vrot.slane %v1072, 2
        %v1074 = vmax.f32 %v1072, %v1073
        %v1075 = vrot.slane %v1074, 1
        %v1076 = vmax.f32 %v1074, %v1075
        %v1077 = vmax.f32 %v913, %v914
        %v1078 = vrot.slane %v1077, 4
        %v1079 = vmax.f32 %v1077, %v1078
        %v1080 = vrot.slane %v1079, 2
        %v1081 = vmax.f32 %v1079, %v1080
        %v1082 = vrot.slane %v1081, 1
        %v1083 = vmax.f32 %v1081, %v1082
        %v1084 = vmax.f32 %v915, %v916
        %v1085 = vrot.slane %v1084, 4
        %v1086 = vmax.f32 %v1084, %v1085
        %v1087 = vrot.slane %v1086, 2
        %v1088 = vmax.f32 %v1086, %v1087
        %v1089 = vrot.slane %v1088, 1
        %v1090 = vmax.f32 %v1088, %v1089
        %v1091 = vmax.f32 %v917, %v918
        %v1092 = vrot.slane %v1091, 4
        %v1093 = vmax.f32 %v1091, %v1092
        %v1094 = vrot.slane %v1093, 2
        %v1095 = vmax.f32 %v1093, %v1094
        %v1096 = vrot.slane %v1095, 1
        %v1097 = vmax.f32 %v1095, %v1096
        %v1098 = vmax.f32 %v919, %v920
        %v1099 = vrot.slane %v1098, 4
        %v1100 = vmax.f32 %v1098, %v1099
        %v1101 = vrot.slane %v1100, 2
        %v1102 = vmax.f32 %v1100, %v1101
        %v1103 = vrot.slane %v1102, 1
        %v1104 = vmax.f32 %v1102, %v1103
        %v1105 = vmax.f32 %v921, %v922
        %v1106 = vrot.slane %v1105, 4
        %v1107 = vmax.f32 %v1105, %v1106
        %v1108 = vrot.slane %v1107, 2
        %v1109 = vmax.f32 %v1107, %v1108
        %v1110 = vrot.slane %v1109, 1
        %v1111 = vmax.f32 %v1109, %v1110
        %v1112 = vmax.f32 %v923, %v924
        %v1113 = vrot.slane %v1112, 4
        %v1114 = vmax.f32 %v1112, %v1113
        %v1115 = vrot.slane %v1114, 2
        %v1116 = vmax.f32 %v1114, %v1115
        %v1117 = vrot.slane %v1116, 1
        %v1118 = vmax.f32 %v1116, %v1117
        %v1119 = vmax.f32 %v925, %v926
        %v1120 = vrot.slane %v1119, 4
        %v1121 = vmax.f32 %v1119, %v1120
        %v1122 = vrot.slane %v1121, 2
        %v1123 = vmax.f32 %v1121, %v1122
        %v1124 = vrot.slane %v1123, 1
        %v1125 = vmax.f32 %v1123, %v1124
        %v1126 = vmax.f32 %v927, %v928
        %v1127 = vrot.slane %v1126, 4
        %v1128 = vmax.f32 %v1126, %v1127
        %v1129 = vrot.slane %v1128, 2
        %v1130 = vmax.f32 %v1128, %v1129
        %v1131 = vrot.slane %v1130, 1
        %v1132 = vmax.f32 %v1130, %v1131
        %v1133 = vmax.f32 %v929, %v930
        %v1134 = vrot.slane %v1133, 4
        %v1135 = vmax.f32 %v1133, %v1134
        %v1136 = vrot.slane %v1135, 2
        %v1137 = vmax.f32 %v1135, %v1136
        %v1138 = vrot.slane %v1137, 1
        %v1139 = vmax.f32 %v1137, %v1138
        %v1140 = vmax.f32 %v931, %v932
        %v1141 = vrot.slane %v1140, 4
        %v1142 = vmax.f32 %v1140, %v1141
        %v1143 = vrot.slane %v1142, 2
        %v1144 = vmax.f32 %v1142, %v1143
        %v1145 = vrot.slane %v1144, 1
        %v1146 = vmax.f32 %v1144, %v1145
        %v1147 = vmax.f32 %v933, %v934
        %v1148 = vrot.slane %v1147, 4
        %v1149 = vmax.f32 %v1147, %v1148
        %v1150 = vrot.slane %v1149, 2
        %v1151 = vmax.f32 %v1149, %v1150
        %v1152 = vrot.slane %v1151, 1
        %v1153 = vmax.f32 %v1151, %v1152
        %v1154 = vmax.f32 %v935, %v936
        %v1155 = vrot.slane %v1154, 4
        %v1156 = vmax.f32 %v1154, %v1155
        %v1157 = vrot.slane %v1156, 2
        %v1158 = vmax.f32 %v1156, %v1157
        %v1159 = vrot.slane %v1158, 1
        %v1160 = vmax.f32 %v1158, %v1159
        %v1161 = vlaneseq
        %v1162 = vand.u32 %v1161, 127
        %v1163 = vcvt.s32.f32 %v1162
        %vm1164 = vcmp.eq.s32.totalorder %v1162, 0
        %vm1165 = vcmp.ge.f32.partialorder %v500, %v718
        %vm1166 = vcmp.ge.f32.partialorder %v507, %v719
        %vm1167 = vcmp.ge.f32.partialorder %v514, %v720
        %vm1168 = vcmp.ge.f32.partialorder %v521, %v721
        %vm1169 = vcmp.ge.f32.partialorder %v528, %v722
        %vm1170 = vcmp.ge.f32.partialorder %v535, %v723
        %vm1171 = vcmp.ge.f32.partialorder %v542, %v724
        %vm1172 = vcmp.ge.f32.partialorder %v549, %v725
        %vm1173 = vcmp.ge.f32.partialorder %v556, %v726
        %vm1174 = vcmp.ge.f32.partialorder %v563, %v727
        %vm1175 = vcmp.ge.f32.partialorder %v570, %v728
        %vm1176 = vcmp.ge.f32.partialorder %v577, %v729
        %vm1177 = vcmp.ge.f32.partialorder %v584, %v730
        %vm1178 = vcmp.ge.f32.partialorder %v591, %v731
        %vm1179 = vcmp.ge.f32.partialorder %v598, %v732
        %vm1180 = vcmp.ge.f32.partialorder %v605, %v733
        %v1181 = vsel %vm1165, %v1163, 0.0
        %v1182 = vsel %vm1166, %v1163, 0.0
        %v1183 = vsel %vm1167, %v1163, 0.0
        %v1184 = vsel %vm1168, %v1163, 0.0
        %v1185 = vsel %vm1169, %v1163, 0.0
        %v1186 = vsel %vm1170, %v1163, 0.0
        %v1187 = vsel %vm1171, %v1163, 0.0
        %v1188 = vsel %vm1172, %v1163, 0.0
        %v1189 = vsel %vm1173, %v1163, 0.0
        %v1190 = vsel %vm1174, %v1163, 0.0
        %v1191 = vsel %vm1175, %v1163, 0.0
        %v1192 = vsel %vm1176, %v1163, 0.0
        %v1193 = vsel %vm1177, %v1163, 0.0
        %v1194 = vsel %vm1178, %v1163, 0.0
        %v1195 = vsel %vm1179, %v1163, 0.0
        %v1196 = vsel %vm1180, %v1163, 0.0
        %v1197 = vsel %vm1164, 1, 0
        %vm1198 = vcmp.eq.s32.totalorder %v1197, 1
        %v1199 = vsel %vm1198, 100000.0, %v1181
        %v1200 = vsel %vm1198, 100000.0, %v1182
        %v1201 = vsel %vm1198, 100000.0, %v1183
        %v1202 = vsel %vm1198, 100000.0, %v1184
        %v1203 = vsel %vm1198, 100000.0, %v1185
        %v1204 = vsel %vm1198, 100000.0, %v1186
        %v1205 = vsel %vm1198, 100000.0, %v1187
        %v1206 = vsel %vm1198, 100000.0, %v1188
        %v1207 = vsel %vm1198, 100000.0, %v1189
        %v1208 = vsel %vm1198, 100000.0, %v1190
        %v1209 = vsel %vm1198, 100000.0, %v1191
        %v1210 = vsel %vm1198, 100000.0, %v1192
        %v1211 = vsel %vm1198, 100000.0, %v1193
        %v1212 = vsel %vm1198, 100000.0, %v1194
        %v1213 = vsel %vm1198, 100000.0, %v1195
        %v1214 = vsel %vm1198, 100000.0, %v1196
        %vm1215 = vcmp.ge.f32.partialorder %v388, %v718
        %vm1216 = vcmp.ge.f32.partialorder %v395, %v719
        %vm1217 = vcmp.ge.f32.partialorder %v402, %v720
        %vm1218 = vcmp.ge.f32.partialorder %v409, %v721
        %vm1219 = vcmp.ge.f32.partialorder %v416, %v722
        %vm1220 = vcmp.ge.f32.partialorder %v423, %v723
        %vm1221 = vcmp.ge.f32.partialorder %v430, %v724
        %vm1222 = vcmp.ge.f32.partialorder %v437, %v725
        %vm1223 = vcmp.ge.f32.partialorder %v444, %v726
        %vm1224 = vcmp.ge.f32.partialorder %v451, %v727
        %vm1225 = vcmp.ge.f32.partialorder %v458, %v728
        %vm1226 = vcmp.ge.f32.partialorder %v465, %v729
        %vm1227 = vcmp.ge.f32.partialorder %v472, %v730
        %vm1228 = vcmp.ge.f32.partialorder %v479, %v731
        %vm1229 = vcmp.ge.f32.partialorder %v486, %v732
        %vm1230 = vcmp.ge.f32.partialorder %v493, %v733
        %v1231 = vsel %vm1215, %v1163, 0.0
        %v1232 = vsel %vm1216, %v1163, 0.0
        %v1233 = vsel %vm1217, %v1163, 0.0
        %v1234 = vsel %vm1218, %v1163, 0.0
        %v1235 = vsel %vm1219, %v1163, 0.0
        %v1236 = vsel %vm1220, %v1163, 0.0
        %v1237 = vsel %vm1221, %v1163, 0.0
        %v1238 = vsel %vm1222, %v1163, 0.0
        %v1239 = vsel %vm1223, %v1163, 0.0
        %v1240 = vsel %vm1224, %v1163, 0.0
        %v1241 = vsel %vm1225, %v1163, 0.0
        %v1242 = vsel %vm1226, %v1163, 0.0
        %v1243 = vsel %vm1227, %v1163, 0.0
        %v1244 = vsel %vm1228, %v1163, 0.0
        %v1245 = vsel %vm1229, %v1163, 0.0
        %v1246 = vsel %vm1230, %v1163, 0.0
        %v1247 = vsel %vm1198, -100000.0, %v1231
        %v1248 = vsel %vm1198, -100000.0, %v1232
        %v1249 = vsel %vm1198, -100000.0, %v1233
        %v1250 = vsel %vm1198, -100000.0, %v1234
        %v1251 = vsel %vm1198, -100000.0, %v1235
        %v1252 = vsel %vm1198, -100000.0, %v1236
        %v1253 = vsel %vm1198, -100000.0, %v1237
        %v1254 = vsel %vm1198, -100000.0, %v1238
        %v1255 = vsel %vm1198, -100000.0, %v1239
        %v1256 = vsel %vm1198, -100000.0, %v1240
        %v1257 = vsel %vm1198, -100000.0, %v1241
        %v1258 = vsel %vm1198, -100000.0, %v1242
        %v1259 = vsel %vm1198, -100000.0, %v1243
        %v1260 = vsel %vm1198, -100000.0, %v1244
        %v1261 = vsel %vm1198, -100000.0, %v1245
        %v1262 = vsel %vm1198, -100000.0, %v1246
        %v1263 = vsel %vm189, %v1199, inf
        %1264 = vmin.xlane.f32.xlu0 %v1263
        %v1265 = vpop.xlane.xlu0 %1264
        %v1266 = vsel %vm189, %v1200, inf
        %1267 = vmin.xlane.f32.xlu0 %v1266
        %v1268 = vpop.xlane.xlu0 %1267
        %v1269 = vsel %vm189, %v1201, inf
        %1270 = vmin.xlane.f32.xlu0 %v1269
        %v1271 = vpop.xlane.xlu0 %1270
        %v1272 = vsel %vm189, %v1202, inf
        %1273 = vmin.xlane.f32.xlu0 %v1272
        %v1274 = vpop.xlane.xlu0 %1273
        %v1275 = vsel %vm189, %v1203, inf
        %1276 = vmin.xlane.f32.xlu0 %v1275
        %v1277 = vpop.xlane.xlu0 %1276
        %v1278 = vsel %vm189, %v1204, inf
        %1279 = vmin.xlane.f32.xlu0 %v1278
        %v1280 = vpop.xlane.xlu0 %1279
        %v1281 = vsel %vm189, %v1205, inf
        %1282 = vmin.xlane.f32.xlu0 %v1281
        %v1283 = vpop.xlane.xlu0 %1282
        %v1284 = vsel %vm189, %v1206, inf
        %1285 = vmin.xlane.f32.xlu0 %v1284
        %v1286 = vpop.xlane.xlu0 %1285
        %v1287 = vsel %vm189, %v1207, inf
        %1288 = vmin.xlane.f32.xlu0 %v1287
        %v1289 = vpop.xlane.xlu0 %1288
        %v1290 = vsel %vm189, %v1208, inf
        %1291 = vmin.xlane.f32.xlu0 %v1290
        %v1292 = vpop.xlane.xlu0 %1291
        %v1293 = vsel %vm189, %v1209, inf
        %1294 = vmin.xlane.f32.xlu0 %v1293
        %v1295 = vpop.xlane.xlu0 %1294
        %v1296 = vsel %vm189, %v1210, inf
        %1297 = vmin.xlane.f32.xlu0 %v1296
        %v1298 = vpop.xlane.xlu0 %1297
        %v1299 = vsel %vm189, %v1211, inf
        %1300 = vmin.xlane.f32.xlu0 %v1299
        %v1301 = vpop.xlane.xlu0 %1300
        %v1302 = vsel %vm189, %v1212, inf
        %1303 = vmin.xlane.f32.xlu0 %v1302
        %v1304 = vpop.xlane.xlu0 %1303
        %v1305 = vsel %vm189, %v1213, inf
        %1306 = vmin.xlane.f32.xlu0 %v1305
        %v1307 = vpop.xlane.xlu0 %1306
        %v1308 = vsel %vm189, %v1214, inf
        %1309 = vmin.xlane.f32.xlu0 %v1308
        %v1310 = vpop.xlane.xlu0 %1309
        %v1311 = vsel %vm189, %v1247, -inf
        %1312 = vmax.xlane.f32.xlu0 %v1311
        %v1313 = vpop.xlane.xlu0 %1312
        %v1314 = vsel %vm189, %v1248, -inf
        %1315 = vmax.xlane.f32.xlu0 %v1314
        %v1316 = vpop.xlane.xlu0 %1315
        %v1317 = vsel %vm189, %v1249, -inf
        %1318 = vmax.xlane.f32.xlu0 %v1317
        %v1319 = vpop.xlane.xlu0 %1318
        %v1320 = vsel %vm189, %v1250, -inf
        %1321 = vmax.xlane.f32.xlu0 %v1320
        %v1322 = vpop.xlane.xlu0 %1321
        %v1323 = vsel %vm189, %v1251, -inf
        %1324 = vmax.xlane.f32.xlu0 %v1323
        %v1325 = vpop.xlane.xlu0 %1324
        %v1326 = vsel %vm189, %v1252, -inf
        %1327 = vmax.xlane.f32.xlu0 %v1326
        %v1328 = vpop.xlane.xlu0 %1327
        %v1329 = vsel %vm189, %v1253, -inf
        %1330 = vmax.xlane.f32.xlu0 %v1329
        %v1331 = vpop.xlane.xlu0 %1330
        %v1332 = vsel %vm189, %v1254, -inf
        %1333 = vmax.xlane.f32.xlu0 %v1332
        %v1334 = vpop.xlane.xlu0 %1333
        %v1335 = vsel %vm189, %v1255, -inf
        %1336 = vmax.xlane.f32.xlu0 %v1335
        %v1337 = vpop.xlane.xlu0 %1336
        %v1338 = vsel %vm189, %v1256, -inf
        %1339 = vmax.xlane.f32.xlu0 %v1338
        %v1340 = vpop.xlane.xlu0 %1339
        %v1341 = vsel %vm189, %v1257, -inf
        %1342 = vmax.xlane.f32.xlu0 %v1341
        %v1343 = vpop.xlane.xlu0 %1342
        %v1344 = vsel %vm189, %v1258, -inf
        %1345 = vmax.xlane.f32.xlu0 %v1344
        %v1346 = vpop.xlane.xlu0 %1345
        %v1347 = vsel %vm189, %v1259, -inf
        %1348 = vmax.xlane.f32.xlu0 %v1347
        %v1349 = vpop.xlane.xlu0 %1348
        %v1350 = vsel %vm189, %v1260, -inf
        %1351 = vmax.xlane.f32.xlu0 %v1350
        %v1352 = vpop.xlane.xlu0 %1351
        %v1353 = vsel %vm189, %v1261, -inf
        %1354 = vmax.xlane.f32.xlu0 %v1353
        %v1355 = vpop.xlane.xlu0 %1354
        %v1356 = vsel %vm189, %v1262, -inf
        %1357 = vmax.xlane.f32.xlu0 %v1356
        %v1358 = vpop.xlane.xlu0 %1357
        %v1359 = vsub.f32 %v1055, %v943
        %v1360 = vsub.f32 %v1062, %v950
        %v1361 = vsub.f32 %v1069, %v957
        %v1362 = vsub.f32 %v1076, %v964
        %v1363 = vsub.f32 %v1083, %v971
        %v1364 = vsub.f32 %v1090, %v978
        %v1365 = vsub.f32 %v1097, %v985
        %v1366 = vsub.f32 %v1104, %v992
        %v1367 = vsub.f32 %v1111, %v999
        %v1368 = vsub.f32 %v1118, %v1006
        %v1369 = vsub.f32 %v1125, %v1013
        %v1370 = vsub.f32 %v1132, %v1020
        %v1371 = vsub.f32 %v1139, %v1027
        %v1372 = vsub.f32 %v1146, %v1034
        %v1373 = vsub.f32 %v1153, %v1041
        %v1374 = vsub.f32 %v1160, %v1048
        %v1375 = vadd.f32 %v1359, 1.0
        %v1376 = vadd.f32 %v1360, 1.0
        %v1377 = vadd.f32 %v1361, 1.0
        %v1378 = vadd.f32 %v1362, 1.0
        %v1379 = vadd.f32 %v1363, 1.0
        %v1380 = vadd.f32 %v1364, 1.0
        %v1381 = vadd.f32 %v1365, 1.0
        %v1382 = vadd.f32 %v1366, 1.0
        %v1383 = vadd.f32 %v1367, 1.0
        %v1384 = vadd.f32 %v1368, 1.0
        %v1385 = vadd.f32 %v1369, 1.0
        %v1386 = vadd.f32 %v1370, 1.0
        %v1387 = vadd.f32 %v1371, 1.0
        %v1388 = vadd.f32 %v1372, 1.0
        %v1389 = vadd.f32 %v1373, 1.0
        %v1390 = vadd.f32 %v1374, 1.0
        %v1391 = vrcp.pop 8.0
        %v1392 = vmul.f32 8.0, %v1391
        %v1393 = vsub.f32 1.0, %v1392
        %v1394 = vmul.f32 %v1391, %v1393
        %v1395 = vadd.f32 %v1391, %v1394
        %vm1396 = vweird.f32 %v1391
        %v1397 = vsel %vm1396, %v1391, %v1395
        %v1398 = vmul.f32 %v1375, %v1397
        %v1399 = vmul.f32 %v1376, %v1397
        %v1400 = vmul.f32 %v1377, %v1397
        %v1401 = vmul.f32 %v1378, %v1397
        %v1402 = vmul.f32 %v1379, %v1397
        %v1403 = vmul.f32 %v1380, %v1397
        %v1404 = vmul.f32 %v1381, %v1397
        %v1405 = vmul.f32 %v1382, %v1397
        %v1406 = vmul.f32 %v1383, %v1397
        %v1407 = vmul.f32 %v1384, %v1397
        %v1408 = vmul.f32 %v1385, %v1397
        %v1409 = vmul.f32 %v1386, %v1397
        %v1410 = vmul.f32 %v1387, %v1397
        %v1411 = vmul.f32 %v1388, %v1397
        %v1412 = vmul.f32 %v1389, %v1397
        %v1413 = vmul.f32 %v1390, %v1397
        %v1414 = vsub.f32 %v1313, %v1265
        %v1415 = vsub.f32 %v1316, %v1268
        %v1416 = vsub.f32 %v1319, %v1271
        %v1417 = vsub.f32 %v1322, %v1274
        %v1418 = vsub.f32 %v1325, %v1277
        %v1419 = vsub.f32 %v1328, %v1280
        %v1420 = vsub.f32 %v1331, %v1283
        %v1421 = vsub.f32 %v1334, %v1286
        %v1422 = vsub.f32 %v1337, %v1289
        %v1423 = vsub.f32 %v1340, %v1292
        %v1424 = vsub.f32 %v1343, %v1295
        %v1425 = vsub.f32 %v1346, %v1298
        %v1426 = vsub.f32 %v1349, %v1301
        %v1427 = vsub.f32 %v1352, %v1304
        %v1428 = vsub.f32 %v1355, %v1307
        %v1429 = vsub.f32 %v1358, %v1310
        %v1430 = vadd.f32 %v1414, 1.0
        %v1431 = vadd.f32 %v1415, 1.0
        %v1432 = vadd.f32 %v1416, 1.0
        %v1433 = vadd.f32 %v1417, 1.0
        %v1434 = vadd.f32 %v1418, 1.0
        %v1435 = vadd.f32 %v1419, 1.0
        %v1436 = vadd.f32 %v1420, 1.0
        %v1437 = vadd.f32 %v1421, 1.0
        %v1438 = vadd.f32 %v1422, 1.0
        %v1439 = vadd.f32 %v1423, 1.0
        %v1440 = vadd.f32 %v1424, 1.0
        %v1441 = vadd.f32 %v1425, 1.0
        %v1442 = vadd.f32 %v1426, 1.0
        %v1443 = vadd.f32 %v1427, 1.0
        %v1444 = vadd.f32 %v1428, 1.0
        %v1445 = vadd.f32 %v1429, 1.0
        %v1446 = vmul.f32 %v1430, %v1397
        %v1447 = vmul.f32 %v1431, %v1397
        %v1448 = vmul.f32 %v1432, %v1397
        %v1449 = vmul.f32 %v1433, %v1397
        %v1450 = vmul.f32 %v1434, %v1397
        %v1451 = vmul.f32 %v1435, %v1397
        %v1452 = vmul.f32 %v1436, %v1397
        %v1453 = vmul.f32 %v1437, %v1397
        %v1454 = vmul.f32 %v1438, %v1397
        %v1455 = vmul.f32 %v1439, %v1397
        %v1456 = vmul.f32 %v1440, %v1397
        %v1457 = vmul.f32 %v1441, %v1397
        %v1458 = vmul.f32 %v1442, %v1397
        %v1459 = vmul.f32 %v1443, %v1397
        %v1460 = vmul.f32 %v1444, %v1397
        %v1461 = vmul.f32 %v1445, %v1397
        %v1462 = vmax.f32 %v1398, 1.0
        %v1463 = vmax.f32 %v1399, 1.0
        %v1464 = vmax.f32 %v1400, 1.0
        %v1465 = vmax.f32 %v1401, 1.0
        %v1466 = vmax.f32 %v1402, 1.0
        %v1467 = vmax.f32 %v1403, 1.0
        %v1468 = vmax.f32 %v1404, 1.0
        %v1469 = vmax.f32 %v1405, 1.0
        %v1470 = vmax.f32 %v1406, 1.0
        %v1471 = vmax.f32 %v1407, 1.0
        %v1472 = vmax.f32 %v1408, 1.0
        %v1473 = vmax.f32 %v1409, 1.0
        %v1474 = vmax.f32 %v1410, 1.0
        %v1475 = vmax.f32 %v1411, 1.0
        %v1476 = vmax.f32 %v1412, 1.0
        %v1477 = vmax.f32 %v1413, 1.0
        %v1478 = vrcp.pop %v1462
        %v1479 = vmul.f32 %v1462, %v1478
        %v1480 = vsub.f32 1.0, %v1479
        %v1481 = vmul.f32 %v1478, %v1480
        %v1482 = vadd.f32 %v1478, %v1481
        %vm1483 = vweird.f32 %v1462
        %vm1484 = vweird.f32 %v1478
        %vm1485 = vmor %vm1483, %vm1484
        %v1486 = vsel %vm1485, %v1478, %v1482
        %v1487 = vand.u32 2147483647, %v1462
        %vm1488 = vcmp.eq.f32.partialorder %v1487, 8.507059e+37
        %v1489 = vand.u32 %v1462, 2147483648
        %v1490 = vor.u32 1.1754944e-38, %v1489
        %v1491 = vsel %vm1488, %v1490, %v1486
        %v1492 = vmul.f32 1.0, %v1491
        %v1493 = vrcp.pop %v1463
        %v1494 = vmul.f32 %v1463, %v1493
        %v1495 = vsub.f32 1.0, %v1494
        %v1496 = vmul.f32 %v1493, %v1495
        %v1497 = vadd.f32 %v1493, %v1496
        %vm1498 = vweird.f32 %v1463
        %vm1499 = vweird.f32 %v1493
        %vm1500 = vmor %vm1498, %vm1499
        %v1501 = vsel %vm1500, %v1493, %v1497
        %v1502 = vand.u32 2147483647, %v1463
        %vm1503 = vcmp.eq.f32.partialorder %v1502, 8.507059e+37
        %v1504 = vand.u32 %v1463, 2147483648
        %v1505 = vor.u32 1.1754944e-38, %v1504
        %v1506 = vsel %vm1503, %v1505, %v1501
        %v1507 = vmul.f32 1.0, %v1506
        %v1508 = vrcp.pop %v1464
        %v1509 = vmul.f32 %v1464, %v1508
        %v1510 = vsub.f32 1.0, %v1509
        %v1511 = vmul.f32 %v1508, %v1510
        %v1512 = vadd.f32 %v1508, %v1511
        %vm1513 = vweird.f32 %v1464
        %vm1514 = vweird.f32 %v1508
        %vm1515 = vmor %vm1513, %vm1514
        %v1516 = vsel %vm1515, %v1508, %v1512
        %v1517 = vand.u32 2147483647, %v1464
        %vm1518 = vcmp.eq.f32.partialorder %v1517, 8.507059e+37
        %v1519 = vand.u32 %v1464, 2147483648
        %v1520 = vor.u32 1.1754944e-38, %v1519
        %v1521 = vsel %vm1518, %v1520, %v1516
        %v1522 = vmul.f32 1.0, %v1521
        %v1523 = vrcp.pop %v1465
        %v1524 = vmul.f32 %v1465, %v1523
        %v1525 = vsub.f32 1.0, %v1524
        %v1526 = vmul.f32 %v1523, %v1525
        %v1527 = vadd.f32 %v1523, %v1526
        %vm1528 = vweird.f32 %v1465
        %vm1529 = vweird.f32 %v1523
        %vm1530 = vmor %vm1528, %vm1529
        %v1531 = vsel %vm1530, %v1523, %v1527
        %v1532 = vand.u32 2147483647, %v1465
        %vm1533 = vcmp.eq.f32.partialorder %v1532, 8.507059e+37
        %v1534 = vand.u32 %v1465, 2147483648
        %v1535 = vor.u32 1.1754944e-38, %v1534
        %v1536 = vsel %vm1533, %v1535, %v1531
        %v1537 = vmul.f32 1.0, %v1536
        %v1538 = vrcp.pop %v1466
        %v1539 = vmul.f32 %v1466, %v1538
        %v1540 = vsub.f32 1.0, %v1539
        %v1541 = vmul.f32 %v1538, %v1540
        %v1542 = vadd.f32 %v1538, %v1541
        %vm1543 = vweird.f32 %v1466
        %vm1544 = vweird.f32 %v1538
        %vm1545 = vmor %vm1543, %vm1544
        %v1546 = vsel %vm1545, %v1538, %v1542
        %v1547 = vand.u32 2147483647, %v1466
        %vm1548 = vcmp.eq.f32.partialorder %v1547, 8.507059e+37
        %v1549 = vand.u32 %v1466, 2147483648
        %v1550 = vor.u32 1.1754944e-38, %v1549
        %v1551 = vsel %vm1548, %v1550, %v1546
        %v1552 = vmul.f32 1.0, %v1551
        %v1553 = vrcp.pop %v1467
        %v1554 = vmul.f32 %v1467, %v1553
        %v1555 = vsub.f32 1.0, %v1554
        %v1556 = vmul.f32 %v1553, %v1555
        %v1557 = vadd.f32 %v1553, %v1556
        %vm1558 = vweird.f32 %v1467
        %vm1559 = vweird.f32 %v1553
        %vm1560 = vmor %vm1558, %vm1559
        %v1561 = vsel %vm1560, %v1553, %v1557
        %v1562 = vand.u32 2147483647, %v1467
        %vm1563 = vcmp.eq.f32.partialorder %v1562, 8.507059e+37
        %v1564 = vand.u32 %v1467, 2147483648
        %v1565 = vor.u32 1.1754944e-38, %v1564
        %v1566 = vsel %vm1563, %v1565, %v1561
        %v1567 = vmul.f32 1.0, %v1566
        %v1568 = vrcp.pop %v1468
        %v1569 = vmul.f32 %v1468, %v1568
        %v1570 = vsub.f32 1.0, %v1569
        %v1571 = vmul.f32 %v1568, %v1570
        %v1572 = vadd.f32 %v1568, %v1571
        %vm1573 = vweird.f32 %v1468
        %vm1574 = vweird.f32 %v1568
        %vm1575 = vmor %vm1573, %vm1574
        %v1576 = vsel %vm1575, %v1568, %v1572
        %v1577 = vand.u32 2147483647, %v1468
        %vm1578 = vcmp.eq.f32.partialorder %v1577, 8.507059e+37
        %v1579 = vand.u32 %v1468, 2147483648
        %v1580 = vor.u32 1.1754944e-38, %v1579
        %v1581 = vsel %vm1578, %v1580, %v1576
        %v1582 = vmul.f32 1.0, %v1581
        %v1583 = vrcp.pop %v1469
        %v1584 = vmul.f32 %v1469, %v1583
        %v1585 = vsub.f32 1.0, %v1584
        %v1586 = vmul.f32 %v1583, %v1585
        %v1587 = vadd.f32 %v1583, %v1586
        %vm1588 = vweird.f32 %v1469
        %vm1589 = vweird.f32 %v1583
        %vm1590 = vmor %vm1588, %vm1589
        %v1591 = vsel %vm1590, %v1583, %v1587
        %v1592 = vand.u32 2147483647, %v1469
        %vm1593 = vcmp.eq.f32.partialorder %v1592, 8.507059e+37
        %v1594 = vand.u32 %v1469, 2147483648
        %v1595 = vor.u32 1.1754944e-38, %v1594
        %v1596 = vsel %vm1593, %v1595, %v1591
        %v1597 = vmul.f32 1.0, %v1596
        %v1598 = vrcp.pop %v1470
        %v1599 = vmul.f32 %v1470, %v1598
        %v1600 = vsub.f32 1.0, %v1599
        %v1601 = vmul.f32 %v1598, %v1600
        %v1602 = vadd.f32 %v1598, %v1601
        %vm1603 = vweird.f32 %v1470
        %vm1604 = vweird.f32 %v1598
        %vm1605 = vmor %vm1603, %vm1604
        %v1606 = vsel %vm1605, %v1598, %v1602
        %v1607 = vand.u32 2147483647, %v1470
        %vm1608 = vcmp.eq.f32.partialorder %v1607, 8.507059e+37
        %v1609 = vand.u32 %v1470, 2147483648
        %v1610 = vor.u32 1.1754944e-38, %v1609
        %v1611 = vsel %vm1608, %v1610, %v1606
        %v1612 = vmul.f32 1.0, %v1611
        %v1613 = vrcp.pop %v1471
        %v1614 = vmul.f32 %v1471, %v1613
        %v1615 = vsub.f32 1.0, %v1614
        %v1616 = vmul.f32 %v1613, %v1615
        %v1617 = vadd.f32 %v1613, %v1616
        %vm1618 = vweird.f32 %v1471
        %vm1619 = vweird.f32 %v1613
        %vm1620 = vmor %vm1618, %vm1619
        %v1621 = vsel %vm1620, %v1613, %v1617
        %v1622 = vand.u32 2147483647, %v1471
        %vm1623 = vcmp.eq.f32.partialorder %v1622, 8.507059e+37
        %v1624 = vand.u32 %v1471, 2147483648
        %v1625 = vor.u32 1.1754944e-38, %v1624
        %v1626 = vsel %vm1623, %v1625, %v1621
        %v1627 = vmul.f32 1.0, %v1626
        %v1628 = vrcp.pop %v1472
        %v1629 = vmul.f32 %v1472, %v1628
        %v1630 = vsub.f32 1.0, %v1629
        %v1631 = vmul.f32 %v1628, %v1630
        %v1632 = vadd.f32 %v1628, %v1631
        %vm1633 = vweird.f32 %v1472
        %vm1634 = vweird.f32 %v1628
        %vm1635 = vmor %vm1633, %vm1634
        %v1636 = vsel %vm1635, %v1628, %v1632
        %v1637 = vand.u32 2147483647, %v1472
        %vm1638 = vcmp.eq.f32.partialorder %v1637, 8.507059e+37
        %v1639 = vand.u32 %v1472, 2147483648
        %v1640 = vor.u32 1.1754944e-38, %v1639
        %v1641 = vsel %vm1638, %v1640, %v1636
        %v1642 = vmul.f32 1.0, %v1641
        %v1643 = vrcp.pop %v1473
        %v1644 = vmul.f32 %v1473, %v1643
        %v1645 = vsub.f32 1.0, %v1644
        %v1646 = vmul.f32 %v1643, %v1645
        %v1647 = vadd.f32 %v1643, %v1646
        %vm1648 = vweird.f32 %v1473
        %vm1649 = vweird.f32 %v1643
        %vm1650 = vmor %vm1648, %vm1649
        %v1651 = vsel %vm1650, %v1643, %v1647
        %v1652 = vand.u32 2147483647, %v1473
        %vm1653 = vcmp.eq.f32.partialorder %v1652, 8.507059e+37
        %v1654 = vand.u32 %v1473, 2147483648
        %v1655 = vor.u32 1.1754944e-38, %v1654
        %v1656 = vsel %vm1653, %v1655, %v1651
        %v1657 = vmul.f32 1.0, %v1656
        %v1658 = vrcp.pop %v1474
        %v1659 = vmul.f32 %v1474, %v1658
        %v1660 = vsub.f32 1.0, %v1659
        %v1661 = vmul.f32 %v1658, %v1660
        %v1662 = vadd.f32 %v1658, %v1661
        %vm1663 = vweird.f32 %v1474
        %vm1664 = vweird.f32 %v1658
        %vm1665 = vmor %vm1663, %vm1664
        %v1666 = vsel %vm1665, %v1658, %v1662
        %v1667 = vand.u32 2147483647, %v1474
        %vm1668 = vcmp.eq.f32.partialorder %v1667, 8.507059e+37
        %v1669 = vand.u32 %v1474, 2147483648
        %v1670 = vor.u32 1.1754944e-38, %v1669
        %v1671 = vsel %vm1668, %v1670, %v1666
        %v1672 = vmul.f32 1.0, %v1671
        %v1673 = vrcp.pop %v1475
        %v1674 = vmul.f32 %v1475, %v1673
        %v1675 = vsub.f32 1.0, %v1674
        %v1676 = vmul.f32 %v1673, %v1675
        %v1677 = vadd.f32 %v1673, %v1676
        %vm1678 = vweird.f32 %v1475
        %vm1679 = vweird.f32 %v1673
        %vm1680 = vmor %vm1678, %vm1679
        %v1681 = vsel %vm1680, %v1673, %v1677
        %v1682 = vand.u32 2147483647, %v1475
        %vm1683 = vcmp.eq.f32.partialorder %v1682, 8.507059e+37
        %v1684 = vand.u32 %v1475, 2147483648
        %v1685 = vor.u32 1.1754944e-38, %v1684
        %v1686 = vsel %vm1683, %v1685, %v1681
        %v1687 = vmul.f32 1.0, %v1686
        %v1688 = vrcp.pop %v1476
        %v1689 = vmul.f32 %v1476, %v1688
        %v1690 = vsub.f32 1.0, %v1689
        %v1691 = vmul.f32 %v1688, %v1690
        %v1692 = vadd.f32 %v1688, %v1691
        %vm1693 = vweird.f32 %v1476
        %vm1694 = vweird.f32 %v1688
        %vm1695 = vmor %vm1693, %vm1694
        %v1696 = vsel %vm1695, %v1688, %v1692
        %v1697 = vand.u32 2147483647, %v1476
        %vm1698 = vcmp.eq.f32.partialorder %v1697, 8.507059e+37
        %v1699 = vand.u32 %v1476, 2147483648
        %v1700 = vor.u32 1.1754944e-38, %v1699
        %v1701 = vsel %vm1698, %v1700, %v1696
        %v1702 = vmul.f32 1.0, %v1701
        %v1703 = vrcp.pop %v1477
        %v1704 = vmul.f32 %v1477, %v1703
        %v1705 = vsub.f32 1.0, %v1704
        %v1706 = vmul.f32 %v1703, %v1705
        %v1707 = vadd.f32 %v1703, %v1706
        %vm1708 = vweird.f32 %v1477
        %vm1709 = vweird.f32 %v1703
        %vm1710 = vmor %vm1708, %vm1709
        %v1711 = vsel %vm1710, %v1703, %v1707
        %v1712 = vand.u32 2147483647, %v1477
        %vm1713 = vcmp.eq.f32.partialorder %v1712, 8.507059e+37
        %v1714 = vand.u32 %v1477, 2147483648
        %v1715 = vor.u32 1.1754944e-38, %v1714
        %v1716 = vsel %vm1713, %v1715, %v1711
        %v1717 = vmul.f32 1.0, %v1716
        %v1718 = vmax.f32 %v1446, 1.0
        %v1719 = vmax.f32 %v1447, 1.0
        %v1720 = vmax.f32 %v1448, 1.0
        %v1721 = vmax.f32 %v1449, 1.0
        %v1722 = vmax.f32 %v1450, 1.0
        %v1723 = vmax.f32 %v1451, 1.0
        %v1724 = vmax.f32 %v1452, 1.0
        %v1725 = vmax.f32 %v1453, 1.0
        %v1726 = vmax.f32 %v1454, 1.0
        %v1727 = vmax.f32 %v1455, 1.0
        %v1728 = vmax.f32 %v1456, 1.0
        %v1729 = vmax.f32 %v1457, 1.0
        %v1730 = vmax.f32 %v1458, 1.0
        %v1731 = vmax.f32 %v1459, 1.0
        %v1732 = vmax.f32 %v1460, 1.0
        %v1733 = vmax.f32 %v1461, 1.0
        %v1734 = vrcp.pop %v1718
        %v1735 = vmul.f32 %v1718, %v1734
        %v1736 = vsub.f32 1.0, %v1735
        %v1737 = vmul.f32 %v1734, %v1736
        %v1738 = vadd.f32 %v1734, %v1737
        %vm1739 = vweird.f32 %v1718
        %vm1740 = vweird.f32 %v1734
        %vm1741 = vmor %vm1739, %vm1740
        %v1742 = vsel %vm1741, %v1734, %v1738
        %v1743 = vand.u32 2147483647, %v1718
        %vm1744 = vcmp.eq.f32.partialorder %v1743, 8.507059e+37
        %v1745 = vand.u32 %v1718, 2147483648
        %v1746 = vor.u32 1.1754944e-38, %v1745
        %v1747 = vsel %vm1744, %v1746, %v1742
        %v1748 = vmul.f32 1.0, %v1747
        %v1749 = vrcp.pop %v1719
        %v1750 = vmul.f32 %v1719, %v1749
        %v1751 = vsub.f32 1.0, %v1750
        %v1752 = vmul.f32 %v1749, %v1751
        %v1753 = vadd.f32 %v1749, %v1752
        %vm1754 = vweird.f32 %v1719
        %vm1755 = vweird.f32 %v1749
        %vm1756 = vmor %vm1754, %vm1755
        %v1757 = vsel %vm1756, %v1749, %v1753
        %v1758 = vand.u32 2147483647, %v1719
        %vm1759 = vcmp.eq.f32.partialorder %v1758, 8.507059e+37
        %v1760 = vand.u32 %v1719, 2147483648
        %v1761 = vor.u32 1.1754944e-38, %v1760
        %v1762 = vsel %vm1759, %v1761, %v1757
        %v1763 = vmul.f32 1.0, %v1762
        %v1764 = vrcp.pop %v1720
        %v1765 = vmul.f32 %v1720, %v1764
        %v1766 = vsub.f32 1.0, %v1765
        %v1767 = vmul.f32 %v1764, %v1766
        %v1768 = vadd.f32 %v1764, %v1767
        %vm1769 = vweird.f32 %v1720
        %vm1770 = vweird.f32 %v1764
        %vm1771 = vmor %vm1769, %vm1770
        %v1772 = vsel %vm1771, %v1764, %v1768
        %v1773 = vand.u32 2147483647, %v1720
        %vm1774 = vcmp.eq.f32.partialorder %v1773, 8.507059e+37
        %v1775 = vand.u32 %v1720, 2147483648
        %v1776 = vor.u32 1.1754944e-38, %v1775
        %v1777 = vsel %vm1774, %v1776, %v1772
        %v1778 = vmul.f32 1.0, %v1777
        %v1779 = vrcp.pop %v1721
        %v1780 = vmul.f32 %v1721, %v1779
        %v1781 = vsub.f32 1.0, %v1780
        %v1782 = vmul.f32 %v1779, %v1781
        %v1783 = vadd.f32 %v1779, %v1782
        %vm1784 = vweird.f32 %v1721
        %vm1785 = vweird.f32 %v1779
        %vm1786 = vmor %vm1784, %vm1785
        %v1787 = vsel %vm1786, %v1779, %v1783
        %v1788 = vand.u32 2147483647, %v1721
        %vm1789 = vcmp.eq.f32.partialorder %v1788, 8.507059e+37
        %v1790 = vand.u32 %v1721, 2147483648
        %v1791 = vor.u32 1.1754944e-38, %v1790
        %v1792 = vsel %vm1789, %v1791, %v1787
        %v1793 = vmul.f32 1.0, %v1792
        %v1794 = vrcp.pop %v1722
        %v1795 = vmul.f32 %v1722, %v1794
        %v1796 = vsub.f32 1.0, %v1795
        %v1797 = vmul.f32 %v1794, %v1796
        %v1798 = vadd.f32 %v1794, %v1797
        %vm1799 = vweird.f32 %v1722
        %vm1800 = vweird.f32 %v1794
        %vm1801 = vmor %vm1799, %vm1800
        %v1802 = vsel %vm1801, %v1794, %v1798
        %v1803 = vand.u32 2147483647, %v1722
        %vm1804 = vcmp.eq.f32.partialorder %v1803, 8.507059e+37
        %v1805 = vand.u32 %v1722, 2147483648
        %v1806 = vor.u32 1.1754944e-38, %v1805
        %v1807 = vsel %vm1804, %v1806, %v1802
        %v1808 = vmul.f32 1.0, %v1807
        %v1809 = vrcp.pop %v1723
        %v1810 = vmul.f32 %v1723, %v1809
        %v1811 = vsub.f32 1.0, %v1810
        %v1812 = vmul.f32 %v1809, %v1811
        %v1813 = vadd.f32 %v1809, %v1812
        %vm1814 = vweird.f32 %v1723
        %vm1815 = vweird.f32 %v1809
        %vm1816 = vmor %vm1814, %vm1815
        %v1817 = vsel %vm1816, %v1809, %v1813
        %v1818 = vand.u32 2147483647, %v1723
        %vm1819 = vcmp.eq.f32.partialorder %v1818, 8.507059e+37
        %v1820 = vand.u32 %v1723, 2147483648
        %v1821 = vor.u32 1.1754944e-38, %v1820
        %v1822 = vsel %vm1819, %v1821, %v1817
        %v1823 = vmul.f32 1.0, %v1822
        %v1824 = vrcp.pop %v1724
        %v1825 = vmul.f32 %v1724, %v1824
        %v1826 = vsub.f32 1.0, %v1825
        %v1827 = vmul.f32 %v1824, %v1826
        %v1828 = vadd.f32 %v1824, %v1827
        %vm1829 = vweird.f32 %v1724
        %vm1830 = vweird.f32 %v1824
        %vm1831 = vmor %vm1829, %vm1830
        %v1832 = vsel %vm1831, %v1824, %v1828
        %v1833 = vand.u32 2147483647, %v1724
        %vm1834 = vcmp.eq.f32.partialorder %v1833, 8.507059e+37
        %v1835 = vand.u32 %v1724, 2147483648
        %v1836 = vor.u32 1.1754944e-38, %v1835
        %v1837 = vsel %vm1834, %v1836, %v1832
        %v1838 = vmul.f32 1.0, %v1837
        %v1839 = vrcp.pop %v1725
        %v1840 = vmul.f32 %v1725, %v1839
        %v1841 = vsub.f32 1.0, %v1840
        %v1842 = vmul.f32 %v1839, %v1841
        %v1843 = vadd.f32 %v1839, %v1842
        %vm1844 = vweird.f32 %v1725
        %vm1845 = vweird.f32 %v1839
        %vm1846 = vmor %vm1844, %vm1845
        %v1847 = vsel %vm1846, %v1839, %v1843
        %v1848 = vand.u32 2147483647, %v1725
        %vm1849 = vcmp.eq.f32.partialorder %v1848, 8.507059e+37
        %v1850 = vand.u32 %v1725, 2147483648
        %v1851 = vor.u32 1.1754944e-38, %v1850
        %v1852 = vsel %vm1849, %v1851, %v1847
        %v1853 = vmul.f32 1.0, %v1852
        %v1854 = vrcp.pop %v1726
        %v1855 = vmul.f32 %v1726, %v1854
        %v1856 = vsub.f32 1.0, %v1855
        %v1857 = vmul.f32 %v1854, %v1856
        %v1858 = vadd.f32 %v1854, %v1857
        %vm1859 = vweird.f32 %v1726
        %vm1860 = vweird.f32 %v1854
        %vm1861 = vmor %vm1859, %vm1860
        %v1862 = vsel %vm1861, %v1854, %v1858
        %v1863 = vand.u32 2147483647, %v1726
        %vm1864 = vcmp.eq.f32.partialorder %v1863, 8.507059e+37
        %v1865 = vand.u32 %v1726, 2147483648
        %v1866 = vor.u32 1.1754944e-38, %v1865
        %v1867 = vsel %vm1864, %v1866, %v1862
        %v1868 = vmul.f32 1.0, %v1867
        %v1869 = vrcp.pop %v1727
        %v1870 = vmul.f32 %v1727, %v1869
        %v1871 = vsub.f32 1.0, %v1870
        %v1872 = vmul.f32 %v1869, %v1871
        %v1873 = vadd.f32 %v1869, %v1872
        %vm1874 = vweird.f32 %v1727
        %vm1875 = vweird.f32 %v1869
        %vm1876 = vmor %vm1874, %vm1875
        %v1877 = vsel %vm1876, %v1869, %v1873
        %v1878 = vand.u32 2147483647, %v1727
        %vm1879 = vcmp.eq.f32.partialorder %v1878, 8.507059e+37
        %v1880 = vand.u32 %v1727, 2147483648
        %v1881 = vor.u32 1.1754944e-38, %v1880
        %v1882 = vsel %vm1879, %v1881, %v1877
        %v1883 = vmul.f32 1.0, %v1882
        %v1884 = vrcp.pop %v1728
        %v1885 = vmul.f32 %v1728, %v1884
        %v1886 = vsub.f32 1.0, %v1885
        %v1887 = vmul.f32 %v1884, %v1886
        %v1888 = vadd.f32 %v1884, %v1887
        %vm1889 = vweird.f32 %v1728
        %vm1890 = vweird.f32 %v1884
        %vm1891 = vmor %vm1889, %vm1890
        %v1892 = vsel %vm1891, %v1884, %v1888
        %v1893 = vand.u32 2147483647, %v1728
        %vm1894 = vcmp.eq.f32.partialorder %v1893, 8.507059e+37
        %v1895 = vand.u32 %v1728, 2147483648
        %v1896 = vor.u32 1.1754944e-38, %v1895
        %v1897 = vsel %vm1894, %v1896, %v1892
        %v1898 = vmul.f32 1.0, %v1897
        %v1899 = vrcp.pop %v1729
        %v1900 = vmul.f32 %v1729, %v1899
        %v1901 = vsub.f32 1.0, %v1900
        %v1902 = vmul.f32 %v1899, %v1901
        %v1903 = vadd.f32 %v1899, %v1902
        %vm1904 = vweird.f32 %v1729
        %vm1905 = vweird.f32 %v1899
        %vm1906 = vmor %vm1904, %vm1905
        %v1907 = vsel %vm1906, %v1899, %v1903
        %v1908 = vand.u32 2147483647, %v1729
        %vm1909 = vcmp.eq.f32.partialorder %v1908, 8.507059e+37
        %v1910 = vand.u32 %v1729, 2147483648
        %v1911 = vor.u32 1.1754944e-38, %v1910
        %v1912 = vsel %vm1909, %v1911, %v1907
        %v1913 = vmul.f32 1.0, %v1912
        %v1914 = vrcp.pop %v1730
        %v1915 = vmul.f32 %v1730, %v1914
        %v1916 = vsub.f32 1.0, %v1915
        %v1917 = vmul.f32 %v1914, %v1916
        %v1918 = vadd.f32 %v1914, %v1917
        %vm1919 = vweird.f32 %v1730
        %vm1920 = vweird.f32 %v1914
        %vm1921 = vmor %vm1919, %vm1920
        %v1922 = vsel %vm1921, %v1914, %v1918
        %v1923 = vand.u32 2147483647, %v1730
        %vm1924 = vcmp.eq.f32.partialorder %v1923, 8.507059e+37
        %v1925 = vand.u32 %v1730, 2147483648
        %v1926 = vor.u32 1.1754944e-38, %v1925
        %v1927 = vsel %vm1924, %v1926, %v1922
        %v1928 = vmul.f32 1.0, %v1927
        %v1929 = vrcp.pop %v1731
        %v1930 = vmul.f32 %v1731, %v1929
        %v1931 = vsub.f32 1.0, %v1930
        %v1932 = vmul.f32 %v1929, %v1931
        %v1933 = vadd.f32 %v1929, %v1932
        %vm1934 = vweird.f32 %v1731
        %vm1935 = vweird.f32 %v1929
        %vm1936 = vmor %vm1934, %vm1935
        %v1937 = vsel %vm1936, %v1929, %v1933
        %v1938 = vand.u32 2147483647, %v1731
        %vm1939 = vcmp.eq.f32.partialorder %v1938, 8.507059e+37
        %v1940 = vand.u32 %v1731, 2147483648
        %v1941 = vor.u32 1.1754944e-38, %v1940
        %v1942 = vsel %vm1939, %v1941, %v1937
        %v1943 = vmul.f32 1.0, %v1942
        %v1944 = vrcp.pop %v1732
        %v1945 = vmul.f32 %v1732, %v1944
        %v1946 = vsub.f32 1.0, %v1945
        %v1947 = vmul.f32 %v1944, %v1946
        %v1948 = vadd.f32 %v1944, %v1947
        %vm1949 = vweird.f32 %v1732
        %vm1950 = vweird.f32 %v1944
        %vm1951 = vmor %vm1949, %vm1950
        %v1952 = vsel %vm1951, %v1944, %v1948
        %v1953 = vand.u32 2147483647, %v1732
        %vm1954 = vcmp.eq.f32.partialorder %v1953, 8.507059e+37
        %v1955 = vand.u32 %v1732, 2147483648
        %v1956 = vor.u32 1.1754944e-38, %v1955
        %v1957 = vsel %vm1954, %v1956, %v1952
        %v1958 = vmul.f32 1.0, %v1957
        %v1959 = vrcp.pop %v1733
        %v1960 = vmul.f32 %v1733, %v1959
        %v1961 = vsub.f32 1.0, %v1960
        %v1962 = vmul.f32 %v1959, %v1961
        %v1963 = vadd.f32 %v1959, %v1962
        %vm1964 = vweird.f32 %v1733
        %vm1965 = vweird.f32 %v1959
        %vm1966 = vmor %vm1964, %vm1965
        %v1967 = vsel %vm1966, %v1959, %v1963
        %v1968 = vand.u32 2147483647, %v1733
        %vm1969 = vcmp.eq.f32.partialorder %v1968, 8.507059e+37
        %v1970 = vand.u32 %v1733, 2147483648
        %v1971 = vor.u32 1.1754944e-38, %v1970
        %v1972 = vsel %vm1969, %v1971, %v1967
        %v1973 = vmul.f32 1.0, %v1972
        %v1974 = vadd.f32 %v737, 0.5
        %v1975 = vmul.f32 %v1974, %v1398
        %v1976 = vmul.f32 %v1974, %v1399
        %v1977 = vmul.f32 %v1974, %v1400
        %v1978 = vmul.f32 %v1974, %v1401
        %v1979 = vmul.f32 %v1974, %v1402
        %v1980 = vmul.f32 %v1974, %v1403
        %v1981 = vmul.f32 %v1974, %v1404
        %v1982 = vmul.f32 %v1974, %v1405
        %v1983 = vmul.f32 %v1974, %v1406
        %v1984 = vmul.f32 %v1974, %v1407
        %v1985 = vmul.f32 %v1974, %v1408
        %v1986 = vmul.f32 %v1974, %v1409
        %v1987 = vmul.f32 %v1974, %v1410
        %v1988 = vmul.f32 %v1974, %v1411
        %v1989 = vmul.f32 %v1974, %v1412
        %v1990 = vmul.f32 %v1974, %v1413
        %v1991 = vsub.f32 %v1163, %v943
        %v1992 = vsub.f32 %v1163, %v950
        %v1993 = vsub.f32 %v1163, %v957
        %v1994 = vsub.f32 %v1163, %v964
        %v1995 = vsub.f32 %v1163, %v971
        %v1996 = vsub.f32 %v1163, %v978
        %v1997 = vsub.f32 %v1163, %v985
        %v1998 = vsub.f32 %v1163, %v992
        %v1999 = vsub.f32 %v1163, %v999
        %v2000 = vsub.f32 %v1163, %v1006
        %v2001 = vsub.f32 %v1163, %v1013
        %v2002 = vsub.f32 %v1163, %v1020
        %v2003 = vsub.f32 %v1163, %v1027
        %v2004 = vsub.f32 %v1163, %v1034
        %v2005 = vsub.f32 %v1163, %v1041
        %v2006 = vsub.f32 %v1163, %v1048
        %v2007 = vadd.f32 %v1991, 0.5
        %v2008 = vadd.f32 %v1992, 0.5
        %v2009 = vadd.f32 %v1993, 0.5
        %v2010 = vadd.f32 %v1994, 0.5
        %v2011 = vadd.f32 %v1995, 0.5
        %v2012 = vadd.f32 %v1996, 0.5
        %v2013 = vadd.f32 %v1997, 0.5
        %v2014 = vadd.f32 %v1998, 0.5
        %v2015 = vadd.f32 %v1999, 0.5
        %v2016 = vadd.f32 %v2000, 0.5
        %v2017 = vadd.f32 %v2001, 0.5
        %v2018 = vadd.f32 %v2002, 0.5
        %v2019 = vadd.f32 %v2003, 0.5
        %v2020 = vadd.f32 %v2004, 0.5
        %v2021 = vadd.f32 %v2005, 0.5
        %v2022 = vadd.f32 %v2006, 0.5
        %v2023 = vsub.f32 %v2007, %v1975
        %v2024 = vsub.f32 %v2008, %v1976
        %v2025 = vsub.f32 %v2009, %v1977
        %v2026 = vsub.f32 %v2010, %v1978
        %v2027 = vsub.f32 %v2011, %v1979
        %v2028 = vsub.f32 %v2012, %v1980
        %v2029 = vsub.f32 %v2013, %v1981
        %v2030 = vsub.f32 %v2014, %v1982
        %v2031 = vsub.f32 %v2015, %v1983
        %v2032 = vsub.f32 %v2016, %v1984
        %v2033 = vsub.f32 %v2017, %v1985
        %v2034 = vsub.f32 %v2018, %v1986
        %v2035 = vsub.f32 %v2019, %v1987
        %v2036 = vsub.f32 %v2020, %v1988
        %v2037 = vsub.f32 %v2021, %v1989
        %v2038 = vsub.f32 %v2022, %v1990
        %v2039 = vand.u32 2147483647, %v2023
        %v2040 = vand.u32 2147483647, %v2024
        %v2041 = vand.u32 2147483647, %v2025
        %v2042 = vand.u32 2147483647, %v2026
        %v2043 = vand.u32 2147483647, %v2027
        %v2044 = vand.u32 2147483647, %v2028
        %v2045 = vand.u32 2147483647, %v2029
        %v2046 = vand.u32 2147483647, %v2030
        %v2047 = vand.u32 2147483647, %v2031
        %v2048 = vand.u32 2147483647, %v2032
        %v2049 = vand.u32 2147483647, %v2033
        %v2050 = vand.u32 2147483647, %v2034
        %v2051 = vand.u32 2147483647, %v2035
        %v2052 = vand.u32 2147483647, %v2036
        %v2053 = vand.u32 2147483647, %v2037
        %v2054 = vand.u32 2147483647, %v2038
        %v2055 = vmul.f32 %v2039, %v1492
        %v2056 = vmul.f32 %v2040, %v1507
        %v2057 = vmul.f32 %v2041, %v1522
        %v2058 = vmul.f32 %v2042, %v1537
        %v2059 = vmul.f32 %v2043, %v1552
        %v2060 = vmul.f32 %v2044, %v1567
        %v2061 = vmul.f32 %v2045, %v1582
        %v2062 = vmul.f32 %v2046, %v1597
        %v2063 = vmul.f32 %v2047, %v1612
        %v2064 = vmul.f32 %v2048, %v1627
        %v2065 = vmul.f32 %v2049, %v1642
        %v2066 = vmul.f32 %v2050, %v1657
        %v2067 = vmul.f32 %v2051, %v1672
        %v2068 = vmul.f32 %v2052, %v1687
        %v2069 = vmul.f32 %v2053, %v1702
        %v2070 = vmul.f32 %v2054, %v1717
        %v2071 = vsub.f32 1.0, %v2055
        %v2072 = vsub.f32 1.0, %v2056
        %v2073 = vsub.f32 1.0, %v2057
        %v2074 = vsub.f32 1.0, %v2058
        %v2075 = vsub.f32 1.0, %v2059
        %v2076 = vsub.f32 1.0, %v2060
        %v2077 = vsub.f32 1.0, %v2061
        %v2078 = vsub.f32 1.0, %v2062
        %v2079 = vsub.f32 1.0, %v2063
        %v2080 = vsub.f32 1.0, %v2064
        %v2081 = vsub.f32 1.0, %v2065
        %v2082 = vsub.f32 1.0, %v2066
        %v2083 = vsub.f32 1.0, %v2067
        %v2084 = vsub.f32 1.0, %v2068
        %v2085 = vsub.f32 1.0, %v2069
        %v2086 = vsub.f32 1.0, %v2070
        %v2087 = vmax.f32 %v2071, 0.0
        %v2088 = vmax.f32 %v2072, 0.0
        %v2089 = vmax.f32 %v2073, 0.0
        %v2090 = vmax.f32 %v2074, 0.0
        %v2091 = vmax.f32 %v2075, 0.0
        %v2092 = vmax.f32 %v2076, 0.0
        %v2093 = vmax.f32 %v2077, 0.0
        %v2094 = vmax.f32 %v2078, 0.0
        %v2095 = vmax.f32 %v2079, 0.0
        %v2096 = vmax.f32 %v2080, 0.0
        %v2097 = vmax.f32 %v2081, 0.0
        %v2098 = vmax.f32 %v2082, 0.0
        %v2099 = vmax.f32 %v2083, 0.0
        %v2100 = vmax.f32 %v2084, 0.0
        %v2101 = vmax.f32 %v2085, 0.0
        %v2102 = vmax.f32 %v2086, 0.0
        %vm2103 = vcmp.ge.f32.partialorder %v1163, %v943
        %vm2104 = vcmp.ge.f32.partialorder %v1163, %v950
        %vm2105 = vcmp.ge.f32.partialorder %v1163, %v957
        %vm2106 = vcmp.ge.f32.partialorder %v1163, %v964
        %vm2107 = vcmp.ge.f32.partialorder %v1163, %v971
        %vm2108 = vcmp.ge.f32.partialorder %v1163, %v978
        %vm2109 = vcmp.ge.f32.partialorder %v1163, %v985
        %vm2110 = vcmp.ge.f32.partialorder %v1163, %v992
        %vm2111 = vcmp.ge.f32.partialorder %v1163, %v999
        %vm2112 = vcmp.ge.f32.partialorder %v1163, %v1006
        %vm2113 = vcmp.ge.f32.partialorder %v1163, %v1013
        %vm2114 = vcmp.ge.f32.partialorder %v1163, %v1020
        %vm2115 = vcmp.ge.f32.partialorder %v1163, %v1027
        %vm2116 = vcmp.ge.f32.partialorder %v1163, %v1034
        %vm2117 = vcmp.ge.f32.partialorder %v1163, %v1041
        %vm2118 = vcmp.ge.f32.partialorder %v1163, %v1048
        %vm2119 = vcmp.le.f32.partialorder %v1163, %v1055
        %vm2120 = vcmp.le.f32.partialorder %v1163, %v1062
        %vm2121 = vcmp.le.f32.partialorder %v1163, %v1069
        %vm2122 = vcmp.le.f32.partialorder %v1163, %v1076
        %vm2123 = vcmp.le.f32.partialorder %v1163, %v1083
        %vm2124 = vcmp.le.f32.partialorder %v1163, %v1090
        %vm2125 = vcmp.le.f32.partialorder %v1163, %v1097
        %vm2126 = vcmp.le.f32.partialorder %v1163, %v1104
        %vm2127 = vcmp.le.f32.partialorder %v1163, %v1111
        %vm2128 = vcmp.le.f32.partialorder %v1163, %v1118
        %vm2129 = vcmp.le.f32.partialorder %v1163, %v1125
        %vm2130 = vcmp.le.f32.partialorder %v1163, %v1132
        %vm2131 = vcmp.le.f32.partialorder %v1163, %v1139
        %vm2132 = vcmp.le.f32.partialorder %v1163, %v1146
        %vm2133 = vcmp.le.f32.partialorder %v1163, %v1153
        %vm2134 = vcmp.le.f32.partialorder %v1163, %v1160
        %vm2135 = vmand %vm2103, %vm2119
        %vm2136 = vmand %vm2104, %vm2120
        %vm2137 = vmand %vm2105, %vm2121
        %vm2138 = vmand %vm2106, %vm2122
        %vm2139 = vmand %vm2107, %vm2123
        %vm2140 = vmand %vm2108, %vm2124
        %vm2141 = vmand %vm2109, %vm2125
        %vm2142 = vmand %vm2110, %vm2126
        %vm2143 = vmand %vm2111, %vm2127
        %vm2144 = vmand %vm2112, %vm2128
        %vm2145 = vmand %vm2113, %vm2129
        %vm2146 = vmand %vm2114, %vm2130
        %vm2147 = vmand %vm2115, %vm2131
        %vm2148 = vmand %vm2116, %vm2132
        %vm2149 = vmand %vm2117, %vm2133
        %vm2150 = vmand %vm2118, %vm2134
        %v2151 = vsel %vm2135, %v2087, 0.0
        %v2152 = vsel %vm2136, %v2088, 0.0
        %v2153 = vsel %vm2137, %v2089, 0.0
        %v2154 = vsel %vm2138, %v2090, 0.0
        %v2155 = vsel %vm2139, %v2091, 0.0
        %v2156 = vsel %vm2140, %v2092, 0.0
        %v2157 = vsel %vm2141, %v2093, 0.0
        %v2158 = vsel %vm2142, %v2094, 0.0
        %v2159 = vsel %vm2143, %v2095, 0.0
        %v2160 = vsel %vm2144, %v2096, 0.0
        %v2161 = vsel %vm2145, %v2097, 0.0
        %v2162 = vsel %vm2146, %v2098, 0.0
        %v2163 = vsel %vm2147, %v2099, 0.0
        %v2164 = vsel %vm2148, %v2100, 0.0
        %v2165 = vsel %vm2149, %v2101, 0.0
        %v2166 = vsel %vm2150, %v2102, 0.0
        %v2167 = vsel %vm189, %v2151, 0.0
        %2168 = vadd.xlane.f32.xlu0 %v2167
        %v2169 = vpop.xlane.xlu0 %2168
        %v2170 = vsel %vm189, %v2152, 0.0
        %2171 = vadd.xlane.f32.xlu0 %v2170
        %v2172 = vpop.xlane.xlu0 %2171
        %v2173 = vsel %vm189, %v2153, 0.0
        %2174 = vadd.xlane.f32.xlu0 %v2173
        %v2175 = vpop.xlane.xlu0 %2174
        %v2176 = vsel %vm189, %v2154, 0.0
        %2177 = vadd.xlane.f32.xlu0 %v2176
        %v2178 = vpop.xlane.xlu0 %2177
        %v2179 = vsel %vm189, %v2155, 0.0
        %2180 = vadd.xlane.f32.xlu0 %v2179
        %v2181 = vpop.xlane.xlu0 %2180
        %v2182 = vsel %vm189, %v2156, 0.0
        %2183 = vadd.xlane.f32.xlu0 %v2182
        %v2184 = vpop.xlane.xlu0 %2183
        %v2185 = vsel %vm189, %v2157, 0.0
        %2186 = vadd.xlane.f32.xlu0 %v2185
        %v2187 = vpop.xlane.xlu0 %2186
        %v2188 = vsel %vm189, %v2158, 0.0
        %2189 = vadd.xlane.f32.xlu0 %v2188
        %v2190 = vpop.xlane.xlu0 %2189
        %v2191 = vsel %vm189, %v2159, 0.0
        %2192 = vadd.xlane.f32.xlu0 %v2191
        %v2193 = vpop.xlane.xlu0 %2192
        %v2194 = vsel %vm189, %v2160, 0.0
        %2195 = vadd.xlane.f32.xlu0 %v2194
        %v2196 = vpop.xlane.xlu0 %2195
        %v2197 = vsel %vm189, %v2161, 0.0
        %2198 = vadd.xlane.f32.xlu0 %v2197
        %v2199 = vpop.xlane.xlu0 %2198
        %v2200 = vsel %vm189, %v2162, 0.0
        %2201 = vadd.xlane.f32.xlu0 %v2200
        %v2202 = vpop.xlane.xlu0 %2201
        %v2203 = vsel %vm189, %v2163, 0.0
        %2204 = vadd.xlane.f32.xlu0 %v2203
        %v2205 = vpop.xlane.xlu0 %2204
        %v2206 = vsel %vm189, %v2164, 0.0
        %2207 = vadd.xlane.f32.xlu0 %v2206
        %v2208 = vpop.xlane.xlu0 %2207
        %v2209 = vsel %vm189, %v2165, 0.0
        %2210 = vadd.xlane.f32.xlu0 %v2209
        %v2211 = vpop.xlane.xlu0 %2210
        %v2212 = vsel %vm189, %v2166, 0.0
        %2213 = vadd.xlane.f32.xlu0 %v2212
        %v2214 = vpop.xlane.xlu0 %2213
        %v2215 = vmax.f32 %v2169, 1e-12
        %v2216 = vmax.f32 %v2172, 1e-12
        %v2217 = vmax.f32 %v2175, 1e-12
        %v2218 = vmax.f32 %v2178, 1e-12
        %v2219 = vmax.f32 %v2181, 1e-12
        %v2220 = vmax.f32 %v2184, 1e-12
        %v2221 = vmax.f32 %v2187, 1e-12
        %v2222 = vmax.f32 %v2190, 1e-12
        %v2223 = vmax.f32 %v2193, 1e-12
        %v2224 = vmax.f32 %v2196, 1e-12
        %v2225 = vmax.f32 %v2199, 1e-12
        %v2226 = vmax.f32 %v2202, 1e-12
        %v2227 = vmax.f32 %v2205, 1e-12
        %v2228 = vmax.f32 %v2208, 1e-12
        %v2229 = vmax.f32 %v2211, 1e-12
        %v2230 = vmax.f32 %v2214, 1e-12
        %v2231 = vrcp.pop %v2215
        %v2232 = vmul.f32 %v2215, %v2231
        %v2233 = vsub.f32 1.0, %v2232
        %v2234 = vmul.f32 %v2231, %v2233
        %v2235 = vadd.f32 %v2231, %v2234
        %vm2236 = vweird.f32 %v2215
        %vm2237 = vweird.f32 %v2231
        %vm2238 = vmor %vm2236, %vm2237
        %v2239 = vsel %vm2238, %v2231, %v2235
        %v2240 = vand.u32 2147483647, %v2215
        %vm2241 = vcmp.eq.f32.partialorder %v2240, 8.507059e+37
        %v2242 = vand.u32 %v2215, 2147483648
        %v2243 = vor.u32 1.1754944e-38, %v2242
        %v2244 = vsel %vm2241, %v2243, %v2239
        %v2245 = vmul.f32 1.0, %v2244
        %v2246 = vrcp.pop %v2216
        %v2247 = vmul.f32 %v2216, %v2246
        %v2248 = vsub.f32 1.0, %v2247
        %v2249 = vmul.f32 %v2246, %v2248
        %v2250 = vadd.f32 %v2246, %v2249
        %vm2251 = vweird.f32 %v2216
        %vm2252 = vweird.f32 %v2246
        %vm2253 = vmor %vm2251, %vm2252
        %v2254 = vsel %vm2253, %v2246, %v2250
        %v2255 = vand.u32 2147483647, %v2216
        %vm2256 = vcmp.eq.f32.partialorder %v2255, 8.507059e+37
        %v2257 = vand.u32 %v2216, 2147483648
        %v2258 = vor.u32 1.1754944e-38, %v2257
        %v2259 = vsel %vm2256, %v2258, %v2254
        %v2260 = vmul.f32 1.0, %v2259
        %v2261 = vrcp.pop %v2217
        %v2262 = vmul.f32 %v2217, %v2261
        %v2263 = vsub.f32 1.0, %v2262
        %v2264 = vmul.f32 %v2261, %v2263
        %v2265 = vadd.f32 %v2261, %v2264
        %vm2266 = vweird.f32 %v2217
        %vm2267 = vweird.f32 %v2261
        %vm2268 = vmor %vm2266, %vm2267
        %v2269 = vsel %vm2268, %v2261, %v2265
        %v2270 = vand.u32 2147483647, %v2217
        %vm2271 = vcmp.eq.f32.partialorder %v2270, 8.507059e+37
        %v2272 = vand.u32 %v2217, 2147483648
        %v2273 = vor.u32 1.1754944e-38, %v2272
        %v2274 = vsel %vm2271, %v2273, %v2269
        %v2275 = vmul.f32 1.0, %v2274
        %v2276 = vrcp.pop %v2218
        %v2277 = vmul.f32 %v2218, %v2276
        %v2278 = vsub.f32 1.0, %v2277
        %v2279 = vmul.f32 %v2276, %v2278
        %v2280 = vadd.f32 %v2276, %v2279
        %vm2281 = vweird.f32 %v2218
        %vm2282 = vweird.f32 %v2276
        %vm2283 = vmor %vm2281, %vm2282
        %v2284 = vsel %vm2283, %v2276, %v2280
        %v2285 = vand.u32 2147483647, %v2218
        %vm2286 = vcmp.eq.f32.partialorder %v2285, 8.507059e+37
        %v2287 = vand.u32 %v2218, 2147483648
        %v2288 = vor.u32 1.1754944e-38, %v2287
        %v2289 = vsel %vm2286, %v2288, %v2284
        %v2290 = vmul.f32 1.0, %v2289
        %v2291 = vrcp.pop %v2219
        %v2292 = vmul.f32 %v2219, %v2291
        %v2293 = vsub.f32 1.0, %v2292
        %v2294 = vmul.f32 %v2291, %v2293
        %v2295 = vadd.f32 %v2291, %v2294
        %vm2296 = vweird.f32 %v2219
        %vm2297 = vweird.f32 %v2291
        %vm2298 = vmor %vm2296, %vm2297
        %v2299 = vsel %vm2298, %v2291, %v2295
        %v2300 = vand.u32 2147483647, %v2219
        %vm2301 = vcmp.eq.f32.partialorder %v2300, 8.507059e+37
        %v2302 = vand.u32 %v2219, 2147483648
        %v2303 = vor.u32 1.1754944e-38, %v2302
        %v2304 = vsel %vm2301, %v2303, %v2299
        %v2305 = vmul.f32 1.0, %v2304
        %v2306 = vrcp.pop %v2220
        %v2307 = vmul.f32 %v2220, %v2306
        %v2308 = vsub.f32 1.0, %v2307
        %v2309 = vmul.f32 %v2306, %v2308
        %v2310 = vadd.f32 %v2306, %v2309
        %vm2311 = vweird.f32 %v2220
        %vm2312 = vweird.f32 %v2306
        %vm2313 = vmor %vm2311, %vm2312
        %v2314 = vsel %vm2313, %v2306, %v2310
        %v2315 = vand.u32 2147483647, %v2220
        %vm2316 = vcmp.eq.f32.partialorder %v2315, 8.507059e+37
        %v2317 = vand.u32 %v2220, 2147483648
        %v2318 = vor.u32 1.1754944e-38, %v2317
        %v2319 = vsel %vm2316, %v2318, %v2314
        %v2320 = vmul.f32 1.0, %v2319
        %v2321 = vrcp.pop %v2221
        %v2322 = vmul.f32 %v2221, %v2321
        %v2323 = vsub.f32 1.0, %v2322
        %v2324 = vmul.f32 %v2321, %v2323
        %v2325 = vadd.f32 %v2321, %v2324
        %vm2326 = vweird.f32 %v2221
        %vm2327 = vweird.f32 %v2321
        %vm2328 = vmor %vm2326, %vm2327
        %v2329 = vsel %vm2328, %v2321, %v2325
        %v2330 = vand.u32 2147483647, %v2221
        %vm2331 = vcmp.eq.f32.partialorder %v2330, 8.507059e+37
        %v2332 = vand.u32 %v2221, 2147483648
        %v2333 = vor.u32 1.1754944e-38, %v2332
        %v2334 = vsel %vm2331, %v2333, %v2329
        %v2335 = vmul.f32 1.0, %v2334
        %v2336 = vrcp.pop %v2222
        %v2337 = vmul.f32 %v2222, %v2336
        %v2338 = vsub.f32 1.0, %v2337
        %v2339 = vmul.f32 %v2336, %v2338
        %v2340 = vadd.f32 %v2336, %v2339
        %vm2341 = vweird.f32 %v2222
        %vm2342 = vweird.f32 %v2336
        %vm2343 = vmor %vm2341, %vm2342
        %v2344 = vsel %vm2343, %v2336, %v2340
        %v2345 = vand.u32 2147483647, %v2222
        %vm2346 = vcmp.eq.f32.partialorder %v2345, 8.507059e+37
        %v2347 = vand.u32 %v2222, 2147483648
        %v2348 = vor.u32 1.1754944e-38, %v2347
        %v2349 = vsel %vm2346, %v2348, %v2344
        %v2350 = vmul.f32 1.0, %v2349
        %v2351 = vrcp.pop %v2223
        %v2352 = vmul.f32 %v2223, %v2351
        %v2353 = vsub.f32 1.0, %v2352
        %v2354 = vmul.f32 %v2351, %v2353
        %v2355 = vadd.f32 %v2351, %v2354
        %vm2356 = vweird.f32 %v2223
        %vm2357 = vweird.f32 %v2351
        %vm2358 = vmor %vm2356, %vm2357
        %v2359 = vsel %vm2358, %v2351, %v2355
        %v2360 = vand.u32 2147483647, %v2223
        %vm2361 = vcmp.eq.f32.partialorder %v2360, 8.507059e+37
        %v2362 = vand.u32 %v2223, 2147483648
        %v2363 = vor.u32 1.1754944e-38, %v2362
        %v2364 = vsel %vm2361, %v2363, %v2359
        %v2365 = vmul.f32 1.0, %v2364
        %v2366 = vrcp.pop %v2224
        %v2367 = vmul.f32 %v2224, %v2366
        %v2368 = vsub.f32 1.0, %v2367
        %v2369 = vmul.f32 %v2366, %v2368
        %v2370 = vadd.f32 %v2366, %v2369
        %vm2371 = vweird.f32 %v2224
        %vm2372 = vweird.f32 %v2366
        %vm2373 = vmor %vm2371, %vm2372
        %v2374 = vsel %vm2373, %v2366, %v2370
        %v2375 = vand.u32 2147483647, %v2224
        %vm2376 = vcmp.eq.f32.partialorder %v2375, 8.507059e+37
        %v2377 = vand.u32 %v2224, 2147483648
        %v2378 = vor.u32 1.1754944e-38, %v2377
        %v2379 = vsel %vm2376, %v2378, %v2374
        %v2380 = vmul.f32 1.0, %v2379
        %v2381 = vrcp.pop %v2225
        %v2382 = vmul.f32 %v2225, %v2381
        %v2383 = vsub.f32 1.0, %v2382
        %v2384 = vmul.f32 %v2381, %v2383
        %v2385 = vadd.f32 %v2381, %v2384
        %vm2386 = vweird.f32 %v2225
        %vm2387 = vweird.f32 %v2381
        %vm2388 = vmor %vm2386, %vm2387
        %v2389 = vsel %vm2388, %v2381, %v2385
        %v2390 = vand.u32 2147483647, %v2225
        %vm2391 = vcmp.eq.f32.partialorder %v2390, 8.507059e+37
        %v2392 = vand.u32 %v2225, 2147483648
        %v2393 = vor.u32 1.1754944e-38, %v2392
        %v2394 = vsel %vm2391, %v2393, %v2389
        %v2395 = vmul.f32 1.0, %v2394
        %v2396 = vrcp.pop %v2226
        %v2397 = vmul.f32 %v2226, %v2396
        %v2398 = vsub.f32 1.0, %v2397
        %v2399 = vmul.f32 %v2396, %v2398
        %v2400 = vadd.f32 %v2396, %v2399
        %vm2401 = vweird.f32 %v2226
        %vm2402 = vweird.f32 %v2396
        %vm2403 = vmor %vm2401, %vm2402
        %v2404 = vsel %vm2403, %v2396, %v2400
        %v2405 = vand.u32 2147483647, %v2226
        %vm2406 = vcmp.eq.f32.partialorder %v2405, 8.507059e+37
        %v2407 = vand.u32 %v2226, 2147483648
        %v2408 = vor.u32 1.1754944e-38, %v2407
        %v2409 = vsel %vm2406, %v2408, %v2404
        %v2410 = vmul.f32 1.0, %v2409
        %v2411 = vrcp.pop %v2227
        %v2412 = vmul.f32 %v2227, %v2411
        %v2413 = vsub.f32 1.0, %v2412
        %v2414 = vmul.f32 %v2411, %v2413
        %v2415 = vadd.f32 %v2411, %v2414
        %vm2416 = vweird.f32 %v2227
        %vm2417 = vweird.f32 %v2411
        %vm2418 = vmor %vm2416, %vm2417
        %v2419 = vsel %vm2418, %v2411, %v2415
        %v2420 = vand.u32 2147483647, %v2227
        %vm2421 = vcmp.eq.f32.partialorder %v2420, 8.507059e+37
        %v2422 = vand.u32 %v2227, 2147483648
        %v2423 = vor.u32 1.1754944e-38, %v2422
        %v2424 = vsel %vm2421, %v2423, %v2419
        %v2425 = vmul.f32 1.0, %v2424
        %v2426 = vrcp.pop %v2228
        %v2427 = vmul.f32 %v2228, %v2426
        %v2428 = vsub.f32 1.0, %v2427
        %v2429 = vmul.f32 %v2426, %v2428
        %v2430 = vadd.f32 %v2426, %v2429
        %vm2431 = vweird.f32 %v2228
        %vm2432 = vweird.f32 %v2426
        %vm2433 = vmor %vm2431, %vm2432
        %v2434 = vsel %vm2433, %v2426, %v2430
        %v2435 = vand.u32 2147483647, %v2228
        %vm2436 = vcmp.eq.f32.partialorder %v2435, 8.507059e+37
        %v2437 = vand.u32 %v2228, 2147483648
        %v2438 = vor.u32 1.1754944e-38, %v2437
        %v2439 = vsel %vm2436, %v2438, %v2434
        %v2440 = vmul.f32 1.0, %v2439
        %v2441 = vrcp.pop %v2229
        %v2442 = vmul.f32 %v2229, %v2441
        %v2443 = vsub.f32 1.0, %v2442
        %v2444 = vmul.f32 %v2441, %v2443
        %v2445 = vadd.f32 %v2441, %v2444
        %vm2446 = vweird.f32 %v2229
        %vm2447 = vweird.f32 %v2441
        %vm2448 = vmor %vm2446, %vm2447
        %v2449 = vsel %vm2448, %v2441, %v2445
        %v2450 = vand.u32 2147483647, %v2229
        %vm2451 = vcmp.eq.f32.partialorder %v2450, 8.507059e+37
        %v2452 = vand.u32 %v2229, 2147483648
        %v2453 = vor.u32 1.1754944e-38, %v2452
        %v2454 = vsel %vm2451, %v2453, %v2449
        %v2455 = vmul.f32 1.0, %v2454
        %v2456 = vrcp.pop %v2230
        %v2457 = vmul.f32 %v2230, %v2456
        %v2458 = vsub.f32 1.0, %v2457
        %v2459 = vmul.f32 %v2456, %v2458
        %v2460 = vadd.f32 %v2456, %v2459
        %vm2461 = vweird.f32 %v2230
        %vm2462 = vweird.f32 %v2456
        %vm2463 = vmor %vm2461, %vm2462
        %v2464 = vsel %vm2463, %v2456, %v2460
        %v2465 = vand.u32 2147483647, %v2230
        %vm2466 = vcmp.eq.f32.partialorder %v2465, 8.507059e+37
        %v2467 = vand.u32 %v2230, 2147483648
        %v2468 = vor.u32 1.1754944e-38, %v2467
        %v2469 = vsel %vm2466, %v2468, %v2464
        %v2470 = vmul.f32 1.0, %v2469
        %v2471 = vmul.f32 %v2151, %v2245
        %v2472 = vmul.f32 %v2152, %v2260
        %v2473 = vmul.f32 %v2153, %v2275
        %v2474 = vmul.f32 %v2154, %v2290
        %v2475 = vmul.f32 %v2155, %v2305
        %v2476 = vmul.f32 %v2156, %v2320
        %v2477 = vmul.f32 %v2157, %v2335
        %v2478 = vmul.f32 %v2158, %v2350
        %v2479 = vmul.f32 %v2159, %v2365
        %v2480 = vmul.f32 %v2160, %v2380
        %v2481 = vmul.f32 %v2161, %v2395
        %v2482 = vmul.f32 %v2162, %v2410
        %v2483 = vmul.f32 %v2163, %v2425
        %v2484 = vmul.f32 %v2164, %v2440
        %v2485 = vmul.f32 %v2165, %v2455
        %v2486 = vmul.f32 %v2166, %v2470
        %v2487 = vadd.f32 %v1163, 0.5
        %v2488 = vmul.f32 %v2487, %v1446
        %v2489 = vmul.f32 %v2487, %v1447
        %v2490 = vmul.f32 %v2487, %v1448
        %v2491 = vmul.f32 %v2487, %v1449
        %v2492 = vmul.f32 %v2487, %v1450
        %v2493 = vmul.f32 %v2487, %v1451
        %v2494 = vmul.f32 %v2487, %v1452
        %v2495 = vmul.f32 %v2487, %v1453
        %v2496 = vmul.f32 %v2487, %v1454
        %v2497 = vmul.f32 %v2487, %v1455
        %v2498 = vmul.f32 %v2487, %v1456
        %v2499 = vmul.f32 %v2487, %v1457
        %v2500 = vmul.f32 %v2487, %v1458
        %v2501 = vmul.f32 %v2487, %v1459
        %v2502 = vmul.f32 %v2487, %v1460
        %v2503 = vmul.f32 %v2487, %v1461
        %v2504 = vsub.f32 %v737, %v1265
        %v2505 = vsub.f32 %v738, %v1265
        %v2506 = vsub.f32 %v737, %v1268
        %v2507 = vsub.f32 %v738, %v1268
        %v2508 = vsub.f32 %v737, %v1271
        %v2509 = vsub.f32 %v738, %v1271
        %v2510 = vsub.f32 %v737, %v1274
        %v2511 = vsub.f32 %v738, %v1274
        %v2512 = vsub.f32 %v737, %v1277
        %v2513 = vsub.f32 %v738, %v1277
        %v2514 = vsub.f32 %v737, %v1280
        %v2515 = vsub.f32 %v738, %v1280
        %v2516 = vsub.f32 %v737, %v1283
        %v2517 = vsub.f32 %v738, %v1283
        %v2518 = vsub.f32 %v737, %v1286
        %v2519 = vsub.f32 %v738, %v1286
        %v2520 = vsub.f32 %v737, %v1289
        %v2521 = vsub.f32 %v738, %v1289
        %v2522 = vsub.f32 %v737, %v1292
        %v2523 = vsub.f32 %v738, %v1292
        %v2524 = vsub.f32 %v737, %v1295
        %v2525 = vsub.f32 %v738, %v1295
        %v2526 = vsub.f32 %v737, %v1298
        %v2527 = vsub.f32 %v738, %v1298
        %v2528 = vsub.f32 %v737, %v1301
        %v2529 = vsub.f32 %v738, %v1301
        %v2530 = vsub.f32 %v737, %v1304
        %v2531 = vsub.f32 %v738, %v1304
        %v2532 = vsub.f32 %v737, %v1307
        %v2533 = vsub.f32 %v738, %v1307
        %v2534 = vsub.f32 %v737, %v1310
        %v2535 = vsub.f32 %v738, %v1310
        %v2536 = vadd.f32 %v2504, 0.5
        %v2537 = vadd.f32 %v2505, 0.5
        %v2538 = vadd.f32 %v2506, 0.5
        %v2539 = vadd.f32 %v2507, 0.5
        %v2540 = vadd.f32 %v2508, 0.5
        %v2541 = vadd.f32 %v2509, 0.5
        %v2542 = vadd.f32 %v2510, 0.5
        %v2543 = vadd.f32 %v2511, 0.5
        %v2544 = vadd.f32 %v2512, 0.5
        %v2545 = vadd.f32 %v2513, 0.5
        %v2546 = vadd.f32 %v2514, 0.5
        %v2547 = vadd.f32 %v2515, 0.5
        %v2548 = vadd.f32 %v2516, 0.5
        %v2549 = vadd.f32 %v2517, 0.5
        %v2550 = vadd.f32 %v2518, 0.5
        %v2551 = vadd.f32 %v2519, 0.5
        %v2552 = vadd.f32 %v2520, 0.5
        %v2553 = vadd.f32 %v2521, 0.5
        %v2554 = vadd.f32 %v2522, 0.5
        %v2555 = vadd.f32 %v2523, 0.5
        %v2556 = vadd.f32 %v2524, 0.5
        %v2557 = vadd.f32 %v2525, 0.5
        %v2558 = vadd.f32 %v2526, 0.5
        %v2559 = vadd.f32 %v2527, 0.5
        %v2560 = vadd.f32 %v2528, 0.5
        %v2561 = vadd.f32 %v2529, 0.5
        %v2562 = vadd.f32 %v2530, 0.5
        %v2563 = vadd.f32 %v2531, 0.5
        %v2564 = vadd.f32 %v2532, 0.5
        %v2565 = vadd.f32 %v2533, 0.5
        %v2566 = vadd.f32 %v2534, 0.5
        %v2567 = vadd.f32 %v2535, 0.5
        %v2568 = vsub.f32 %v2536, %v2488
        %v2569 = vsub.f32 %v2537, %v2488
        %v2570 = vsub.f32 %v2538, %v2489
        %v2571 = vsub.f32 %v2539, %v2489
        %v2572 = vsub.f32 %v2540, %v2490
        %v2573 = vsub.f32 %v2541, %v2490
        %v2574 = vsub.f32 %v2542, %v2491
        %v2575 = vsub.f32 %v2543, %v2491
        %v2576 = vsub.f32 %v2544, %v2492
        %v2577 = vsub.f32 %v2545, %v2492
        %v2578 = vsub.f32 %v2546, %v2493
        %v2579 = vsub.f32 %v2547, %v2493
        %v2580 = vsub.f32 %v2548, %v2494
        %v2581 = vsub.f32 %v2549, %v2494
        %v2582 = vsub.f32 %v2550, %v2495
        %v2583 = vsub.f32 %v2551, %v2495
        %v2584 = vsub.f32 %v2552, %v2496
        %v2585 = vsub.f32 %v2553, %v2496
        %v2586 = vsub.f32 %v2554, %v2497
        %v2587 = vsub.f32 %v2555, %v2497
        %v2588 = vsub.f32 %v2556, %v2498
        %v2589 = vsub.f32 %v2557, %v2498
        %v2590 = vsub.f32 %v2558, %v2499
        %v2591 = vsub.f32 %v2559, %v2499
        %v2592 = vsub.f32 %v2560, %v2500
        %v2593 = vsub.f32 %v2561, %v2500
        %v2594 = vsub.f32 %v2562, %v2501
        %v2595 = vsub.f32 %v2563, %v2501
        %v2596 = vsub.f32 %v2564, %v2502
        %v2597 = vsub.f32 %v2565, %v2502
        %v2598 = vsub.f32 %v2566, %v2503
        %v2599 = vsub.f32 %v2567, %v2503
        %v2600 = vand.u32 2147483647, %v2568
        %v2601 = vand.u32 2147483647, %v2569
        %v2602 = vand.u32 2147483647, %v2570
        %v2603 = vand.u32 2147483647, %v2571
        %v2604 = vand.u32 2147483647, %v2572
        %v2605 = vand.u32 2147483647, %v2573
        %v2606 = vand.u32 2147483647, %v2574
        %v2607 = vand.u32 2147483647, %v2575
        %v2608 = vand.u32 2147483647, %v2576
        %v2609 = vand.u32 2147483647, %v2577
        %v2610 = vand.u32 2147483647, %v2578
        %v2611 = vand.u32 2147483647, %v2579
        %v2612 = vand.u32 2147483647, %v2580
        %v2613 = vand.u32 2147483647, %v2581
        %v2614 = vand.u32 2147483647, %v2582
        %v2615 = vand.u32 2147483647, %v2583
        %v2616 = vand.u32 2147483647, %v2584
        %v2617 = vand.u32 2147483647, %v2585
        %v2618 = vand.u32 2147483647, %v2586
        %v2619 = vand.u32 2147483647, %v2587
        %v2620 = vand.u32 2147483647, %v2588
        %v2621 = vand.u32 2147483647, %v2589
        %v2622 = vand.u32 2147483647, %v2590
        %v2623 = vand.u32 2147483647, %v2591
        %v2624 = vand.u32 2147483647, %v2592
        %v2625 = vand.u32 2147483647, %v2593
        %v2626 = vand.u32 2147483647, %v2594
        %v2627 = vand.u32 2147483647, %v2595
        %v2628 = vand.u32 2147483647, %v2596
        %v2629 = vand.u32 2147483647, %v2597
        %v2630 = vand.u32 2147483647, %v2598
        %v2631 = vand.u32 2147483647, %v2599
        %v2632 = vmul.f32 %v2600, %v1748
        %v2633 = vmul.f32 %v2601, %v1748
        %v2634 = vmul.f32 %v2602, %v1763
        %v2635 = vmul.f32 %v2603, %v1763
        %v2636 = vmul.f32 %v2604, %v1778
        %v2637 = vmul.f32 %v2605, %v1778
        %v2638 = vmul.f32 %v2606, %v1793
        %v2639 = vmul.f32 %v2607, %v1793
        %v2640 = vmul.f32 %v2608, %v1808
        %v2641 = vmul.f32 %v2609, %v1808
        %v2642 = vmul.f32 %v2610, %v1823
        %v2643 = vmul.f32 %v2611, %v1823
        %v2644 = vmul.f32 %v2612, %v1838
        %v2645 = vmul.f32 %v2613, %v1838
        %v2646 = vmul.f32 %v2614, %v1853
        %v2647 = vmul.f32 %v2615, %v1853
        %v2648 = vmul.f32 %v2616, %v1868
        %v2649 = vmul.f32 %v2617, %v1868
        %v2650 = vmul.f32 %v2618, %v1883
        %v2651 = vmul.f32 %v2619, %v1883
        %v2652 = vmul.f32 %v2620, %v1898
        %v2653 = vmul.f32 %v2621, %v1898
        %v2654 = vmul.f32 %v2622, %v1913
        %v2655 = vmul.f32 %v2623, %v1913
        %v2656 = vmul.f32 %v2624, %v1928
        %v2657 = vmul.f32 %v2625, %v1928
        %v2658 = vmul.f32 %v2626, %v1943
        %v2659 = vmul.f32 %v2627, %v1943
        %v2660 = vmul.f32 %v2628, %v1958
        %v2661 = vmul.f32 %v2629, %v1958
        %v2662 = vmul.f32 %v2630, %v1973
        %v2663 = vmul.f32 %v2631, %v1973
        %v2664 = vsub.f32 1.0, %v2632
        %v2665 = vsub.f32 1.0, %v2633
        %v2666 = vsub.f32 1.0, %v2634
        %v2667 = vsub.f32 1.0, %v2635
        %v2668 = vsub.f32 1.0, %v2636
        %v2669 = vsub.f32 1.0, %v2637
        %v2670 = vsub.f32 1.0, %v2638
        %v2671 = vsub.f32 1.0, %v2639
        %v2672 = vsub.f32 1.0, %v2640
        %v2673 = vsub.f32 1.0, %v2641
        %v2674 = vsub.f32 1.0, %v2642
        %v2675 = vsub.f32 1.0, %v2643
        %v2676 = vsub.f32 1.0, %v2644
        %v2677 = vsub.f32 1.0, %v2645
        %v2678 = vsub.f32 1.0, %v2646
        %v2679 = vsub.f32 1.0, %v2647
        %v2680 = vsub.f32 1.0, %v2648
        %v2681 = vsub.f32 1.0, %v2649
        %v2682 = vsub.f32 1.0, %v2650
        %v2683 = vsub.f32 1.0, %v2651
        %v2684 = vsub.f32 1.0, %v2652
        %v2685 = vsub.f32 1.0, %v2653
        %v2686 = vsub.f32 1.0, %v2654
        %v2687 = vsub.f32 1.0, %v2655
        %v2688 = vsub.f32 1.0, %v2656
        %v2689 = vsub.f32 1.0, %v2657
        %v2690 = vsub.f32 1.0, %v2658
        %v2691 = vsub.f32 1.0, %v2659
        %v2692 = vsub.f32 1.0, %v2660
        %v2693 = vsub.f32 1.0, %v2661
        %v2694 = vsub.f32 1.0, %v2662
        %v2695 = vsub.f32 1.0, %v2663
        %v2696 = vmax.f32 %v2664, 0.0
        %v2697 = vmax.f32 %v2665, 0.0
        %v2698 = vmax.f32 %v2666, 0.0
        %v2699 = vmax.f32 %v2667, 0.0
        %v2700 = vmax.f32 %v2668, 0.0
        %v2701 = vmax.f32 %v2669, 0.0
        %v2702 = vmax.f32 %v2670, 0.0
        %v2703 = vmax.f32 %v2671, 0.0
        %v2704 = vmax.f32 %v2672, 0.0
        %v2705 = vmax.f32 %v2673, 0.0
        %v2706 = vmax.f32 %v2674, 0.0
        %v2707 = vmax.f32 %v2675, 0.0
        %v2708 = vmax.f32 %v2676, 0.0
        %v2709 = vmax.f32 %v2677, 0.0
        %v2710 = vmax.f32 %v2678, 0.0
        %v2711 = vmax.f32 %v2679, 0.0
        %v2712 = vmax.f32 %v2680, 0.0
        %v2713 = vmax.f32 %v2681, 0.0
        %v2714 = vmax.f32 %v2682, 0.0
        %v2715 = vmax.f32 %v2683, 0.0
        %v2716 = vmax.f32 %v2684, 0.0
        %v2717 = vmax.f32 %v2685, 0.0
        %v2718 = vmax.f32 %v2686, 0.0
        %v2719 = vmax.f32 %v2687, 0.0
        %v2720 = vmax.f32 %v2688, 0.0
        %v2721 = vmax.f32 %v2689, 0.0
        %v2722 = vmax.f32 %v2690, 0.0
        %v2723 = vmax.f32 %v2691, 0.0
        %v2724 = vmax.f32 %v2692, 0.0
        %v2725 = vmax.f32 %v2693, 0.0
        %v2726 = vmax.f32 %v2694, 0.0
        %v2727 = vmax.f32 %v2695, 0.0
        %vm2728 = vcmp.ge.f32.partialorder %v737, %v1265
        %vm2729 = vcmp.ge.f32.partialorder %v738, %v1265
        %vm2730 = vcmp.ge.f32.partialorder %v737, %v1268
        %vm2731 = vcmp.ge.f32.partialorder %v738, %v1268
        %vm2732 = vcmp.ge.f32.partialorder %v737, %v1271
        %vm2733 = vcmp.ge.f32.partialorder %v738, %v1271
        %vm2734 = vcmp.ge.f32.partialorder %v737, %v1274
        %vm2735 = vcmp.ge.f32.partialorder %v738, %v1274
        %vm2736 = vcmp.ge.f32.partialorder %v737, %v1277
        %vm2737 = vcmp.ge.f32.partialorder %v738, %v1277
        %vm2738 = vcmp.ge.f32.partialorder %v737, %v1280
        %vm2739 = vcmp.ge.f32.partialorder %v738, %v1280
        %vm2740 = vcmp.ge.f32.partialorder %v737, %v1283
        %vm2741 = vcmp.ge.f32.partialorder %v738, %v1283
        %vm2742 = vcmp.ge.f32.partialorder %v737, %v1286
        %vm2743 = vcmp.ge.f32.partialorder %v738, %v1286
        %vm2744 = vcmp.ge.f32.partialorder %v737, %v1289
        %vm2745 = vcmp.ge.f32.partialorder %v738, %v1289
        %vm2746 = vcmp.ge.f32.partialorder %v737, %v1292
        %vm2747 = vcmp.ge.f32.partialorder %v738, %v1292
        %vm2748 = vcmp.ge.f32.partialorder %v737, %v1295
        %vm2749 = vcmp.ge.f32.partialorder %v738, %v1295
        %vm2750 = vcmp.ge.f32.partialorder %v737, %v1298
        %vm2751 = vcmp.ge.f32.partialorder %v738, %v1298
        %vm2752 = vcmp.ge.f32.partialorder %v737, %v1301
        %vm2753 = vcmp.ge.f32.partialorder %v738, %v1301
        %vm2754 = vcmp.ge.f32.partialorder %v737, %v1304
        %vm2755 = vcmp.ge.f32.partialorder %v738, %v1304
        %vm2756 = vcmp.ge.f32.partialorder %v737, %v1307
        %vm2757 = vcmp.ge.f32.partialorder %v738, %v1307
        %vm2758 = vcmp.ge.f32.partialorder %v737, %v1310
        %vm2759 = vcmp.ge.f32.partialorder %v738, %v1310
        %vm2760 = vcmp.le.f32.partialorder %v737, %v1313
        %vm2761 = vcmp.le.f32.partialorder %v738, %v1313
        %vm2762 = vcmp.le.f32.partialorder %v737, %v1316
        %vm2763 = vcmp.le.f32.partialorder %v738, %v1316
        %vm2764 = vcmp.le.f32.partialorder %v737, %v1319
        %vm2765 = vcmp.le.f32.partialorder %v738, %v1319
        %vm2766 = vcmp.le.f32.partialorder %v737, %v1322
        %vm2767 = vcmp.le.f32.partialorder %v738, %v1322
        %vm2768 = vcmp.le.f32.partialorder %v737, %v1325
        %vm2769 = vcmp.le.f32.partialorder %v738, %v1325
        %vm2770 = vcmp.le.f32.partialorder %v737, %v1328
        %vm2771 = vcmp.le.f32.partialorder %v738, %v1328
        %vm2772 = vcmp.le.f32.partialorder %v737, %v1331
        %vm2773 = vcmp.le.f32.partialorder %v738, %v1331
        %vm2774 = vcmp.le.f32.partialorder %v737, %v1334
        %vm2775 = vcmp.le.f32.partialorder %v738, %v1334
        %vm2776 = vcmp.le.f32.partialorder %v737, %v1337
        %vm2777 = vcmp.le.f32.partialorder %v738, %v1337
        %vm2778 = vcmp.le.f32.partialorder %v737, %v1340
        %vm2779 = vcmp.le.f32.partialorder %v738, %v1340
        %vm2780 = vcmp.le.f32.partialorder %v737, %v1343
        %vm2781 = vcmp.le.f32.partialorder %v738, %v1343
        %vm2782 = vcmp.le.f32.partialorder %v737, %v1346
        %vm2783 = vcmp.le.f32.partialorder %v738, %v1346
        %vm2784 = vcmp.le.f32.partialorder %v737, %v1349
        %vm2785 = vcmp.le.f32.partialorder %v738, %v1349
        %vm2786 = vcmp.le.f32.partialorder %v737, %v1352
        %vm2787 = vcmp.le.f32.partialorder %v738, %v1352
        %vm2788 = vcmp.le.f32.partialorder %v737, %v1355
        %vm2789 = vcmp.le.f32.partialorder %v738, %v1355
        %vm2790 = vcmp.le.f32.partialorder %v737, %v1358
        %vm2791 = vcmp.le.f32.partialorder %v738, %v1358
        %vm2792 = vmand %vm2728, %vm2760
        %vm2793 = vmand %vm2729, %vm2761
        %vm2794 = vmand %vm2730, %vm2762
        %vm2795 = vmand %vm2731, %vm2763
        %vm2796 = vmand %vm2732, %vm2764
        %vm2797 = vmand %vm2733, %vm2765
        %vm2798 = vmand %vm2734, %vm2766
        %vm2799 = vmand %vm2735, %vm2767
        %vm2800 = vmand %vm2736, %vm2768
        %vm2801 = vmand %vm2737, %vm2769
        %vm2802 = vmand %vm2738, %vm2770
        %vm2803 = vmand %vm2739, %vm2771
        %vm2804 = vmand %vm2740, %vm2772
        %vm2805 = vmand %vm2741, %vm2773
        %vm2806 = vmand %vm2742, %vm2774
        %vm2807 = vmand %vm2743, %vm2775
        %vm2808 = vmand %vm2744, %vm2776
        %vm2809 = vmand %vm2745, %vm2777
        %vm2810 = vmand %vm2746, %vm2778
        %vm2811 = vmand %vm2747, %vm2779
        %vm2812 = vmand %vm2748, %vm2780
        %vm2813 = vmand %vm2749, %vm2781
        %vm2814 = vmand %vm2750, %vm2782
        %vm2815 = vmand %vm2751, %vm2783
        %vm2816 = vmand %vm2752, %vm2784
        %vm2817 = vmand %vm2753, %vm2785
        %vm2818 = vmand %vm2754, %vm2786
        %vm2819 = vmand %vm2755, %vm2787
        %vm2820 = vmand %vm2756, %vm2788
        %vm2821 = vmand %vm2757, %vm2789
        %vm2822 = vmand %vm2758, %vm2790
        %vm2823 = vmand %vm2759, %vm2791
        %v2824 = vsel %vm2792, %v2696, 0.0
        %v2825 = vsel %vm2793, %v2697, 0.0
        %v2826 = vsel %vm2794, %v2698, 0.0
        %v2827 = vsel %vm2795, %v2699, 0.0
        %v2828 = vsel %vm2796, %v2700, 0.0
        %v2829 = vsel %vm2797, %v2701, 0.0
        %v2830 = vsel %vm2798, %v2702, 0.0
        %v2831 = vsel %vm2799, %v2703, 0.0
        %v2832 = vsel %vm2800, %v2704, 0.0
        %v2833 = vsel %vm2801, %v2705, 0.0
        %v2834 = vsel %vm2802, %v2706, 0.0
        %v2835 = vsel %vm2803, %v2707, 0.0
        %v2836 = vsel %vm2804, %v2708, 0.0
        %v2837 = vsel %vm2805, %v2709, 0.0
        %v2838 = vsel %vm2806, %v2710, 0.0
        %v2839 = vsel %vm2807, %v2711, 0.0
        %v2840 = vsel %vm2808, %v2712, 0.0
        %v2841 = vsel %vm2809, %v2713, 0.0
        %v2842 = vsel %vm2810, %v2714, 0.0
        %v2843 = vsel %vm2811, %v2715, 0.0
        %v2844 = vsel %vm2812, %v2716, 0.0
        %v2845 = vsel %vm2813, %v2717, 0.0
        %v2846 = vsel %vm2814, %v2718, 0.0
        %v2847 = vsel %vm2815, %v2719, 0.0
        %v2848 = vsel %vm2816, %v2720, 0.0
        %v2849 = vsel %vm2817, %v2721, 0.0
        %v2850 = vsel %vm2818, %v2722, 0.0
        %v2851 = vsel %vm2819, %v2723, 0.0
        %v2852 = vsel %vm2820, %v2724, 0.0
        %v2853 = vsel %vm2821, %v2725, 0.0
        %v2854 = vsel %vm2822, %v2726, 0.0
        %v2855 = vsel %vm2823, %v2727, 0.0
        %vm2856 = vcmask 64512
        %v2857 = vsel %vm2856, %v2824, 0.0
        %v2858 = vsel %vm2856, %v2825, 0.0
        %v2859 = vadd.f32 %v2857, %v2858
        %v2860 = vrot.slane %v2859, 4
        %v2861 = vadd.f32 %v2859, %v2860
        %v2862 = vrot.slane %v2861, 2
        %v2863 = vadd.f32 %v2861, %v2862
        %v2864 = vrot.slane %v2863, 1
        %v2865 = vadd.f32 %v2863, %v2864
        %v2866 = vsel %vm2856, %v2826, 0.0
        %v2867 = vsel %vm2856, %v2827, 0.0
        %v2868 = vadd.f32 %v2866, %v2867
        %v2869 = vrot.slane %v2868, 4
        %v2870 = vadd.f32 %v2868, %v2869
        %v2871 = vrot.slane %v2870, 2
        %v2872 = vadd.f32 %v2870, %v2871
        %v2873 = vrot.slane %v2872, 1
        %v2874 = vadd.f32 %v2872, %v2873
        %v2875 = vsel %vm2856, %v2828, 0.0
        %v2876 = vsel %vm2856, %v2829, 0.0
        %v2877 = vadd.f32 %v2875, %v2876
        %v2878 = vrot.slane %v2877, 4
        %v2879 = vadd.f32 %v2877, %v2878
        %v2880 = vrot.slane %v2879, 2
        %v2881 = vadd.f32 %v2879, %v2880
        %v2882 = vrot.slane %v2881, 1
        %v2883 = vadd.f32 %v2881, %v2882
        %v2884 = vsel %vm2856, %v2830, 0.0
        %v2885 = vsel %vm2856, %v2831, 0.0
        %v2886 = vadd.f32 %v2884, %v2885
        %v2887 = vrot.slane %v2886, 4
        %v2888 = vadd.f32 %v2886, %v2887
        %v2889 = vrot.slane %v2888, 2
        %v2890 = vadd.f32 %v2888, %v2889
        %v2891 = vrot.slane %v2890, 1
        %v2892 = vadd.f32 %v2890, %v2891
        %v2893 = vsel %vm2856, %v2832, 0.0
        %v2894 = vsel %vm2856, %v2833, 0.0
        %v2895 = vadd.f32 %v2893, %v2894
        %v2896 = vrot.slane %v2895, 4
        %v2897 = vadd.f32 %v2895, %v2896
        %v2898 = vrot.slane %v2897, 2
        %v2899 = vadd.f32 %v2897, %v2898
        %v2900 = vrot.slane %v2899, 1
        %v2901 = vadd.f32 %v2899, %v2900
        %v2902 = vsel %vm2856, %v2834, 0.0
        %v2903 = vsel %vm2856, %v2835, 0.0
        %v2904 = vadd.f32 %v2902, %v2903
        %v2905 = vrot.slane %v2904, 4
        %v2906 = vadd.f32 %v2904, %v2905
        %v2907 = vrot.slane %v2906, 2
        %v2908 = vadd.f32 %v2906, %v2907
        %v2909 = vrot.slane %v2908, 1
        %v2910 = vadd.f32 %v2908, %v2909
        %v2911 = vsel %vm2856, %v2836, 0.0
        %v2912 = vsel %vm2856, %v2837, 0.0
        %v2913 = vadd.f32 %v2911, %v2912
        %v2914 = vrot.slane %v2913, 4
        %v2915 = vadd.f32 %v2913, %v2914
        %v2916 = vrot.slane %v2915, 2
        %v2917 = vadd.f32 %v2915, %v2916
        %v2918 = vrot.slane %v2917, 1
        %v2919 = vadd.f32 %v2917, %v2918
        %v2920 = vsel %vm2856, %v2838, 0.0
        %v2921 = vsel %vm2856, %v2839, 0.0
        %v2922 = vadd.f32 %v2920, %v2921
        %v2923 = vrot.slane %v2922, 4
        %v2924 = vadd.f32 %v2922, %v2923
        %v2925 = vrot.slane %v2924, 2
        %v2926 = vadd.f32 %v2924, %v2925
        %v2927 = vrot.slane %v2926, 1
        %v2928 = vadd.f32 %v2926, %v2927
        %v2929 = vsel %vm2856, %v2840, 0.0
        %v2930 = vsel %vm2856, %v2841, 0.0
        %v2931 = vadd.f32 %v2929, %v2930
        %v2932 = vrot.slane %v2931, 4
        %v2933 = vadd.f32 %v2931, %v2932
        %v2934 = vrot.slane %v2933, 2
        %v2935 = vadd.f32 %v2933, %v2934
        %v2936 = vrot.slane %v2935, 1
        %v2937 = vadd.f32 %v2935, %v2936
        %v2938 = vsel %vm2856, %v2842, 0.0
        %v2939 = vsel %vm2856, %v2843, 0.0
        %v2940 = vadd.f32 %v2938, %v2939
        %v2941 = vrot.slane %v2940, 4
        %v2942 = vadd.f32 %v2940, %v2941
        %v2943 = vrot.slane %v2942, 2
        %v2944 = vadd.f32 %v2942, %v2943
        %v2945 = vrot.slane %v2944, 1
        %v2946 = vadd.f32 %v2944, %v2945
        %v2947 = vsel %vm2856, %v2844, 0.0
        %v2948 = vsel %vm2856, %v2845, 0.0
        %v2949 = vadd.f32 %v2947, %v2948
        %v2950 = vrot.slane %v2949, 4
        %v2951 = vadd.f32 %v2949, %v2950
        %v2952 = vrot.slane %v2951, 2
        %v2953 = vadd.f32 %v2951, %v2952
        %v2954 = vrot.slane %v2953, 1
        %v2955 = vadd.f32 %v2953, %v2954
        %v2956 = vsel %vm2856, %v2846, 0.0
        %v2957 = vsel %vm2856, %v2847, 0.0
        %v2958 = vadd.f32 %v2956, %v2957
        %v2959 = vrot.slane %v2958, 4
        %v2960 = vadd.f32 %v2958, %v2959
        %v2961 = vrot.slane %v2960, 2
        %v2962 = vadd.f32 %v2960, %v2961
        %v2963 = vrot.slane %v2962, 1
        %v2964 = vadd.f32 %v2962, %v2963
        %v2965 = vsel %vm2856, %v2848, 0.0
        %v2966 = vsel %vm2856, %v2849, 0.0
        %v2967 = vadd.f32 %v2965, %v2966
        %v2968 = vrot.slane %v2967, 4
        %v2969 = vadd.f32 %v2967, %v2968
        %v2970 = vrot.slane %v2969, 2
        %v2971 = vadd.f32 %v2969, %v2970
        %v2972 = vrot.slane %v2971, 1
        %v2973 = vadd.f32 %v2971, %v2972
        %v2974 = vsel %vm2856, %v2850, 0.0
        %v2975 = vsel %vm2856, %v2851, 0.0
        %v2976 = vadd.f32 %v2974, %v2975
        %v2977 = vrot.slane %v2976, 4
        %v2978 = vadd.f32 %v2976, %v2977
        %v2979 = vrot.slane %v2978, 2
        %v2980 = vadd.f32 %v2978, %v2979
        %v2981 = vrot.slane %v2980, 1
        %v2982 = vadd.f32 %v2980, %v2981
        %v2983 = vsel %vm2856, %v2852, 0.0
        %v2984 = vsel %vm2856, %v2853, 0.0
        %v2985 = vadd.f32 %v2983, %v2984
        %v2986 = vrot.slane %v2985, 4
        %v2987 = vadd.f32 %v2985, %v2986
        %v2988 = vrot.slane %v2987, 2
        %v2989 = vadd.f32 %v2987, %v2988
        %v2990 = vrot.slane %v2989, 1
        %v2991 = vadd.f32 %v2989, %v2990
        %v2992 = vsel %vm2856, %v2854, 0.0
        %v2993 = vsel %vm2856, %v2855, 0.0
        %v2994 = vadd.f32 %v2992, %v2993
        %v2995 = vrot.slane %v2994, 4
        %v2996 = vadd.f32 %v2994, %v2995
        %v2997 = vrot.slane %v2996, 2
        %v2998 = vadd.f32 %v2996, %v2997
        %v2999 = vrot.slane %v2998, 1
        %v3000 = vadd.f32 %v2998, %v2999
        %v3001 = vmax.f32 %v2865, 1e-12
        %v3002 = vmax.f32 %v2874, 1e-12
        %v3003 = vmax.f32 %v2883, 1e-12
        %v3004 = vmax.f32 %v2892, 1e-12
        %v3005 = vmax.f32 %v2901, 1e-12
        %v3006 = vmax.f32 %v2910, 1e-12
        %v3007 = vmax.f32 %v2919, 1e-12
        %v3008 = vmax.f32 %v2928, 1e-12
        %v3009 = vmax.f32 %v2937, 1e-12
        %v3010 = vmax.f32 %v2946, 1e-12
        %v3011 = vmax.f32 %v2955, 1e-12
        %v3012 = vmax.f32 %v2964, 1e-12
        %v3013 = vmax.f32 %v2973, 1e-12
        %v3014 = vmax.f32 %v2982, 1e-12
        %v3015 = vmax.f32 %v2991, 1e-12
        %v3016 = vmax.f32 %v3000, 1e-12
        %v3017 = vrcp.pop %v3001
        %v3018 = vmul.f32 %v3001, %v3017
        %v3019 = vsub.f32 1.0, %v3018
        %v3020 = vmul.f32 %v3017, %v3019
        %v3021 = vadd.f32 %v3017, %v3020
        %vm3022 = vweird.f32 %v3001
        %vm3023 = vweird.f32 %v3017
        %vm3024 = vmor %vm3022, %vm3023
        %v3025 = vsel %vm3024, %v3017, %v3021
        %v3026 = vand.u32 2147483647, %v3001
        %vm3027 = vcmp.eq.f32.partialorder %v3026, 8.507059e+37
        %v3028 = vand.u32 %v3001, 2147483648
        %v3029 = vor.u32 1.1754944e-38, %v3028
        %v3030 = vsel %vm3027, %v3029, %v3025
        %v3031 = vmul.f32 1.0, %v3030
        %v3032 = vrcp.pop %v3002
        %v3033 = vmul.f32 %v3002, %v3032
        %v3034 = vsub.f32 1.0, %v3033
        %v3035 = vmul.f32 %v3032, %v3034
        %v3036 = vadd.f32 %v3032, %v3035
        %vm3037 = vweird.f32 %v3002
        %vm3038 = vweird.f32 %v3032
        %vm3039 = vmor %vm3037, %vm3038
        %v3040 = vsel %vm3039, %v3032, %v3036
        %v3041 = vand.u32 2147483647, %v3002
        %vm3042 = vcmp.eq.f32.partialorder %v3041, 8.507059e+37
        %v3043 = vand.u32 %v3002, 2147483648
        %v3044 = vor.u32 1.1754944e-38, %v3043
        %v3045 = vsel %vm3042, %v3044, %v3040
        %v3046 = vmul.f32 1.0, %v3045
        %v3047 = vrcp.pop %v3003
        %v3048 = vmul.f32 %v3003, %v3047
        %v3049 = vsub.f32 1.0, %v3048
        %v3050 = vmul.f32 %v3047, %v3049
        %v3051 = vadd.f32 %v3047, %v3050
        %vm3052 = vweird.f32 %v3003
        %vm3053 = vweird.f32 %v3047
        %vm3054 = vmor %vm3052, %vm3053
        %v3055 = vsel %vm3054, %v3047, %v3051
        %v3056 = vand.u32 2147483647, %v3003
        %vm3057 = vcmp.eq.f32.partialorder %v3056, 8.507059e+37
        %v3058 = vand.u32 %v3003, 2147483648
        %v3059 = vor.u32 1.1754944e-38, %v3058
        %v3060 = vsel %vm3057, %v3059, %v3055
        %v3061 = vmul.f32 1.0, %v3060
        %v3062 = vrcp.pop %v3004
        %v3063 = vmul.f32 %v3004, %v3062
        %v3064 = vsub.f32 1.0, %v3063
        %v3065 = vmul.f32 %v3062, %v3064
        %v3066 = vadd.f32 %v3062, %v3065
        %vm3067 = vweird.f32 %v3004
        %vm3068 = vweird.f32 %v3062
        %vm3069 = vmor %vm3067, %vm3068
        %v3070 = vsel %vm3069, %v3062, %v3066
        %v3071 = vand.u32 2147483647, %v3004
        %vm3072 = vcmp.eq.f32.partialorder %v3071, 8.507059e+37
        %v3073 = vand.u32 %v3004, 2147483648
        %v3074 = vor.u32 1.1754944e-38, %v3073
        %v3075 = vsel %vm3072, %v3074, %v3070
        %v3076 = vmul.f32 1.0, %v3075
        %v3077 = vrcp.pop %v3005
        %v3078 = vmul.f32 %v3005, %v3077
        %v3079 = vsub.f32 1.0, %v3078
        %v3080 = vmul.f32 %v3077, %v3079
        %v3081 = vadd.f32 %v3077, %v3080
        %vm3082 = vweird.f32 %v3005
        %vm3083 = vweird.f32 %v3077
        %vm3084 = vmor %vm3082, %vm3083
        %v3085 = vsel %vm3084, %v3077, %v3081
        %v3086 = vand.u32 2147483647, %v3005
        %vm3087 = vcmp.eq.f32.partialorder %v3086, 8.507059e+37
        %v3088 = vand.u32 %v3005, 2147483648
        %v3089 = vor.u32 1.1754944e-38, %v3088
        %v3090 = vsel %vm3087, %v3089, %v3085
        %v3091 = vmul.f32 1.0, %v3090
        %v3092 = vrcp.pop %v3006
        %v3093 = vmul.f32 %v3006, %v3092
        %v3094 = vsub.f32 1.0, %v3093
        %v3095 = vmul.f32 %v3092, %v3094
        %v3096 = vadd.f32 %v3092, %v3095
        %vm3097 = vweird.f32 %v3006
        %vm3098 = vweird.f32 %v3092
        %vm3099 = vmor %vm3097, %vm3098
        %v3100 = vsel %vm3099, %v3092, %v3096
        %v3101 = vand.u32 2147483647, %v3006
        %vm3102 = vcmp.eq.f32.partialorder %v3101, 8.507059e+37
        %v3103 = vand.u32 %v3006, 2147483648
        %v3104 = vor.u32 1.1754944e-38, %v3103
        %v3105 = vsel %vm3102, %v3104, %v3100
        %v3106 = vmul.f32 1.0, %v3105
        %v3107 = vrcp.pop %v3007
        %v3108 = vmul.f32 %v3007, %v3107
        %v3109 = vsub.f32 1.0, %v3108
        %v3110 = vmul.f32 %v3107, %v3109
        %v3111 = vadd.f32 %v3107, %v3110
        %vm3112 = vweird.f32 %v3007
        %vm3113 = vweird.f32 %v3107
        %vm3114 = vmor %vm3112, %vm3113
        %v3115 = vsel %vm3114, %v3107, %v3111
        %v3116 = vand.u32 2147483647, %v3007
        %vm3117 = vcmp.eq.f32.partialorder %v3116, 8.507059e+37
        %v3118 = vand.u32 %v3007, 2147483648
        %v3119 = vor.u32 1.1754944e-38, %v3118
        %v3120 = vsel %vm3117, %v3119, %v3115
        %v3121 = vmul.f32 1.0, %v3120
        %v3122 = vrcp.pop %v3008
        %v3123 = vmul.f32 %v3008, %v3122
        %v3124 = vsub.f32 1.0, %v3123
        %v3125 = vmul.f32 %v3122, %v3124
        %v3126 = vadd.f32 %v3122, %v3125
        %vm3127 = vweird.f32 %v3008
        %vm3128 = vweird.f32 %v3122
        %vm3129 = vmor %vm3127, %vm3128
        %v3130 = vsel %vm3129, %v3122, %v3126
        %v3131 = vand.u32 2147483647, %v3008
        %vm3132 = vcmp.eq.f32.partialorder %v3131, 8.507059e+37
        %v3133 = vand.u32 %v3008, 2147483648
        %v3134 = vor.u32 1.1754944e-38, %v3133
        %v3135 = vsel %vm3132, %v3134, %v3130
        %v3136 = vmul.f32 1.0, %v3135
        %v3137 = vrcp.pop %v3009
        %v3138 = vmul.f32 %v3009, %v3137
        %v3139 = vsub.f32 1.0, %v3138
        %v3140 = vmul.f32 %v3137, %v3139
        %v3141 = vadd.f32 %v3137, %v3140
        %vm3142 = vweird.f32 %v3009
        %vm3143 = vweird.f32 %v3137
        %vm3144 = vmor %vm3142, %vm3143
        %v3145 = vsel %vm3144, %v3137, %v3141
        %v3146 = vand.u32 2147483647, %v3009
        %vm3147 = vcmp.eq.f32.partialorder %v3146, 8.507059e+37
        %v3148 = vand.u32 %v3009, 2147483648
        %v3149 = vor.u32 1.1754944e-38, %v3148
        %v3150 = vsel %vm3147, %v3149, %v3145
        %v3151 = vmul.f32 1.0, %v3150
        %v3152 = vrcp.pop %v3010
        %v3153 = vmul.f32 %v3010, %v3152
        %v3154 = vsub.f32 1.0, %v3153
        %v3155 = vmul.f32 %v3152, %v3154
        %v3156 = vadd.f32 %v3152, %v3155
        %vm3157 = vweird.f32 %v3010
        %vm3158 = vweird.f32 %v3152
        %vm3159 = vmor %vm3157, %vm3158
        %v3160 = vsel %vm3159, %v3152, %v3156
        %v3161 = vand.u32 2147483647, %v3010
        %vm3162 = vcmp.eq.f32.partialorder %v3161, 8.507059e+37
        %v3163 = vand.u32 %v3010, 2147483648
        %v3164 = vor.u32 1.1754944e-38, %v3163
        %v3165 = vsel %vm3162, %v3164, %v3160
        %v3166 = vmul.f32 1.0, %v3165
        %v3167 = vrcp.pop %v3011
        %v3168 = vmul.f32 %v3011, %v3167
        %v3169 = vsub.f32 1.0, %v3168
        %v3170 = vmul.f32 %v3167, %v3169
        %v3171 = vadd.f32 %v3167, %v3170
        %vm3172 = vweird.f32 %v3011
        %vm3173 = vweird.f32 %v3167
        %vm3174 = vmor %vm3172, %vm3173
        %v3175 = vsel %vm3174, %v3167, %v3171
        %v3176 = vand.u32 2147483647, %v3011
        %vm3177 = vcmp.eq.f32.partialorder %v3176, 8.507059e+37
        %v3178 = vand.u32 %v3011, 2147483648
        %v3179 = vor.u32 1.1754944e-38, %v3178
        %v3180 = vsel %vm3177, %v3179, %v3175
        %v3181 = vmul.f32 1.0, %v3180
        %v3182 = vrcp.pop %v3012
        %v3183 = vmul.f32 %v3012, %v3182
        %v3184 = vsub.f32 1.0, %v3183
        %v3185 = vmul.f32 %v3182, %v3184
        %v3186 = vadd.f32 %v3182, %v3185
        %vm3187 = vweird.f32 %v3012
        %vm3188 = vweird.f32 %v3182
        %vm3189 = vmor %vm3187, %vm3188
        %v3190 = vsel %vm3189, %v3182, %v3186
        %v3191 = vand.u32 2147483647, %v3012
        %vm3192 = vcmp.eq.f32.partialorder %v3191, 8.507059e+37
        %v3193 = vand.u32 %v3012, 2147483648
        %v3194 = vor.u32 1.1754944e-38, %v3193
        %v3195 = vsel %vm3192, %v3194, %v3190
        %v3196 = vmul.f32 1.0, %v3195
        %v3197 = vrcp.pop %v3013
        %v3198 = vmul.f32 %v3013, %v3197
        %v3199 = vsub.f32 1.0, %v3198
        %v3200 = vmul.f32 %v3197, %v3199
        %v3201 = vadd.f32 %v3197, %v3200
        %vm3202 = vweird.f32 %v3013
        %vm3203 = vweird.f32 %v3197
        %vm3204 = vmor %vm3202, %vm3203
        %v3205 = vsel %vm3204, %v3197, %v3201
        %v3206 = vand.u32 2147483647, %v3013
        %vm3207 = vcmp.eq.f32.partialorder %v3206, 8.507059e+37
        %v3208 = vand.u32 %v3013, 2147483648
        %v3209 = vor.u32 1.1754944e-38, %v3208
        %v3210 = vsel %vm3207, %v3209, %v3205
        %v3211 = vmul.f32 1.0, %v3210
        %v3212 = vrcp.pop %v3014
        %v3213 = vmul.f32 %v3014, %v3212
        %v3214 = vsub.f32 1.0, %v3213
        %v3215 = vmul.f32 %v3212, %v3214
        %v3216 = vadd.f32 %v3212, %v3215
        %vm3217 = vweird.f32 %v3014
        %vm3218 = vweird.f32 %v3212
        %vm3219 = vmor %vm3217, %vm3218
        %v3220 = vsel %vm3219, %v3212, %v3216
        %v3221 = vand.u32 2147483647, %v3014
        %vm3222 = vcmp.eq.f32.partialorder %v3221, 8.507059e+37
        %v3223 = vand.u32 %v3014, 2147483648
        %v3224 = vor.u32 1.1754944e-38, %v3223
        %v3225 = vsel %vm3222, %v3224, %v3220
        %v3226 = vmul.f32 1.0, %v3225
        %v3227 = vrcp.pop %v3015
        %v3228 = vmul.f32 %v3015, %v3227
        %v3229 = vsub.f32 1.0, %v3228
        %v3230 = vmul.f32 %v3227, %v3229
        %v3231 = vadd.f32 %v3227, %v3230
        %vm3232 = vweird.f32 %v3015
        %vm3233 = vweird.f32 %v3227
        %vm3234 = vmor %vm3232, %vm3233
        %v3235 = vsel %vm3234, %v3227, %v3231
        %v3236 = vand.u32 2147483647, %v3015
        %vm3237 = vcmp.eq.f32.partialorder %v3236, 8.507059e+37
        %v3238 = vand.u32 %v3015, 2147483648
        %v3239 = vor.u32 1.1754944e-38, %v3238
        %v3240 = vsel %vm3237, %v3239, %v3235
        %v3241 = vmul.f32 1.0, %v3240
        %v3242 = vrcp.pop %v3016
        %v3243 = vmul.f32 %v3016, %v3242
        %v3244 = vsub.f32 1.0, %v3243
        %v3245 = vmul.f32 %v3242, %v3244
        %v3246 = vadd.f32 %v3242, %v3245
        %vm3247 = vweird.f32 %v3016
        %vm3248 = vweird.f32 %v3242
        %vm3249 = vmor %vm3247, %vm3248
        %v3250 = vsel %vm3249, %v3242, %v3246
        %v3251 = vand.u32 2147483647, %v3016
        %vm3252 = vcmp.eq.f32.partialorder %v3251, 8.507059e+37
        %v3253 = vand.u32 %v3016, 2147483648
        %v3254 = vor.u32 1.1754944e-38, %v3253
        %v3255 = vsel %vm3252, %v3254, %v3250
        %v3256 = vmul.f32 1.0, %v3255
        %v3257 = vmul.f32 %v2824, %v3031
        %v3258 = vmul.f32 %v2825, %v3031
        %v3259 = vmul.f32 %v2826, %v3046
        %v3260 = vmul.f32 %v2827, %v3046
        %v3261 = vmul.f32 %v2828, %v3061
        %v3262 = vmul.f32 %v2829, %v3061
        %v3263 = vmul.f32 %v2830, %v3076
        %v3264 = vmul.f32 %v2831, %v3076
        %v3265 = vmul.f32 %v2832, %v3091
        %v3266 = vmul.f32 %v2833, %v3091
        %v3267 = vmul.f32 %v2834, %v3106
        %v3268 = vmul.f32 %v2835, %v3106
        %v3269 = vmul.f32 %v2836, %v3121
        %v3270 = vmul.f32 %v2837, %v3121
        %v3271 = vmul.f32 %v2838, %v3136
        %v3272 = vmul.f32 %v2839, %v3136
        %v3273 = vmul.f32 %v2840, %v3151
        %v3274 = vmul.f32 %v2841, %v3151
        %v3275 = vmul.f32 %v2842, %v3166
        %v3276 = vmul.f32 %v2843, %v3166
        %v3277 = vmul.f32 %v2844, %v3181
        %v3278 = vmul.f32 %v2845, %v3181
        %v3279 = vmul.f32 %v2846, %v3196
        %v3280 = vmul.f32 %v2847, %v3196
        %v3281 = vmul.f32 %v2848, %v3211
        %v3282 = vmul.f32 %v2849, %v3211
        %v3283 = vmul.f32 %v2850, %v3226
        %v3284 = vmul.f32 %v2851, %v3226
        %v3285 = vmul.f32 %v2852, %v3241
        %v3286 = vmul.f32 %v2853, %v3241
        %v3287 = vmul.f32 %v2854, %v3256
        %v3288 = vmul.f32 %v2855, %v3256
        %v3290 = vsel %vm189, %v2471, 0
        %3292 = vmatpush.msra.mxu0 0.0
        %3293 = vmatpush.msra.mxu0 0.0
        %3294 = vmatpush.msra.mxu0 0.0
        %3295 = vmatpush.msra.mxu0 0.0
        %3296 = vmatpush.msra.mxu0 0.0
        %3297 = vmatpush.msra.mxu0 0.0
        %3298 = vmatpush.msra.mxu0 0.0
        %3299 = vmatpush.msra.mxu0 0.0
        %3300 = vmatpush.msra.mxu0 0.0
        %3301 = vmatpush.msra.mxu0 0.0
        %3302 = vmatpush.msra.mxu0 0.0
        %3303 = vmatpush.msra.mxu0 0.0
        %3304 = vmatpush.msra.mxu0 0.0
        %3305 = vmatpush.msra.mxu0 0.0
        %3306 = vmatpush.msra.mxu0 %v158
        %3307 = vmatpush.msra.mxu0 %v157
        %3308 = vmatmul.f32.gmra.mxu0 %v3290
        %v3309 = vpop.f32.mrf.mxu0
        %v3310 = vadd.f32 0.0, %v3309
        %3311 = vdwg.mxu0
        %v3313 = vsel %vm189, %v2472, 0
        %3315 = vmatpush.msra.mxu0 0.0
        %3316 = vmatpush.msra.mxu0 0.0
        %3317 = vmatpush.msra.mxu0 0.0
        %3318 = vmatpush.msra.mxu0 0.0
        %3319 = vmatpush.msra.mxu0 0.0
        %3320 = vmatpush.msra.mxu0 0.0
        %3321 = vmatpush.msra.mxu0 0.0
        %3322 = vmatpush.msra.mxu0 0.0
        %3323 = vmatpush.msra.mxu0 0.0
        %3324 = vmatpush.msra.mxu0 0.0
        %3325 = vmatpush.msra.mxu0 0.0
        %3326 = vmatpush.msra.mxu0 0.0
        %3327 = vmatpush.msra.mxu0 0.0
        %3328 = vmatpush.msra.mxu0 0.0
        %3329 = vmatpush.msra.mxu0 %v160
        %3330 = vmatpush.msra.mxu0 %v159
        %3331 = vmatmul.f32.gmra.mxu0 %v3313
        %v3332 = vpop.f32.mrf.mxu0
        %v3333 = vadd.f32 0.0, %v3332
        %3334 = vdwg.mxu0
        %v3336 = vsel %vm189, %v2473, 0
        %3338 = vmatpush.msra.mxu0 0.0
        %3339 = vmatpush.msra.mxu0 0.0
        %3340 = vmatpush.msra.mxu0 0.0
        %3341 = vmatpush.msra.mxu0 0.0
        %3342 = vmatpush.msra.mxu0 0.0
        %3343 = vmatpush.msra.mxu0 0.0
        %3344 = vmatpush.msra.mxu0 0.0
        %3345 = vmatpush.msra.mxu0 0.0
        %3346 = vmatpush.msra.mxu0 0.0
        %3347 = vmatpush.msra.mxu0 0.0
        %3348 = vmatpush.msra.mxu0 0.0
        %3349 = vmatpush.msra.mxu0 0.0
        %3350 = vmatpush.msra.mxu0 0.0
        %3351 = vmatpush.msra.mxu0 0.0
        %3352 = vmatpush.msra.mxu0 %v162
        %3353 = vmatpush.msra.mxu0 %v161
        %3354 = vmatmul.f32.gmra.mxu0 %v3336
        %v3355 = vpop.f32.mrf.mxu0
        %v3356 = vadd.f32 0.0, %v3355
        %3357 = vdwg.mxu0
        %v3359 = vsel %vm189, %v2474, 0
        %3361 = vmatpush.msra.mxu0 0.0
        %3362 = vmatpush.msra.mxu0 0.0
        %3363 = vmatpush.msra.mxu0 0.0
        %3364 = vmatpush.msra.mxu0 0.0
        %3365 = vmatpush.msra.mxu0 0.0
        %3366 = vmatpush.msra.mxu0 0.0
        %3367 = vmatpush.msra.mxu0 0.0
        %3368 = vmatpush.msra.mxu0 0.0
        %3369 = vmatpush.msra.mxu0 0.0
        %3370 = vmatpush.msra.mxu0 0.0
        %3371 = vmatpush.msra.mxu0 0.0
        %3372 = vmatpush.msra.mxu0 0.0
        %3373 = vmatpush.msra.mxu0 0.0
        %3374 = vmatpush.msra.mxu0 0.0
        %3375 = vmatpush.msra.mxu0 %v164
        %3376 = vmatpush.msra.mxu0 %v163
        %3377 = vmatmul.f32.gmra.mxu0 %v3359
        %v3378 = vpop.f32.mrf.mxu0
        %v3379 = vadd.f32 0.0, %v3378
        %3380 = vdwg.mxu0
        %v3382 = vsel %vm189, %v2475, 0
        %3384 = vmatpush.msra.mxu0 0.0
        %3385 = vmatpush.msra.mxu0 0.0
        %3386 = vmatpush.msra.mxu0 0.0
        %3387 = vmatpush.msra.mxu0 0.0
        %3388 = vmatpush.msra.mxu0 0.0
        %3389 = vmatpush.msra.mxu0 0.0
        %3390 = vmatpush.msra.mxu0 0.0
        %3391 = vmatpush.msra.mxu0 0.0
        %3392 = vmatpush.msra.mxu0 0.0
        %3393 = vmatpush.msra.mxu0 0.0
        %3394 = vmatpush.msra.mxu0 0.0
        %3395 = vmatpush.msra.mxu0 0.0
        %3396 = vmatpush.msra.mxu0 0.0
        %3397 = vmatpush.msra.mxu0 0.0
        %3398 = vmatpush.msra.mxu0 %v166
        %3399 = vmatpush.msra.mxu0 %v165
        %3400 = vmatmul.f32.gmra.mxu0 %v3382
        %v3401 = vpop.f32.mrf.mxu0
        %v3402 = vadd.f32 0.0, %v3401
        %3403 = vdwg.mxu0
        %v3405 = vsel %vm189, %v2476, 0
        %3407 = vmatpush.msra.mxu0 0.0
        %3408 = vmatpush.msra.mxu0 0.0
        %3409 = vmatpush.msra.mxu0 0.0
        %3410 = vmatpush.msra.mxu0 0.0
        %3411 = vmatpush.msra.mxu0 0.0
        %3412 = vmatpush.msra.mxu0 0.0
        %3413 = vmatpush.msra.mxu0 0.0
        %3414 = vmatpush.msra.mxu0 0.0
        %3415 = vmatpush.msra.mxu0 0.0
        %3416 = vmatpush.msra.mxu0 0.0
        %3417 = vmatpush.msra.mxu0 0.0
        %3418 = vmatpush.msra.mxu0 0.0
        %3419 = vmatpush.msra.mxu0 0.0
        %3420 = vmatpush.msra.mxu0 0.0
        %3421 = vmatpush.msra.mxu0 %v168
        %3422 = vmatpush.msra.mxu0 %v167
        %3423 = vmatmul.f32.gmra.mxu0 %v3405
        %v3424 = vpop.f32.mrf.mxu0
        %v3425 = vadd.f32 0.0, %v3424
        %3426 = vdwg.mxu0
        %v3428 = vsel %vm189, %v2477, 0
        %3430 = vmatpush.msra.mxu0 0.0
        %3431 = vmatpush.msra.mxu0 0.0
        %3432 = vmatpush.msra.mxu0 0.0
        %3433 = vmatpush.msra.mxu0 0.0
        %3434 = vmatpush.msra.mxu0 0.0
        %3435 = vmatpush.msra.mxu0 0.0
        %3436 = vmatpush.msra.mxu0 0.0
        %3437 = vmatpush.msra.mxu0 0.0
        %3438 = vmatpush.msra.mxu0 0.0
        %3439 = vmatpush.msra.mxu0 0.0
        %3440 = vmatpush.msra.mxu0 0.0
        %3441 = vmatpush.msra.mxu0 0.0
        %3442 = vmatpush.msra.mxu0 0.0
        %3443 = vmatpush.msra.mxu0 0.0
        %3444 = vmatpush.msra.mxu0 %v170
        %3445 = vmatpush.msra.mxu0 %v169
        %3446 = vmatmul.f32.gmra.mxu0 %v3428
        %v3447 = vpop.f32.mrf.mxu0
        %v3448 = vadd.f32 0.0, %v3447
        %3449 = vdwg.mxu0
        %v3451 = vsel %vm189, %v2478, 0
        %3453 = vmatpush.msra.mxu0 0.0
        %3454 = vmatpush.msra.mxu0 0.0
        %3455 = vmatpush.msra.mxu0 0.0
        %3456 = vmatpush.msra.mxu0 0.0
        %3457 = vmatpush.msra.mxu0 0.0
        %3458 = vmatpush.msra.mxu0 0.0
        %3459 = vmatpush.msra.mxu0 0.0
        %3460 = vmatpush.msra.mxu0 0.0
        %3461 = vmatpush.msra.mxu0 0.0
        %3462 = vmatpush.msra.mxu0 0.0
        %3463 = vmatpush.msra.mxu0 0.0
        %3464 = vmatpush.msra.mxu0 0.0
        %3465 = vmatpush.msra.mxu0 0.0
        %3466 = vmatpush.msra.mxu0 0.0
        %3467 = vmatpush.msra.mxu0 %v172
        %3468 = vmatpush.msra.mxu0 %v171
        %3469 = vmatmul.f32.gmra.mxu0 %v3451
        %v3470 = vpop.f32.mrf.mxu0
        %v3471 = vadd.f32 0.0, %v3470
        %3472 = vdwg.mxu0
        %v3474 = vsel %vm189, %v2479, 0
        %3476 = vmatpush.msra.mxu0 0.0
        %3477 = vmatpush.msra.mxu0 0.0
        %3478 = vmatpush.msra.mxu0 0.0
        %3479 = vmatpush.msra.mxu0 0.0
        %3480 = vmatpush.msra.mxu0 0.0
        %3481 = vmatpush.msra.mxu0 0.0
        %3482 = vmatpush.msra.mxu0 0.0
        %3483 = vmatpush.msra.mxu0 0.0
        %3484 = vmatpush.msra.mxu0 0.0
        %3485 = vmatpush.msra.mxu0 0.0
        %3486 = vmatpush.msra.mxu0 0.0
        %3487 = vmatpush.msra.mxu0 0.0
        %3488 = vmatpush.msra.mxu0 0.0
        %3489 = vmatpush.msra.mxu0 0.0
        %3490 = vmatpush.msra.mxu0 %v174
        %3491 = vmatpush.msra.mxu0 %v173
        %3492 = vmatmul.f32.gmra.mxu0 %v3474
        %v3493 = vpop.f32.mrf.mxu0
        %v3494 = vadd.f32 0.0, %v3493
        %3495 = vdwg.mxu0
        %v3497 = vsel %vm189, %v2480, 0
        %3499 = vmatpush.msra.mxu0 0.0
        %3500 = vmatpush.msra.mxu0 0.0
        %3501 = vmatpush.msra.mxu0 0.0
        %3502 = vmatpush.msra.mxu0 0.0
        %3503 = vmatpush.msra.mxu0 0.0
        %3504 = vmatpush.msra.mxu0 0.0
        %3505 = vmatpush.msra.mxu0 0.0
        %3506 = vmatpush.msra.mxu0 0.0
        %3507 = vmatpush.msra.mxu0 0.0
        %3508 = vmatpush.msra.mxu0 0.0
        %3509 = vmatpush.msra.mxu0 0.0
        %3510 = vmatpush.msra.mxu0 0.0
        %3511 = vmatpush.msra.mxu0 0.0
        %3512 = vmatpush.msra.mxu0 0.0
        %3513 = vmatpush.msra.mxu0 %v176
        %3514 = vmatpush.msra.mxu0 %v175
        %3515 = vmatmul.f32.gmra.mxu0 %v3497
        %v3516 = vpop.f32.mrf.mxu0
        %v3517 = vadd.f32 0.0, %v3516
        %3518 = vdwg.mxu0
        %v3520 = vsel %vm189, %v2481, 0
        %3522 = vmatpush.msra.mxu0 0.0
        %3523 = vmatpush.msra.mxu0 0.0
        %3524 = vmatpush.msra.mxu0 0.0
        %3525 = vmatpush.msra.mxu0 0.0
        %3526 = vmatpush.msra.mxu0 0.0
        %3527 = vmatpush.msra.mxu0 0.0
        %3528 = vmatpush.msra.mxu0 0.0
        %3529 = vmatpush.msra.mxu0 0.0
        %3530 = vmatpush.msra.mxu0 0.0
        %3531 = vmatpush.msra.mxu0 0.0
        %3532 = vmatpush.msra.mxu0 0.0
        %3533 = vmatpush.msra.mxu0 0.0
        %3534 = vmatpush.msra.mxu0 0.0
        %3535 = vmatpush.msra.mxu0 0.0
        %3536 = vmatpush.msra.mxu0 %v178
        %3537 = vmatpush.msra.mxu0 %v177
        %3538 = vmatmul.f32.gmra.mxu0 %v3520
        %v3539 = vpop.f32.mrf.mxu0
        %v3540 = vadd.f32 0.0, %v3539
        %3541 = vdwg.mxu0
        %v3543 = vsel %vm189, %v2482, 0
        %3545 = vmatpush.msra.mxu0 0.0
        %3546 = vmatpush.msra.mxu0 0.0
        %3547 = vmatpush.msra.mxu0 0.0
        %3548 = vmatpush.msra.mxu0 0.0
        %3549 = vmatpush.msra.mxu0 0.0
        %3550 = vmatpush.msra.mxu0 0.0
        %3551 = vmatpush.msra.mxu0 0.0
        %3552 = vmatpush.msra.mxu0 0.0
        %3553 = vmatpush.msra.mxu0 0.0
        %3554 = vmatpush.msra.mxu0 0.0
        %3555 = vmatpush.msra.mxu0 0.0
        %3556 = vmatpush.msra.mxu0 0.0
        %3557 = vmatpush.msra.mxu0 0.0
        %3558 = vmatpush.msra.mxu0 0.0
        %3559 = vmatpush.msra.mxu0 %v180
        %3560 = vmatpush.msra.mxu0 %v179
        %3561 = vmatmul.f32.gmra.mxu0 %v3543
        %v3562 = vpop.f32.mrf.mxu0
        %v3563 = vadd.f32 0.0, %v3562
        %3564 = vdwg.mxu0
        %v3566 = vsel %vm189, %v2483, 0
        %3568 = vmatpush.msra.mxu0 0.0
        %3569 = vmatpush.msra.mxu0 0.0
        %3570 = vmatpush.msra.mxu0 0.0
        %3571 = vmatpush.msra.mxu0 0.0
        %3572 = vmatpush.msra.mxu0 0.0
        %3573 = vmatpush.msra.mxu0 0.0
        %3574 = vmatpush.msra.mxu0 0.0
        %3575 = vmatpush.msra.mxu0 0.0
        %3576 = vmatpush.msra.mxu0 0.0
        %3577 = vmatpush.msra.mxu0 0.0
        %3578 = vmatpush.msra.mxu0 0.0
        %3579 = vmatpush.msra.mxu0 0.0
        %3580 = vmatpush.msra.mxu0 0.0
        %3581 = vmatpush.msra.mxu0 0.0
        %3582 = vmatpush.msra.mxu0 %v182
        %3583 = vmatpush.msra.mxu0 %v181
        %3584 = vmatmul.f32.gmra.mxu0 %v3566
        %v3585 = vpop.f32.mrf.mxu0
        %v3586 = vadd.f32 0.0, %v3585
        %3587 = vdwg.mxu0
        %v3589 = vsel %vm189, %v2484, 0
        %3591 = vmatpush.msra.mxu0 0.0
        %3592 = vmatpush.msra.mxu0 0.0
        %3593 = vmatpush.msra.mxu0 0.0
        %3594 = vmatpush.msra.mxu0 0.0
        %3595 = vmatpush.msra.mxu0 0.0
        %3596 = vmatpush.msra.mxu0 0.0
        %3597 = vmatpush.msra.mxu0 0.0
        %3598 = vmatpush.msra.mxu0 0.0
        %3599 = vmatpush.msra.mxu0 0.0
        %3600 = vmatpush.msra.mxu0 0.0
        %3601 = vmatpush.msra.mxu0 0.0
        %3602 = vmatpush.msra.mxu0 0.0
        %3603 = vmatpush.msra.mxu0 0.0
        %3604 = vmatpush.msra.mxu0 0.0
        %3605 = vmatpush.msra.mxu0 %v184
        %3606 = vmatpush.msra.mxu0 %v183
        %3607 = vmatmul.f32.gmra.mxu0 %v3589
        %v3608 = vpop.f32.mrf.mxu0
        %v3609 = vadd.f32 0.0, %v3608
        %3610 = vdwg.mxu0
        %v3612 = vsel %vm189, %v2485, 0
        %3614 = vmatpush.msra.mxu0 0.0
        %3615 = vmatpush.msra.mxu0 0.0
        %3616 = vmatpush.msra.mxu0 0.0
        %3617 = vmatpush.msra.mxu0 0.0
        %3618 = vmatpush.msra.mxu0 0.0
        %3619 = vmatpush.msra.mxu0 0.0
        %3620 = vmatpush.msra.mxu0 0.0
        %3621 = vmatpush.msra.mxu0 0.0
        %3622 = vmatpush.msra.mxu0 0.0
        %3623 = vmatpush.msra.mxu0 0.0
        %3624 = vmatpush.msra.mxu0 0.0
        %3625 = vmatpush.msra.mxu0 0.0
        %3626 = vmatpush.msra.mxu0 0.0
        %3627 = vmatpush.msra.mxu0 0.0
        %3628 = vmatpush.msra.mxu0 %v186
        %3629 = vmatpush.msra.mxu0 %v185
        %3630 = vmatmul.f32.gmra.mxu0 %v3612
        %v3631 = vpop.f32.mrf.mxu0
        %v3632 = vadd.f32 0.0, %v3631
        %3633 = vdwg.mxu0
        %v3635 = vsel %vm189, %v2486, 0
        %3637 = vmatpush.msra.mxu0 0.0
        %3638 = vmatpush.msra.mxu0 0.0
        %3639 = vmatpush.msra.mxu0 0.0
        %3640 = vmatpush.msra.mxu0 0.0
        %3641 = vmatpush.msra.mxu0 0.0
        %3642 = vmatpush.msra.mxu0 0.0
        %3643 = vmatpush.msra.mxu0 0.0
        %3644 = vmatpush.msra.mxu0 0.0
        %3645 = vmatpush.msra.mxu0 0.0
        %3646 = vmatpush.msra.mxu0 0.0
        %3647 = vmatpush.msra.mxu0 0.0
        %3648 = vmatpush.msra.mxu0 0.0
        %3649 = vmatpush.msra.mxu0 0.0
        %3650 = vmatpush.msra.mxu0 0.0
        %3651 = vmatpush.msra.mxu0 %v188
        %3652 = vmatpush.msra.mxu0 %v187
        %3653 = vmatmul.f32.gmra.mxu0 %v3635
        %v3654 = vpop.f32.mrf.mxu0
        %v3655 = vadd.f32 0.0, %v3654
        %3656 = vdwg.mxu0
        %v3658 = vsel %vm189, %v3310, 0
        %3660 = vmatpush.msra.mxu0 0.0
        %3661 = vmatpush.msra.mxu0 0.0
        %3662 = vmatpush.msra.mxu0 0.0
        %3663 = vmatpush.msra.mxu0 0.0
        %3664 = vmatpush.msra.mxu0 0.0
        %3665 = vmatpush.msra.mxu0 0.0
        %3666 = vmatpush.msra.mxu0 0.0
        %3667 = vmatpush.msra.mxu0 0.0
        %3668 = vmatpush.msra.mxu0 0.0
        %3669 = vmatpush.msra.mxu0 0.0
        %3670 = vmatpush.msra.mxu0 0.0
        %3671 = vmatpush.msra.mxu0 0.0
        %3672 = vmatpush.msra.mxu0 0.0
        %3673 = vmatpush.msra.mxu0 0.0
        %3674 = vmatpush.msra.mxu0 %v3258
        %3675 = vmatpush.msra.mxu0 %v3257
        %3676 = vmatmul.f32.gmra.mxu0 %v3658
        %v3677 = vpop.f32.mrf.mxu0
        %v3678 = vadd.f32 0.0, %v3677
        %3679 = vdwg.mxu0
        %v3681 = vsel %vm189, %v3333, 0
        %3683 = vmatpush.msra.mxu0 0.0
        %3684 = vmatpush.msra.mxu0 0.0
        %3685 = vmatpush.msra.mxu0 0.0
        %3686 = vmatpush.msra.mxu0 0.0
        %3687 = vmatpush.msra.mxu0 0.0
        %3688 = vmatpush.msra.mxu0 0.0
        %3689 = vmatpush.msra.mxu0 0.0
        %3690 = vmatpush.msra.mxu0 0.0
        %3691 = vmatpush.msra.mxu0 0.0
        %3692 = vmatpush.msra.mxu0 0.0
        %3693 = vmatpush.msra.mxu0 0.0
        %3694 = vmatpush.msra.mxu0 0.0
        %3695 = vmatpush.msra.mxu0 0.0
        %3696 = vmatpush.msra.mxu0 0.0
        %3697 = vmatpush.msra.mxu0 %v3260
        %3698 = vmatpush.msra.mxu0 %v3259
        %3699 = vmatmul.f32.gmra.mxu0 %v3681
        %v3700 = vpop.f32.mrf.mxu0
        %v3701 = vadd.f32 0.0, %v3700
        %3702 = vdwg.mxu0
        %v3704 = vsel %vm189, %v3356, 0
        %3706 = vmatpush.msra.mxu0 0.0
        %3707 = vmatpush.msra.mxu0 0.0
        %3708 = vmatpush.msra.mxu0 0.0
        %3709 = vmatpush.msra.mxu0 0.0
        %3710 = vmatpush.msra.mxu0 0.0
        %3711 = vmatpush.msra.mxu0 0.0
        %3712 = vmatpush.msra.mxu0 0.0
        %3713 = vmatpush.msra.mxu0 0.0
        %3714 = vmatpush.msra.mxu0 0.0
        %3715 = vmatpush.msra.mxu0 0.0
        %3716 = vmatpush.msra.mxu0 0.0
        %3717 = vmatpush.msra.mxu0 0.0
        %3718 = vmatpush.msra.mxu0 0.0
        %3719 = vmatpush.msra.mxu0 0.0
        %3720 = vmatpush.msra.mxu0 %v3262
        %3721 = vmatpush.msra.mxu0 %v3261
        %3722 = vmatmul.f32.gmra.mxu0 %v3704
        %v3723 = vpop.f32.mrf.mxu0
        %v3724 = vadd.f32 0.0, %v3723
        %3725 = vdwg.mxu0
        %v3727 = vsel %vm189, %v3379, 0
        %3729 = vmatpush.msra.mxu0 0.0
        %3730 = vmatpush.msra.mxu0 0.0
        %3731 = vmatpush.msra.mxu0 0.0
        %3732 = vmatpush.msra.mxu0 0.0
        %3733 = vmatpush.msra.mxu0 0.0
        %3734 = vmatpush.msra.mxu0 0.0
        %3735 = vmatpush.msra.mxu0 0.0
        %3736 = vmatpush.msra.mxu0 0.0
        %3737 = vmatpush.msra.mxu0 0.0
        %3738 = vmatpush.msra.mxu0 0.0
        %3739 = vmatpush.msra.mxu0 0.0
        %3740 = vmatpush.msra.mxu0 0.0
        %3741 = vmatpush.msra.mxu0 0.0
        %3742 = vmatpush.msra.mxu0 0.0
        %3743 = vmatpush.msra.mxu0 %v3264
        %3744 = vmatpush.msra.mxu0 %v3263
        %3745 = vmatmul.f32.gmra.mxu0 %v3727
        %v3746 = vpop.f32.mrf.mxu0
        %v3747 = vadd.f32 0.0, %v3746
        %3748 = vdwg.mxu0
        %v3750 = vsel %vm189, %v3402, 0
        %3752 = vmatpush.msra.mxu0 0.0
        %3753 = vmatpush.msra.mxu0 0.0
        %3754 = vmatpush.msra.mxu0 0.0
        %3755 = vmatpush.msra.mxu0 0.0
        %3756 = vmatpush.msra.mxu0 0.0
        %3757 = vmatpush.msra.mxu0 0.0
        %3758 = vmatpush.msra.mxu0 0.0
        %3759 = vmatpush.msra.mxu0 0.0
        %3760 = vmatpush.msra.mxu0 0.0
        %3761 = vmatpush.msra.mxu0 0.0
        %3762 = vmatpush.msra.mxu0 0.0
        %3763 = vmatpush.msra.mxu0 0.0
        %3764 = vmatpush.msra.mxu0 0.0
        %3765 = vmatpush.msra.mxu0 0.0
        %3766 = vmatpush.msra.mxu0 %v3266
        %3767 = vmatpush.msra.mxu0 %v3265
        %3768 = vmatmul.f32.gmra.mxu0 %v3750
        %v3769 = vpop.f32.mrf.mxu0
        %v3770 = vadd.f32 0.0, %v3769
        %3771 = vdwg.mxu0
        %v3773 = vsel %vm189, %v3425, 0
        %3775 = vmatpush.msra.mxu0 0.0
        %3776 = vmatpush.msra.mxu0 0.0
        %3777 = vmatpush.msra.mxu0 0.0
        %3778 = vmatpush.msra.mxu0 0.0
        %3779 = vmatpush.msra.mxu0 0.0
        %3780 = vmatpush.msra.mxu0 0.0
        %3781 = vmatpush.msra.mxu0 0.0
        %3782 = vmatpush.msra.mxu0 0.0
        %3783 = vmatpush.msra.mxu0 0.0
        %3784 = vmatpush.msra.mxu0 0.0
        %3785 = vmatpush.msra.mxu0 0.0
        %3786 = vmatpush.msra.mxu0 0.0
        %3787 = vmatpush.msra.mxu0 0.0
        %3788 = vmatpush.msra.mxu0 0.0
        %3789 = vmatpush.msra.mxu0 %v3268
        %3790 = vmatpush.msra.mxu0 %v3267
        %3791 = vmatmul.f32.gmra.mxu0 %v3773
        %v3792 = vpop.f32.mrf.mxu0
        %v3793 = vadd.f32 0.0, %v3792
        %3794 = vdwg.mxu0
        %v3796 = vsel %vm189, %v3448, 0
        %3798 = vmatpush.msra.mxu0 0.0
        %3799 = vmatpush.msra.mxu0 0.0
        %3800 = vmatpush.msra.mxu0 0.0
        %3801 = vmatpush.msra.mxu0 0.0
        %3802 = vmatpush.msra.mxu0 0.0
        %3803 = vmatpush.msra.mxu0 0.0
        %3804 = vmatpush.msra.mxu0 0.0
        %3805 = vmatpush.msra.mxu0 0.0
        %3806 = vmatpush.msra.mxu0 0.0
        %3807 = vmatpush.msra.mxu0 0.0
        %3808 = vmatpush.msra.mxu0 0.0
        %3809 = vmatpush.msra.mxu0 0.0
        %3810 = vmatpush.msra.mxu0 0.0
        %3811 = vmatpush.msra.mxu0 0.0
        %3812 = vmatpush.msra.mxu0 %v3270
        %3813 = vmatpush.msra.mxu0 %v3269
        %3814 = vmatmul.f32.gmra.mxu0 %v3796
        %v3815 = vpop.f32.mrf.mxu0
        %v3816 = vadd.f32 0.0, %v3815
        %3817 = vdwg.mxu0
        %v3819 = vsel %vm189, %v3471, 0
        %3821 = vmatpush.msra.mxu0 0.0
        %3822 = vmatpush.msra.mxu0 0.0
        %3823 = vmatpush.msra.mxu0 0.0
        %3824 = vmatpush.msra.mxu0 0.0
        %3825 = vmatpush.msra.mxu0 0.0
        %3826 = vmatpush.msra.mxu0 0.0
        %3827 = vmatpush.msra.mxu0 0.0
        %3828 = vmatpush.msra.mxu0 0.0
        %3829 = vmatpush.msra.mxu0 0.0
        %3830 = vmatpush.msra.mxu0 0.0
        %3831 = vmatpush.msra.mxu0 0.0
        %3832 = vmatpush.msra.mxu0 0.0
        %3833 = vmatpush.msra.mxu0 0.0
        %3834 = vmatpush.msra.mxu0 0.0
        %3835 = vmatpush.msra.mxu0 %v3272
        %3836 = vmatpush.msra.mxu0 %v3271
        %3837 = vmatmul.f32.gmra.mxu0 %v3819
        %v3838 = vpop.f32.mrf.mxu0
        %v3839 = vadd.f32 0.0, %v3838
        %3840 = vdwg.mxu0
        %v3842 = vsel %vm189, %v3494, 0
        %3844 = vmatpush.msra.mxu0 0.0
        %3845 = vmatpush.msra.mxu0 0.0
        %3846 = vmatpush.msra.mxu0 0.0
        %3847 = vmatpush.msra.mxu0 0.0
        %3848 = vmatpush.msra.mxu0 0.0
        %3849 = vmatpush.msra.mxu0 0.0
        %3850 = vmatpush.msra.mxu0 0.0
        %3851 = vmatpush.msra.mxu0 0.0
        %3852 = vmatpush.msra.mxu0 0.0
        %3853 = vmatpush.msra.mxu0 0.0
        %3854 = vmatpush.msra.mxu0 0.0
        %3855 = vmatpush.msra.mxu0 0.0
        %3856 = vmatpush.msra.mxu0 0.0
        %3857 = vmatpush.msra.mxu0 0.0
        %3858 = vmatpush.msra.mxu0 %v3274
        %3859 = vmatpush.msra.mxu0 %v3273
        %3860 = vmatmul.f32.gmra.mxu0 %v3842
        %v3861 = vpop.f32.mrf.mxu0
        %v3862 = vadd.f32 0.0, %v3861
        %3863 = vdwg.mxu0
        %v3865 = vsel %vm189, %v3517, 0
        %3867 = vmatpush.msra.mxu0 0.0
        %3868 = vmatpush.msra.mxu0 0.0
        %3869 = vmatpush.msra.mxu0 0.0
        %3870 = vmatpush.msra.mxu0 0.0
        %3871 = vmatpush.msra.mxu0 0.0
        %3872 = vmatpush.msra.mxu0 0.0
        %3873 = vmatpush.msra.mxu0 0.0
        %3874 = vmatpush.msra.mxu0 0.0
        %3875 = vmatpush.msra.mxu0 0.0
        %3876 = vmatpush.msra.mxu0 0.0
        %3877 = vmatpush.msra.mxu0 0.0
        %3878 = vmatpush.msra.mxu0 0.0
        %3879 = vmatpush.msra.mxu0 0.0
        %3880 = vmatpush.msra.mxu0 0.0
        %3881 = vmatpush.msra.mxu0 %v3276
        %3882 = vmatpush.msra.mxu0 %v3275
        %3883 = vmatmul.f32.gmra.mxu0 %v3865
        %v3884 = vpop.f32.mrf.mxu0
        %v3885 = vadd.f32 0.0, %v3884
        %3886 = vdwg.mxu0
        %v3888 = vsel %vm189, %v3540, 0
        %3890 = vmatpush.msra.mxu0 0.0
        %3891 = vmatpush.msra.mxu0 0.0
        %3892 = vmatpush.msra.mxu0 0.0
        %3893 = vmatpush.msra.mxu0 0.0
        %3894 = vmatpush.msra.mxu0 0.0
        %3895 = vmatpush.msra.mxu0 0.0
        %3896 = vmatpush.msra.mxu0 0.0
        %3897 = vmatpush.msra.mxu0 0.0
        %3898 = vmatpush.msra.mxu0 0.0
        %3899 = vmatpush.msra.mxu0 0.0
        %3900 = vmatpush.msra.mxu0 0.0
        %3901 = vmatpush.msra.mxu0 0.0
        %3902 = vmatpush.msra.mxu0 0.0
        %3903 = vmatpush.msra.mxu0 0.0
        %3904 = vmatpush.msra.mxu0 %v3278
        %3905 = vmatpush.msra.mxu0 %v3277
        %3906 = vmatmul.f32.gmra.mxu0 %v3888
        %v3907 = vpop.f32.mrf.mxu0
        %v3908 = vadd.f32 0.0, %v3907
        %3909 = vdwg.mxu0
        %v3911 = vsel %vm189, %v3563, 0
        %3913 = vmatpush.msra.mxu0 0.0
        %3914 = vmatpush.msra.mxu0 0.0
        %3915 = vmatpush.msra.mxu0 0.0
        %3916 = vmatpush.msra.mxu0 0.0
        %3917 = vmatpush.msra.mxu0 0.0
        %3918 = vmatpush.msra.mxu0 0.0
        %3919 = vmatpush.msra.mxu0 0.0
        %3920 = vmatpush.msra.mxu0 0.0
        %3921 = vmatpush.msra.mxu0 0.0
        %3922 = vmatpush.msra.mxu0 0.0
        %3923 = vmatpush.msra.mxu0 0.0
        %3924 = vmatpush.msra.mxu0 0.0
        %3925 = vmatpush.msra.mxu0 0.0
        %3926 = vmatpush.msra.mxu0 0.0
        %3927 = vmatpush.msra.mxu0 %v3280
        %3928 = vmatpush.msra.mxu0 %v3279
        %3929 = vmatmul.f32.gmra.mxu0 %v3911
        %v3930 = vpop.f32.mrf.mxu0
        %v3931 = vadd.f32 0.0, %v3930
        %3932 = vdwg.mxu0
        %v3934 = vsel %vm189, %v3586, 0
        %3936 = vmatpush.msra.mxu0 0.0
        %3937 = vmatpush.msra.mxu0 0.0
        %3938 = vmatpush.msra.mxu0 0.0
        %3939 = vmatpush.msra.mxu0 0.0
        %3940 = vmatpush.msra.mxu0 0.0
        %3941 = vmatpush.msra.mxu0 0.0
        %3942 = vmatpush.msra.mxu0 0.0
        %3943 = vmatpush.msra.mxu0 0.0
        %3944 = vmatpush.msra.mxu0 0.0
        %3945 = vmatpush.msra.mxu0 0.0
        %3946 = vmatpush.msra.mxu0 0.0
        %3947 = vmatpush.msra.mxu0 0.0
        %3948 = vmatpush.msra.mxu0 0.0
        %3949 = vmatpush.msra.mxu0 0.0
        %3950 = vmatpush.msra.mxu0 %v3282
        %3951 = vmatpush.msra.mxu0 %v3281
        %3952 = vmatmul.f32.gmra.mxu0 %v3934
        %v3953 = vpop.f32.mrf.mxu0
        %v3954 = vadd.f32 0.0, %v3953
        %3955 = vdwg.mxu0
        %v3957 = vsel %vm189, %v3609, 0
        %3959 = vmatpush.msra.mxu0 0.0
        %3960 = vmatpush.msra.mxu0 0.0
        %3961 = vmatpush.msra.mxu0 0.0
        %3962 = vmatpush.msra.mxu0 0.0
        %3963 = vmatpush.msra.mxu0 0.0
        %3964 = vmatpush.msra.mxu0 0.0
        %3965 = vmatpush.msra.mxu0 0.0
        %3966 = vmatpush.msra.mxu0 0.0
        %3967 = vmatpush.msra.mxu0 0.0
        %3968 = vmatpush.msra.mxu0 0.0
        %3969 = vmatpush.msra.mxu0 0.0
        %3970 = vmatpush.msra.mxu0 0.0
        %3971 = vmatpush.msra.mxu0 0.0
        %3972 = vmatpush.msra.mxu0 0.0
        %3973 = vmatpush.msra.mxu0 %v3284
        %3974 = vmatpush.msra.mxu0 %v3283
        %3975 = vmatmul.f32.gmra.mxu0 %v3957
        %v3976 = vpop.f32.mrf.mxu0
        %v3977 = vadd.f32 0.0, %v3976
        %3978 = vdwg.mxu0
        %v3980 = vsel %vm189, %v3632, 0
        %3982 = vmatpush.msra.mxu0 0.0
        %3983 = vmatpush.msra.mxu0 0.0
        %3984 = vmatpush.msra.mxu0 0.0
        %3985 = vmatpush.msra.mxu0 0.0
        %3986 = vmatpush.msra.mxu0 0.0
        %3987 = vmatpush.msra.mxu0 0.0
        %3988 = vmatpush.msra.mxu0 0.0
        %3989 = vmatpush.msra.mxu0 0.0
        %3990 = vmatpush.msra.mxu0 0.0
        %3991 = vmatpush.msra.mxu0 0.0
        %3992 = vmatpush.msra.mxu0 0.0
        %3993 = vmatpush.msra.mxu0 0.0
        %3994 = vmatpush.msra.mxu0 0.0
        %3995 = vmatpush.msra.mxu0 0.0
        %3996 = vmatpush.msra.mxu0 %v3286
        %3997 = vmatpush.msra.mxu0 %v3285
        %3998 = vmatmul.f32.gmra.mxu0 %v3980
        %v3999 = vpop.f32.mrf.mxu0
        %v4000 = vadd.f32 0.0, %v3999
        %4001 = vdwg.mxu0
        %v4003 = vsel %vm189, %v3655, 0
        %4005 = vmatpush.msra.mxu0 0.0
        %4006 = vmatpush.msra.mxu0 0.0
        %4007 = vmatpush.msra.mxu0 0.0
        %4008 = vmatpush.msra.mxu0 0.0
        %4009 = vmatpush.msra.mxu0 0.0
        %4010 = vmatpush.msra.mxu0 0.0
        %4011 = vmatpush.msra.mxu0 0.0
        %4012 = vmatpush.msra.mxu0 0.0
        %4013 = vmatpush.msra.mxu0 0.0
        %4014 = vmatpush.msra.mxu0 0.0
        %4015 = vmatpush.msra.mxu0 0.0
        %4016 = vmatpush.msra.mxu0 0.0
        %4017 = vmatpush.msra.mxu0 0.0
        %4018 = vmatpush.msra.mxu0 0.0
        %4019 = vmatpush.msra.mxu0 %v3288
        %4020 = vmatpush.msra.mxu0 %v3287
        %4021 = vmatmul.f32.gmra.mxu0 %v4003
        %v4022 = vpop.f32.mrf.mxu0
        %v4023 = vadd.f32 0.0, %v4022
        %4024 = vdwg.mxu0
        %4025 = vst.msk [vmem:[%s155] sm:$0xff] %vm2856, %v3678
        %4027 = vrot.lane.b32.xlu0 %v3701, 8
        %v4028 = vpop.permute.xlu0 %4027
        %vm4030 = vcmask 130112
        %4031 = vst.msk [vmem:[%s155] sm:$0xff] %vm4030, %v4028
        %4033 = vrot.lane.b32.xlu0 %v3724, 16
        %v4034 = vpop.permute.xlu0 %4033
        %vm4036 = vcmask 195712
        %4037 = vst.msk [vmem:[%s155] sm:$0xff] %vm4036, %v4034
        %4039 = vrot.lane.b32.xlu0 %v3747, 24
        %v4040 = vpop.permute.xlu0 %4039
        %vm4042 = vcmask 261312
        %4043 = vst.msk [vmem:[%s155] sm:$0xff] %vm4042, %v4040
        %4045 = vrot.lane.b32.xlu0 %v3770, 32
        %v4046 = vpop.permute.xlu0 %4045
        %vm4048 = vcmask 326912
        %4049 = vst.msk [vmem:[%s155] sm:$0xff] %vm4048, %v4046
        %4051 = vrot.lane.b32.xlu0 %v3793, 40
        %v4052 = vpop.permute.xlu0 %4051
        %vm4054 = vcmask 392512
        %4055 = vst.msk [vmem:[%s155] sm:$0xff] %vm4054, %v4052
        %4057 = vrot.lane.b32.xlu0 %v3816, 48
        %v4058 = vpop.permute.xlu0 %4057
        %vm4060 = vcmask 458112
        %4061 = vst.msk [vmem:[%s155] sm:$0xff] %vm4060, %v4058
        %4063 = vrot.lane.b32.xlu0 %v3839, 56
        %v4064 = vpop.permute.xlu0 %4063
        %vm4066 = vcmask 523712
        %4067 = vst.msk [vmem:[%s155] sm:$0xff] %vm4066, %v4064
        %4069 = vrot.lane.b32.xlu0 %v3862, 64
        %v4070 = vpop.permute.xlu0 %4069
        %vm4072 = vcmask 589312
        %4073 = vst.msk [vmem:[%s155] sm:$0xff] %vm4072, %v4070
        %4075 = vrot.lane.b32.xlu0 %v3885, 72
        %v4076 = vpop.permute.xlu0 %4075
        %vm4078 = vcmask 654912
        %4079 = vst.msk [vmem:[%s155] sm:$0xff] %vm4078, %v4076
        %4081 = vrot.lane.b32.xlu0 %v3908, 80
        %v4082 = vpop.permute.xlu0 %4081
        %vm4084 = vcmask 720512
        %4085 = vst.msk [vmem:[%s155] sm:$0xff] %vm4084, %v4082
        %4087 = vrot.lane.b32.xlu0 %v3931, 88
        %v4088 = vpop.permute.xlu0 %4087
        %vm4090 = vcmask 786112
        %4091 = vst.msk [vmem:[%s155] sm:$0xff] %vm4090, %v4088
        %4093 = vrot.lane.b32.xlu0 %v3954, 96
        %v4094 = vpop.permute.xlu0 %4093
        %vm4096 = vcmask 851712
        %4097 = vst.msk [vmem:[%s155] sm:$0xff] %vm4096, %v4094
        %4099 = vrot.lane.b32.xlu0 %v3977, 104
        %v4100 = vpop.permute.xlu0 %4099
        %vm4102 = vcmask 917312
        %4103 = vst.msk [vmem:[%s155] sm:$0xff] %vm4102, %v4100
        %4105 = vrot.lane.b32.xlu0 %v4000, 112
        %v4106 = vpop.permute.xlu0 %4105
        %vm4108 = vcmask 982912
        %4109 = vst.msk [vmem:[%s155] sm:$0xff] %vm4108, %v4106
        %4111 = vrot.lane.b32.xlu0 %v4023, 120
        %v4112 = vpop.permute.xlu0 %4111
        %vm4114 = vcmask 1048512
        %4115 = vst.msk [vmem:[%s155] sm:$0xff] %vm4114, %v4112
        %s4116 = sand.u32 %s68, 1
        %s4117 = scalar_lea.sflag [#allocation4], %s4116
        %s4118 = sand.u32 %s68, 1
        %s4119 = smul.addr %s4118, 8
        %s4120 = scalar_lea.vmem [#allocation5], %s4119
        // Predicated region
        $region29: #{tpu_custom_call.1} parent=23 // pred_check
          %p4121 = pneg %p78
        $region30: #{tpu_custom_call.1} parent=23 // pred_check_branch
          %4123 = sbr.rel (%p4121) target = $region32
        $region31: #{tpu_custom_call.1} parent=23 // pred_region
          %4125 = vsyncadd %s4117, 0
          %s4126 = sadd.s32 %s23, %s22
          %s4127 = smul.addr %s4126, 8
          %s4128 = scalar_lea.hbm %s1, %s4127
          %s4130 = sshll.u32 %s4120, 4
          %s4131 = int_to_ptr.vmem [resolvable:$true] %s4130
          %s4132 = sshll.u32 %s4128, 4
          %s4133 = int_to_ptr.hbm [resolvable:$true] %s4132
          %4135 = dma.vmem_to_hbm [thread:$0]  %s4131, 128, %s4133, %s4117
        $region32: #{tpu_custom_call.1} parent=23 // pred_fallthru
          _
      $region24: #{tpu_custom_call.1} parent=5 // pred_fallthru
        _
      %p4136 = scmp.le.s32.totalorder 2, %s13
      // Predicated region
      $region33: #{tpu_custom_call.1} parent=5 // pred_check
        %p4137 = pneg %p4136
      $region34: #{tpu_custom_call.1} parent=5 // pred_check_branch
        %4139 = sbr.rel (%p4137) target = $region36
      $region35: #{tpu_custom_call.1} parent=5 // pred_region
        %s4140 = ssub.s32 %s13, 2
        // Predicated region
        $region37: #{tpu_custom_call.1} parent=35 // pred_check
          %p4141 = pneg %p84
        $region38: #{tpu_custom_call.1} parent=35 // pred_check_branch
          %4143 = sbr.rel (%p4141) target = $region40
        $region39: #{tpu_custom_call.1} parent=35 // pred_region
          %s4144 = sand.u32 %s69, 1
          %s4145 = scalar_lea.sflag [#allocation4], %s4144
          %s4146 = sand.u32 %s69, 1
          %s4147 = smul.addr %s4146, 8
          %s4148 = scalar_lea.vmem [#allocation5], %s4147
          %4150 = dma.done %s4145, 128
        $region40: #{tpu_custom_call.1} parent=35 // pred_fallthru
          _
      $region36: #{tpu_custom_call.1} parent=5 // pred_fallthru
        _
    $region6: #{tpu_custom_call.1} parent=1 // loop_footer
      %s17 = sadd.s32 1, %s13
    $region7: #{tpu_custom_call.1} parent=1 // loop_footer_branch
      %12 = sbr.rel target = $region3
    $region8: #{tpu_custom_call.1} parent=1 // loop_exit
      _
    %4151 = vsyncpa [#allocation3], 1
    %s4152 = scalar_lea.sflag [#allocation3], 1
    %4153 = vsyncpa %s4152, 1
    %4154 = vsyncpa [#allocation4], 1
    %s4155 = scalar_lea.sflag [#allocation4], 1
    %4156 = vsyncpa %s4155, 1

</llo_original>
